<compile_context>
chip_gen: v7x
topology: tpu7x:2x2x1
jax: 0.10.0
libtpu: 0.0.40
codegen_flags: <defaults>
</compile_context>

<pallas_src>
import jax
import jax.numpy as jnp
import numpy as np
from jax import lax
from jax.experimental import pallas as pl
from jax.experimental.pallas import tpu as pltpu


# ------------------------- fused MPNN kernel --------------------------------
def _fused_mpnn_kernel(xf_ref, ea_ref, col_ref,
                       w1_ref, bm_ref, w2_ref, we_ref, wn_ref, bn_ref,
                       wo1_ref, wo2_ref, bo_ref, out_ref):
    f32 = jnp.float32
    bf16 = jnp.bfloat16
    tile_n = out_ref.shape[0]
    n_pad = xf_ref.shape[0]
    e_t = ea_ref.shape[0]              # deg * tile_n edges owned by this tile
    deg = e_t // tile_n

    # This tile's own nodes: slice the single VMEM-resident x (no duplicate input).
    start = pl.multiple_of(pl.program_id(0) * tile_n, tile_n)
    x_t = xf_ref[pl.ds(start, tile_n), :]                        # (tile_n, cin) bf16
    x_f = xf_ref[...]                                            # (n_pad, cin) bf16

    # m_1(x) with all three message biases folded in (b1 + b2 + be).
    msg1 = jnp.dot(x_t, w1_ref[...], preferred_element_type=f32) + bm_ref[...]

    # Batched one-hot col gather for ALL deg slots at once -> one big-M MXU matmul.
    # TODO(synk): for very large N replace this O(N^2 * deg) one-hot gather with a
    #             manual DMA row gather (scalar-prefetched col offsets + double-buffered
    #             make_async_copy) so edge work becomes O(E) and x need not be resident.
    col_t = col_ref[...]                                         # (e_t, 1) int32
    lane = lax.broadcasted_iota(jnp.int32, (e_t, n_pad), 1)
    onehot = jnp.where(col_t == lane, 1.0, 0.0).astype(bf16)     # exact in bf16
    x_col = jnp.dot(onehot, x_f, preferred_element_type=f32)     # (e_t, cin), exact gather

    # m_2(x[col]) + m_e(edge_attr): bf16 MXU operands, f32 accumulation (biases folded).
    msg2e = (jnp.dot(x_col.astype(bf16), w2_ref[...], preferred_element_type=f32)
             + jnp.dot(ea_ref[...], we_ref[...], preferred_element_type=f32))

    # relu(msg_1[row] + msg_2[col] + msg_e): the row-gather is the identity per slab in
    # this slot-major layout, so msg1 is added slab-wise (static, sublane-aligned slices).
    parts = [jnp.maximum(msg1 + msg2e[d * tile_n:(d + 1) * tile_n, :], 0.0)
             for d in range(deg)]
    m = jnp.concatenate(parts, axis=0)                           # (e_t, mid) f32

    # net = Linear(mid, mid) + ReLU as ONE big-M matmul over all deg slots.
    m = jnp.maximum(jnp.dot(m.astype(bf16), wn_ref[...],
                            preferred_element_type=f32) + bn_ref[...], 0.0)

    # MaxAggregation: running elementwise max over the deg row-slabs (pure VPU).
    agg = m[0:tile_n, :]
    for d in range(1, deg):
        agg = jnp.maximum(agg, m[d * tile_n:(d + 1) * tile_n, :])

    # out = o1(x) + o2(agg); (bo1 + bo2) folded into one lane-padded bias.
    out_ref[...] = (jnp.dot(x_t, wo1_ref[...], preferred_element_type=f32)
                    + jnp.dot(agg.astype(bf16), wo2_ref[...], preferred_element_type=f32)
                    + bo_ref[...])


# ----------------------------- wrapper ---------------------------------------
def sparse_mpnn_conv(x, col, edge_attr, params, *, tile_n=64):
    """Fused forward pass.

    Assumes a fixed out-degree, row-sorted CSR adjacency, i.e.
    row == repeat(arange(N), deg).  Validate once (outside the hot path) with
    check_fixed_out_degree_csr().
    TODO(synk): general variable-degree CSR would use scalar-prefetched rowptr offsets
                (PrefetchScalarGridSpec) instead of this fixed-degree fast path.
    """
    (w1, b1, w2, b2, we, be, wn, bn, wo1, bo1, wo2, bo2) = params
    n, cin = x.shape
    e, ce = edge_attr.shape
    mid = w1.shape[1]
    cout = wo1.shape[1]
    if e % n != 0:
        raise ValueError("fused kernel assumes a fixed out-degree CSR adjacency")
    deg = e // n
    if tile_n <= 0 or tile_n % 8 != 0:
        raise ValueError("tile_n must be a positive multiple of 8")

    bf16, f32 = jnp.bfloat16, jnp.float32

    # ---- per-generation VMEM budget (v5e/v6e: 128 MiB physical, v7x: 64 MiB) ----
    try:
        vmem_cap = int(pltpu.get_tpu_info().vmem_capacity_bytes)
    except Exception:
        vmem_cap = 64 * 1024 * 1024
    vmem_limit = int(min(100 * 1024 * 1024, (3 * vmem_cap) // 4))

    # Gate the tile size on that budget: the one-hot gather path keeps roughly
    # ~6 * deg * tile_n * n_pad bytes of live intermediates per tile (v7x is tightest).
    while tile_n > 8 and 6 * deg * tile_n * (pl.cdiv(n, tile_n) * tile_n) > vmem_limit // 3:
        tile_n //= 2

    n_pad = pl.cdiv(n, tile_n) * tile_n
    n_tiles = n_pad // tile_n
    e_t = deg * tile_n

    # ---- wrapper-side layout plumbing (one time) ----
    # x / edge_attr stored bf16 in HBM (MXU operand dtype); VPU math stays f32 in-kernel.
    x_p = x.astype(bf16)
    if n_pad != n:
        x_p = jnp.pad(x_p, ((0, n_pad - n), (0, 0)))

    # Per-tile, slot-major edge layout: tile i owns rows r = d * tile_n + t (all deg
    # slots of its tile_n nodes), so the row-gather is the identity per slab.
    def to_tile_major(a, c):
        a = a.reshape(n, deg, c).transpose(1, 0, 2)              # (deg, n, c)
        if n_pad != n:
            a = jnp.pad(a, ((0, 0), (0, n_pad - n), (0, 0)))
        a = a.reshape(deg, n_tiles, tile_n, c).transpose(1, 0, 2, 3)
        return a.reshape(n_tiles, e_t, c)

    ea_b = to_tile_major(edge_attr.astype(bf16), ce)             # (n_tiles, e_t, ce)
    col_b = to_tile_major(col.astype(jnp.int32), 1)              # (n_tiles, e_t, 1)

    # Lane-dense output: pad out-features to a multiple of 128 with zero weight columns.
    cpad = pl.cdiv(cout, 128) * 128
    padc = lambda a: jnp.pad(a, ((0, 0), (0, cpad - cout)))
    wo1_p = padc(wo1).astype(bf16)
    wo2_p = padc(wo2).astype(bf16)
    b_out = padc((bo1 + bo2).astype(f32))                        # folded output bias
    b_msg = (b1 + b2 + be).astype(f32)                           # folded message bias
    w1_b, w2_b, we_b, wn_b = (a.astype(bf16) for a in (w1, w2, we, wn))
    bn_f = bn.astype(f32)

    flops = (2 * n_pad * deg * (n_pad * cin + cin * mid + ce * mid + mid * mid)
             + 2 * n_pad * (cin * mid + cin * cpad + mid * cpad))
    bytes_accessed = int(
        x_p.size * 2 + ea_b.size * 2 + col_b.size * 4 + n_pad * cpad * 4
        + (w1.size + w2.size + we.size + wn.size + wo1_p.size + wo2_p.size) * 2
        + (b_msg.size + bn.size + b_out.size) * 4)
    cost = pl.CostEstimate(flops=int(flops), transcendentals=0,
                           bytes_accessed=bytes_accessed)

    def build(single_buffer_constants):
        # Constant-index-map inputs (full x, all weights/biases): a second pipeline
        # buffer is pure VMEM waste since the block never changes across grid steps.
        ckw = {"pipeline_mode": pl.Buffered(1)} if single_buffer_constants else {}

        def cspec(shape):
            nd = len(shape)
            return pl.BlockSpec(shape, lambda i: (0,) * nd, **ckw)

        grid_spec = pltpu.PrefetchScalarGridSpec(
            num_scalar_prefetch=0,
            grid=(n_tiles,),
            in_specs=[
                cspec((n_pad, cin)),                                   # x (resident, bf16)
                pl.BlockSpec((None, e_t, ce), lambda i: (i, 0, 0)),    # edge_attr (bf16)
                pl.BlockSpec((None, e_t, 1), lambda i: (i, 0, 0)),     # col ids (int32)
                cspec((cin, mid)), cspec((1, mid)),                    # m_1 W, folded msg bias
                cspec((cin, mid)),                                     # m_2 W
                cspec((ce, mid)),                                      # m_e W
                cspec((mid, mid)), cspec((1, mid)),                    # net Linear(mid, mid)
                cspec((cin, cpad)), cspec((mid, cpad)), cspec((1, cpad)),  # o1 / o2 / folded bias
            ],
            out_specs=pl.BlockSpec((tile_n, cpad), lambda i: (i, 0)),
        )
        return pl.pallas_call(
            _fused_mpnn_kernel,
            out_shape=jax.ShapeDtypeStruct((n_pad, cpad), f32),
            grid_spec=grid_spec,
            compiler_params=pltpu.CompilerParams(
                dimension_semantics=("parallel",),
                vmem_limit_bytes=vmem_limit,
            ),
            cost_estimate=cost,
        )

    args = (x_p, ea_b, col_b, w1_b, b_msg, w2_b, we_b, wn_b, bn_f, wo1_p, wo2_p, b_out)
    try:
        out = jax.block_until_ready(build(True)(*args))
    except Exception:
        # pl.Buffered(1) single-buffering unavailable on this jax/libtpu: default buffering.
        out = jax.block_until_ready(build(False)(*args))
    return out[:n, :cout]


# ------------------- one-time CSR layout validation (host side) ---------------
def check_fixed_out_degree_csr(row, n, deg):
    """Validates row == repeat(arange(N), deg).  Kept OUT of the per-call hot path so
    the wrapper never forces a device round-trip and stays jit-compatible."""
    r = np.asarray(jax.device_get(row)).astype(np.int64)
    expected = np.repeat(np.arange(n, dtype=np.int64), deg)
    if r.shape != expected.shape or not np.array_equal(r, expected):
        raise ValueError("row must equal repeat(arange(N), deg) (row-sorted CSR, fixed out-degree)")


# ------------------------- references (pure JAX) ------------------------------
def ref_forward_f32(x, row, col, edge_attr, params, n):
    (w1, b1, w2, b2, we, be, wn, bn, wo1, bo1, wo2, bo2) = params
    msg1 = x @ w1 + b1
    msg2 = x @ w2 + b2
    msge = edge_attr @ we + be
    m = jax.nn.relu(msg1[row] + msg2[col] + msge)
    m = jax.nn.relu(m @ wn + bn)
    agg = jnp.full((n, m.shape[1]), -jnp.inf, jnp.float32).at[row].max(m)
    agg = jnp.where(jnp.isneginf(agg), 0.0, agg)
    return (x @ wo1 + bo1) + (agg @ wo2 + bo2)


def ref_forward_matched(x, row, col, edge_attr, params, n):
    """Same math with the kernel's deliberate numerics policy: bf16 MXU operands,
    f32 accumulation and f32 elementwise math (and the same bias folding)."""
    (w1, b1, w2, b2, we, be, wn, bn, wo1, bo1, wo2, bo2) = params
    bf16, f32 = jnp.bfloat16, jnp.float32
    dot = lambda a, b: jnp.dot(a.astype(bf16), b.astype(bf16), preferred_element_type=f32)
    msg1 = dot(x, w1) + (b1 + b2 + be)
    msg2 = dot(x, w2)
    msg_e = dot(edge_attr, we)
    m = jax.nn.relu(msg1[row] + (msg2[col] + msg_e))
    m = jax.nn.relu(dot(m, wn) + bn)
    agg = jnp.full((n, m.shape[1]), -jnp.inf, f32).at[row].max(m)
    agg = jnp.where(jnp.isneginf(agg), 0.0, agg)
    return (dot(x, wo1) + dot(agg, wo2)) + (bo1 + bo2)


def init_linear(key, fan_in, fan_out):
    kw, kb = jax.random.split(key)
    bound = 1.0 / float(fan_in) ** 0.5
    w = jax.random.uniform(kw, (fan_in, fan_out), jnp.float32, -bound, bound)
    b = jax.random.uniform(kb, (1, fan_out), jnp.float32, -bound, bound)
    return w, b


if __name__ == "__main__":
    # Small synthetic graph.  grid = N / TILE_N = 8 "parallel" node tiles (>= 4 pipelined
    # steps per v7x TensorCore); M = DEG * TILE_N = 256 fills the 256-row MXU on v6e/v7x.
    N, CIN, CE, MID, COUT, DEG = 512, 8, 4, 32, 16, 4
    E = N * DEG
    TILE_N = 64

    key = jax.random.PRNGKey(0)
    keys = jax.random.split(key, 10)
    x = jax.random.normal(keys[0], (N, CIN), jnp.float32)
    edge_attr = jax.random.normal(keys[1], (E, CE), jnp.float32)
    row = jnp.repeat(jnp.arange(N, dtype=jnp.int32), DEG)        # adj_t.storage.row()
    col = jax.random.randint(keys[2], (E,), 0, N, jnp.int32)     # adj_t.storage.col()

    w1, b1 = init_linear(keys[3], CIN, MID)      # m_1
    w2, b2 = init_linear(keys[4], CIN, MID)      # m_2
    we, be = init_linear(keys[5], CE, MID)       # m_e
    wo1, bo1 = init_linear(keys[6], CIN, COUT)   # o1
    wo2, bo2 = init_linear(keys[7], MID, COUT)   # o2
    # TODO(synk): `net` is an externally supplied Sequential; modeled here as
    #             Sequential(Linear(MID, MID), ReLU()).
    wn, bn = init_linear(keys[8], MID, MID)
    params = (w1, b1, w2, b2, we, be, wn, bn, wo1, bo1, wo2, bo2)

    # One-time layout validation, outside the per-call hot path.
    check_fixed_out_degree_csr(row, N, DEG)

    out = sparse_mpnn_conv(x, col, edge_attr, params, tile_n=TILE_N)
    out = jax.block_until_ready(out)

    # Tight check vs a pure-JAX reference using the SAME numerics policy
    # (bf16 MXU operands, f32 accumulation / VPU math).
    ref_m = ref_forward_matched(x, row, col, edge_attr, params, N)
    if not jnp.allclose(out, ref_m, atol=2e-3, rtol=2e-3):
        err = float(jnp.max(jnp.abs(out - ref_m)))
        raise AssertionError(f"mismatch vs dtype-matched reference (max abs err {err})")

    # Loose sanity check vs the exact f32 reference (bounds the deliberate bf16 drift).
    ref_f = ref_forward_f32(x, row, col, edge_attr, params, N)
    rel = float(jnp.linalg.norm(out - ref_f) / jnp.linalg.norm(ref_f))
    if rel > 3e-2:
        raise AssertionError(f"bf16-operand drift vs f32 reference too large (rel l2 {rel})")

    print("KERNEL_OK")
</pallas_src>

<mosaic_0001>
module attributes {stable_mosaic.version = 11 : i64} {
  func.func @_fused_mpnn_kernel(%arg0: i32, %arg1: memref<512x8xbf16, #tpu.memory_space<vmem>>, %arg2: memref<1x256x4xbf16, #tpu.memory_space<vmem>>, %arg3: memref<1x256x1xi32, #tpu.memory_space<vmem>>, %arg4: memref<8x32xbf16, #tpu.memory_space<vmem>>, %arg5: memref<1x32xf32, #tpu.memory_space<vmem>>, %arg6: memref<8x32xbf16, #tpu.memory_space<vmem>>, %arg7: memref<4x32xbf16, #tpu.memory_space<vmem>>, %arg8: memref<32x32xbf16, #tpu.memory_space<vmem>>, %arg9: memref<1x32xf32, #tpu.memory_space<vmem>>, %arg10: memref<8x128xbf16, #tpu.memory_space<vmem>>, %arg11: memref<32x128xbf16, #tpu.memory_space<vmem>>, %arg12: memref<1x128xf32, #tpu.memory_space<vmem>>, %arg13: memref<64x128xf32, #tpu.memory_space<vmem>>) attributes {dimension_semantics = [#tpu.dimension_semantics<parallel>], iteration_bounds = array<i64: 8>, scalar_prefetch = 0 : i64, scratch_operands = 0 : i64, tpu.core_type = #tpu.core_type<tc>, window_params = [{pipeline_mode = #tpu.pipeline_mode<synchronous>, transform_indices = @transform_0, window_bounds = array<i64: 512, 8>}, {transform_indices = @transform_1, window_bounds = array<i64: 1, 256, 4>}, {transform_indices = @transform_2, window_bounds = array<i64: 1, 256, 1>}, {pipeline_mode = #tpu.pipeline_mode<synchronous>, transform_indices = @transform_3, window_bounds = array<i64: 8, 32>}, {pipeline_mode = #tpu.pipeline_mode<synchronous>, transform_indices = @transform_4, window_bounds = array<i64: 1, 32>}, {pipeline_mode = #tpu.pipeline_mode<synchronous>, transform_indices = @transform_5, window_bounds = array<i64: 8, 32>}, {pipeline_mode = #tpu.pipeline_mode<synchronous>, transform_indices = @transform_6, window_bounds = array<i64: 4, 32>}, {pipeline_mode = #tpu.pipeline_mode<synchronous>, transform_indices = @transform_7, window_bounds = array<i64: 32, 32>}, {pipeline_mode = #tpu.pipeline_mode<synchronous>, transform_indices = @transform_8, window_bounds = array<i64: 1, 32>}, {pipeline_mode = #tpu.pipeline_mode<synchronous>, transform_indices = @transform_9, window_bounds = array<i64: 8, 128>}, {pipeline_mode = #tpu.pipeline_mode<synchronous>, transform_indices = @transform_10, window_bounds = array<i64: 32, 128>}, {pipeline_mode = #tpu.pipeline_mode<synchronous>, transform_indices = @transform_11, window_bounds = array<i64: 1, 128>}, {transform_indices = @transform_12, window_bounds = array<i64: 64, 128>}]} {
    %c64_i32 = arith.constant 64 : i32
    %0 = arith.muli %arg0, %c64_i32 : i32
    %1 = tpu.assume_multiple %0, 64 : i32
    %2 = arith.index_cast %1 : i32 to index
    %c0 = arith.constant 0 : index
    %3 = vector.load %arg1[%2, %c0] : memref<512x8xbf16, #tpu.memory_space<vmem>>, vector<64x8xbf16>
    %c0_0 = arith.constant 0 : index
    %c0_1 = arith.constant 0 : index
    %4 = vector.load %arg1[%c0_0, %c0_1] : memref<512x8xbf16, #tpu.memory_space<vmem>>, vector<512x8xbf16>
    %c0_2 = arith.constant 0 : index
    %c0_3 = arith.constant 0 : index
    %5 = vector.load %arg4[%c0_2, %c0_3] : memref<8x32xbf16, #tpu.memory_space<vmem>>, vector<8x32xbf16>
    %cst = arith.constant dense<0.000000e+00> : vector<64x32xf32>
    %6 = tpu.matmul %3, %5, %cst {dimension_numbers = #tpu.dot_dimension_numbers<[1], [0], [0], [1], [0, 0, 1, 1], [], []>} : vector<64x8xbf16>, vector<8x32xbf16>, vector<64x32xf32> -> vector<64x32xf32>
    %c0_4 = arith.constant 0 : index
    %c0_5 = arith.constant 0 : index
    %7 = vector.load %arg5[%c0_4, %c0_5] : memref<1x32xf32, #tpu.memory_space<vmem>>, vector<1x32xf32>
    %8 = vector.broadcast %7 : vector<1x32xf32> to vector<64x32xf32>
    %9 = arith.addf %6, %8 : vector<64x32xf32>
    %c0_6 = arith.constant 0 : index
    %c0_7 = arith.constant 0 : index
    %c0_8 = arith.constant 0 : index
    %10 = vector.load %arg3[%c0_6, %c0_7, %c0_8] : memref<1x256x1xi32, #tpu.memory_space<vmem>>, vector<1x256x1xi32>
    %11 = vector.shape_cast %10 : vector<1x256x1xi32> to vector<256x1xi32>
    %12 = tpu.iota {dimensions = array<i32: 1>} : vector<256x512xi32>
    %13 = vector.broadcast %11 : vector<256x1xi32> to vector<256x512xi32>
    %14 = arith.cmpi eq, %13, %12 : vector<256x512xi32>
    %cst_9 = arith.constant 1.000000e+00 : f32
    %cst_10 = arith.constant 0.000000e+00 : f32
    %15 = vector.broadcast %cst_9 : f32 to vector<256x512xf32>
    %16 = vector.broadcast %cst_10 : f32 to vector<256x512xf32>
    %17 = arith.select %14, %15, %16 : vector<256x512xi1>, vector<256x512xf32>
    %18 = arith.truncf %17 : vector<256x512xf32> to vector<256x512xbf16>
    %cst_11 = arith.constant dense<0.000000e+00> : vector<256x8xf32>
    %19 = tpu.matmul %18, %4, %cst_11 {dimension_numbers = #tpu.dot_dimension_numbers<[1], [0], [0], [1], [0, 0, 1, 1], [], []>} : vector<256x512xbf16>, vector<512x8xbf16>, vector<256x8xf32> -> vector<256x8xf32>
    %20 = arith.truncf %19 : vector<256x8xf32> to vector<256x8xbf16>
    %c0_12 = arith.constant 0 : index
    %c0_13 = arith.constant 0 : index
    %21 = vector.load %arg6[%c0_12, %c0_13] : memref<8x32xbf16, #tpu.memory_space<vmem>>, vector<8x32xbf16>
    %cst_14 = arith.constant dense<0.000000e+00> : vector<256x32xf32>
    %22 = tpu.matmul %20, %21, %cst_14 {dimension_numbers = #tpu.dot_dimension_numbers<[1], [0], [0], [1], [0, 0, 1, 1], [], []>} : vector<256x8xbf16>, vector<8x32xbf16>, vector<256x32xf32> -> vector<256x32xf32>
    %c0_15 = arith.constant 0 : index
    %c0_16 = arith.constant 0 : index
    %c0_17 = arith.constant 0 : index
    %23 = vector.load %arg2[%c0_15, %c0_16, %c0_17] : memref<1x256x4xbf16, #tpu.memory_space<vmem>>, vector<1x256x4xbf16>
    %24 = vector.shape_cast %23 : vector<1x256x4xbf16> to vector<256x4xbf16>
    %c0_18 = arith.constant 0 : index
    %c0_19 = arith.constant 0 : index
    %25 = vector.load %arg7[%c0_18, %c0_19] : memref<4x32xbf16, #tpu.memory_space<vmem>>, vector<4x32xbf16>
    %cst_20 = arith.constant dense<0.000000e+00> : vector<256x32xf32>
    %26 = tpu.matmul %24, %25, %cst_20 {dimension_numbers = #tpu.dot_dimension_numbers<[1], [0], [0], [1], [0, 0, 1, 1], [], []>} : vector<256x4xbf16>, vector<4x32xbf16>, vector<256x32xf32> -> vector<256x32xf32>
    %27 = arith.addf %22, %26 : vector<256x32xf32>
    %28 = vector.extract_strided_slice %27 {offsets = [0, 0], sizes = [64, 32], strides = [1, 1]} : vector<256x32xf32> to vector<64x32xf32>
    %29 = arith.addf %9, %28 : vector<64x32xf32>
    %cst_21 = arith.constant 0.000000e+00 : f32
    %30 = vector.broadcast %cst_21 : f32 to vector<64x32xf32>
    %31 = arith.maximumf %29, %30 : vector<64x32xf32>
    %32 = vector.extract_strided_slice %27 {offsets = [64, 0], sizes = [64, 32], strides = [1, 1]} : vector<256x32xf32> to vector<64x32xf32>
    %33 = arith.addf %9, %32 : vector<64x32xf32>
    %cst_22 = arith.constant 0.000000e+00 : f32
    %34 = vector.broadcast %cst_22 : f32 to vector<64x32xf32>
    %35 = arith.maximumf %33, %34 : vector<64x32xf32>
    %36 = vector.extract_strided_slice %27 {offsets = [128, 0], sizes = [64, 32], strides = [1, 1]} : vector<256x32xf32> to vector<64x32xf32>
    %37 = arith.addf %9, %36 : vector<64x32xf32>
    %cst_23 = arith.constant 0.000000e+00 : f32
    %38 = vector.broadcast %cst_23 : f32 to vector<64x32xf32>
    %39 = arith.maximumf %37, %38 : vector<64x32xf32>
    %40 = vector.extract_strided_slice %27 {offsets = [192, 0], sizes = [64, 32], strides = [1, 1]} : vector<256x32xf32> to vector<64x32xf32>
    %41 = arith.addf %9, %40 : vector<64x32xf32>
    %cst_24 = arith.constant 0.000000e+00 : f32
    %42 = vector.broadcast %cst_24 : f32 to vector<64x32xf32>
    %43 = arith.maximumf %41, %42 : vector<64x32xf32>
    %44 = tpu.concatenate %31, %35, %39, %43 in 0 : vector<64x32xf32>, vector<64x32xf32>, vector<64x32xf32>, vector<64x32xf32> -> vector<256x32xf32>
    %45 = arith.truncf %44 : vector<256x32xf32> to vector<256x32xbf16>
    %c0_25 = arith.constant 0 : index
    %c0_26 = arith.constant 0 : index
    %46 = vector.load %arg8[%c0_25, %c0_26] : memref<32x32xbf16, #tpu.memory_space<vmem>>, vector<32x32xbf16>
    %cst_27 = arith.constant dense<0.000000e+00> : vector<256x32xf32>
    %47 = tpu.matmul %45, %46, %cst_27 {dimension_numbers = #tpu.dot_dimension_numbers<[1], [0], [0], [1], [0, 0, 1, 1], [], []>} : vector<256x32xbf16>, vector<32x32xbf16>, vector<256x32xf32> -> vector<256x32xf32>
    %c0_28 = arith.constant 0 : index
    %c0_29 = arith.constant 0 : index
    %48 = vector.load %arg9[%c0_28, %c0_29] : memref<1x32xf32, #tpu.memory_space<vmem>>, vector<1x32xf32>
    %49 = vector.broadcast %48 : vector<1x32xf32> to vector<256x32xf32>
    %50 = arith.addf %47, %49 : vector<256x32xf32>
    %cst_30 = arith.constant 0.000000e+00 : f32
    %51 = vector.broadcast %cst_30 : f32 to vector<256x32xf32>
    %52 = arith.maximumf %50, %51 : vector<256x32xf32>
    %53 = vector.extract_strided_slice %52 {offsets = [0, 0], sizes = [64, 32], strides = [1, 1]} : vector<256x32xf32> to vector<64x32xf32>
    %54 = vector.extract_strided_slice %52 {offsets = [64, 0], sizes = [64, 32], strides = [1, 1]} : vector<256x32xf32> to vector<64x32xf32>
    %55 = arith.maximumf %53, %54 : vector<64x32xf32>
    %56 = vector.extract_strided_slice %52 {offsets = [128, 0], sizes = [64, 32], strides = [1, 1]} : vector<256x32xf32> to vector<64x32xf32>
    %57 = arith.maximumf %55, %56 : vector<64x32xf32>
    %58 = vector.extract_strided_slice %52 {offsets = [192, 0], sizes = [64, 32], strides = [1, 1]} : vector<256x32xf32> to vector<64x32xf32>
    %59 = arith.maximumf %57, %58 : vector<64x32xf32>
    %c0_31 = arith.constant 0 : index
    %c0_32 = arith.constant 0 : index
    %60 = vector.load %arg10[%c0_31, %c0_32] : memref<8x128xbf16, #tpu.memory_space<vmem>>, vector<8x128xbf16>
    %cst_33 = arith.constant dense<0.000000e+00> : vector<64x128xf32>
    %61 = tpu.matmul %3, %60, %cst_33 {dimension_numbers = #tpu.dot_dimension_numbers<[1], [0], [0], [1], [0, 0, 1, 1], [], []>} : vector<64x8xbf16>, vector<8x128xbf16>, vector<64x128xf32> -> vector<64x128xf32>
    %62 = arith.truncf %59 : vector<64x32xf32> to vector<64x32xbf16>
    %c0_34 = arith.constant 0 : index
    %c0_35 = arith.constant 0 : index
    %63 = vector.load %arg11[%c0_34, %c0_35] : memref<32x128xbf16, #tpu.memory_space<vmem>>, vector<32x128xbf16>
    %cst_36 = arith.constant dense<0.000000e+00> : vector<64x128xf32>
    %64 = tpu.matmul %62, %63, %cst_36 {dimension_numbers = #tpu.dot_dimension_numbers<[1], [0], [0], [1], [0, 0, 1, 1], [], []>} : vector<64x32xbf16>, vector<32x128xbf16>, vector<64x128xf32> -> vector<64x128xf32>
    %65 = arith.addf %61, %64 : vector<64x128xf32>
    %c0_37 = arith.constant 0 : index
    %c0_38 = arith.constant 0 : index
    %66 = vector.load %arg12[%c0_37, %c0_38] : memref<1x128xf32, #tpu.memory_space<vmem>>, vector<1x128xf32>
    %67 = vector.broadcast %66 : vector<1x128xf32> to vector<64x128xf32>
    %68 = arith.addf %65, %67 : vector<64x128xf32>
    %c0_39 = arith.constant 0 : index
    %c0_40 = arith.constant 0 : index
    %69 = vector.load %arg13[%c0_39, %c0_40] : memref<64x128xf32, #tpu.memory_space<vmem>>, vector<64x128xf32>
    tpu.vector_store %arg13[%c0_39, %c0_40], %68 {strides = array<i32>} : memref<64x128xf32, #tpu.memory_space<vmem>>, vector<64x128xf32>,
    return
  }
  func.func @transform_0(%arg0: i32) -> (i32, i32) {
    %c0_i32 = arith.constant 0 : i32
    %c0_i32_0 = arith.constant 0 : i32
    %c0_i32_1 = arith.constant 0 : i32
    return %c0_i32, %c0_i32_0 : i32, i32
  }
  func.func @transform_1(%arg0: i32) -> (i32, i32, i32) {
    %c0_i32 = arith.constant 0 : i32
    %c0_i32_0 = arith.constant 0 : i32
    %c0_i32_1 = arith.constant 0 : i32
    return %arg0, %c0_i32, %c0_i32_0 : i32, i32, i32
  }
  func.func @transform_2(%arg0: i32) -> (i32, i32, i32) {
    %c0_i32 = arith.constant 0 : i32
    %c0_i32_0 = arith.constant 0 : i32
    %c0_i32_1 = arith.constant 0 : i32
    return %arg0, %c0_i32, %c0_i32_0 : i32, i32, i32
  }
  func.func @transform_3(%arg0: i32) -> (i32, i32) {
    %c0_i32 = arith.constant 0 : i32
    %c0_i32_0 = arith.constant 0 : i32
    %c0_i32_1 = arith.constant 0 : i32
    return %c0_i32, %c0_i32_0 : i32, i32
  }
  func.func @transform_4(%arg0: i32) -> (i32, i32) {
    %c0_i32 = arith.constant 0 : i32
    %c0_i32_0 = arith.constant 0 : i32
    %c0_i32_1 = arith.constant 0 : i32
    return %c0_i32, %c0_i32_0 : i32, i32
  }
  func.func @transform_5(%arg0: i32) -> (i32, i32) {
    %c0_i32 = arith.constant 0 : i32
    %c0_i32_0 = arith.constant 0 : i32
    %c0_i32_1 = arith.constant 0 : i32
    return %c0_i32, %c0_i32_0 : i32, i32
  }
  func.func @transform_6(%arg0: i32) -> (i32, i32) {
    %c0_i32 = arith.constant 0 : i32
    %c0_i32_0 = arith.constant 0 : i32
    %c0_i32_1 = arith.constant 0 : i32
    return %c0_i32, %c0_i32_0 : i32, i32
  }
  func.func @transform_7(%arg0: i32) -> (i32, i32) {
    %c0_i32 = arith.constant 0 : i32
    %c0_i32_0 = arith.constant 0 : i32
    %c0_i32_1 = arith.constant 0 : i32
    return %c0_i32, %c0_i32_0 : i32, i32
  }
  func.func @transform_8(%arg0: i32) -> (i32, i32) {
    %c0_i32 = arith.constant 0 : i32
    %c0_i32_0 = arith.constant 0 : i32
    %c0_i32_1 = arith.constant 0 : i32
    return %c0_i32, %c0_i32_0 : i32, i32
  }
  func.func @transform_9(%arg0: i32) -> (i32, i32) {
    %c0_i32 = arith.constant 0 : i32
    %c0_i32_0 = arith.constant 0 : i32
    %c0_i32_1 = arith.constant 0 : i32
    return %c0_i32, %c0_i32_0 : i32, i32
  }
  func.func @transform_10(%arg0: i32) -> (i32, i32) {
    %c0_i32 = arith.constant 0 : i32
    %c0_i32_0 = arith.constant 0 : i32
    %c0_i32_1 = arith.constant 0 : i32
    return %c0_i32, %c0_i32_0 : i32, i32
  }
  func.func @transform_11(%arg0: i32) -> (i32, i32) {
    %c0_i32 = arith.constant 0 : i32
    %c0_i32_0 = arith.constant 0 : i32
    %c0_i32_1 = arith.constant 0 : i32
    return %c0_i32, %c0_i32_0 : i32, i32
  }
  func.func @transform_12(%arg0: i32) -> (i32, i32) {
    %c0_i32 = arith.constant 0 : i32
    %c0_i32_0 = arith.constant 0 : i32
    return %arg0, %c0_i32 : i32, i32
  }
}

module attributes {stable_mosaic.version = 11 : i64} {
  func.func @_fused_mpnn_kernel(%arg0: i32, %arg1: memref<512x8xbf16, #tpu.memory_space<vmem>>, %arg2: memref<1x256x4xbf16, #tpu.memory_space<vmem>>, %arg3: memref<1x256x1xi32, #tpu.memory_space<vmem>>, %arg4: memref<8x32xbf16, #tpu.memory_space<vmem>>, %arg5: memref<1x32xf32, #tpu.memory_space<vmem>>, %arg6: memref<8x32xbf16, #tpu.memory_space<vmem>>, %arg7: memref<4x32xbf16, #tpu.memory_space<vmem>>, %arg8: memref<32x32xbf16, #tpu.memory_space<vmem>>, %arg9: memref<1x32xf32, #tpu.memory_space<vmem>>, %arg10: memref<8x128xbf16, #tpu.memory_space<vmem>>, %arg11: memref<32x128xbf16, #tpu.memory_space<vmem>>, %arg12: memref<1x128xf32, #tpu.memory_space<vmem>>, %arg13: memref<64x128xf32, #tpu.memory_space<vmem>>) attributes {dimension_semantics = [#tpu.dimension_semantics<parallel>], iteration_bounds = array<i64: 8>, scalar_prefetch = 0 : i64, scratch_operands = 0 : i64, tpu.core_type = #tpu.core_type<tc>, window_params = [{pipeline_mode = #tpu.pipeline_mode<synchronous>, transform_indices = @transform_0, window_bounds = array<i64: 512, 8>}, {transform_indices = @transform_1, window_bounds = array<i64: 1, 256, 4>}, {transform_indices = @transform_2, window_bounds = array<i64: 1, 256, 1>}, {pipeline_mode = #tpu.pipeline_mode<synchronous>, transform_indices = @transform_3, window_bounds = array<i64: 8, 32>}, {pipeline_mode = #tpu.pipeline_mode<synchronous>, transform_indices = @transform_4, window_bounds = array<i64: 1, 32>}, {pipeline_mode = #tpu.pipeline_mode<synchronous>, transform_indices = @transform_5, window_bounds = array<i64: 8, 32>}, {pipeline_mode = #tpu.pipeline_mode<synchronous>, transform_indices = @transform_6, window_bounds = array<i64: 4, 32>}, {pipeline_mode = #tpu.pipeline_mode<synchronous>, transform_indices = @transform_7, window_bounds = array<i64: 32, 32>}, {pipeline_mode = #tpu.pipeline_mode<synchronous>, transform_indices = @transform_8, window_bounds = array<i64: 1, 32>}, {pipeline_mode = #tpu.pipeline_mode<synchronous>, transform_indices = @transform_9, window_bounds = array<i64: 8, 128>}, {pipeline_mode = #tpu.pipeline_mode<synchronous>, transform_indices = @transform_10, window_bounds = array<i64: 32, 128>}, {pipeline_mode = #tpu.pipeline_mode<synchronous>, transform_indices = @transform_11, window_bounds = array<i64: 1, 128>}, {transform_indices = @transform_12, window_bounds = array<i64: 64, 128>}]} {
    %c64_i32 = arith.constant 64 : i32
    %0 = arith.muli %arg0, %c64_i32 : i32
    %1 = tpu.assume_multiple %0, 64 : i32
    %2 = arith.index_cast %1 : i32 to index
    %c0 = arith.constant 0 : index
    %3 = vector.load %arg1[%2, %c0] : memref<512x8xbf16, #tpu.memory_space<vmem>>, vector<64x8xbf16>
    %c0_0 = arith.constant 0 : index
    %c0_1 = arith.constant 0 : index
    %4 = vector.load %arg1[%c0_0, %c0_1] : memref<512x8xbf16, #tpu.memory_space<vmem>>, vector<512x8xbf16>
    %c0_2 = arith.constant 0 : index
    %c0_3 = arith.constant 0 : index
    %5 = vector.load %arg4[%c0_2, %c0_3] : memref<8x32xbf16, #tpu.memory_space<vmem>>, vector<8x32xbf16>
    %cst = arith.constant dense<0.000000e+00> : vector<64x32xf32>
    %6 = tpu.matmul %3, %5, %cst {dimension_numbers = #tpu.dot_dimension_numbers<[1], [0], [0], [1], [0, 0, 1, 1], [], []>} : vector<64x8xbf16>, vector<8x32xbf16>, vector<64x32xf32> -> vector<64x32xf32>
    %c0_4 = arith.constant 0 : index
    %c0_5 = arith.constant 0 : index
    %7 = vector.load %arg5[%c0_4, %c0_5] : memref<1x32xf32, #tpu.memory_space<vmem>>, vector<1x32xf32>
    %8 = vector.broadcast %7 : vector<1x32xf32> to vector<64x32xf32>
    %9 = arith.addf %6, %8 : vector<64x32xf32>
    %c0_6 = arith.constant 0 : index
    %c0_7 = arith.constant 0 : index
    %c0_8 = arith.constant 0 : index
    %10 = vector.load %arg3[%c0_6, %c0_7, %c0_8] : memref<1x256x1xi32, #tpu.memory_space<vmem>>, vector<1x256x1xi32>
    %11 = vector.shape_cast %10 : vector<1x256x1xi32> to vector<256x1xi32>
    %12 = tpu.iota {dimensions = array<i32: 1>} : vector<256x512xi32>
    %13 = vector.broadcast %11 : vector<256x1xi32> to vector<256x512xi32>
    %14 = arith.cmpi eq, %13, %12 : vector<256x512xi32>
    %cst_9 = arith.constant 1.000000e+00 : f32
    %cst_10 = arith.constant 0.000000e+00 : f32
    %15 = vector.broadcast %cst_9 : f32 to vector<256x512xf32>
    %16 = vector.broadcast %cst_10 : f32 to vector<256x512xf32>
    %17 = arith.select %14, %15, %16 : vector<256x512xi1>, vector<256x512xf32>
    %18 = arith.truncf %17 : vector<256x512xf32> to vector<256x512xbf16>
    %cst_11 = arith.constant dense<0.000000e+00> : vector<256x8xf32>
    %19 = tpu.matmul %18, %4, %cst_11 {dimension_numbers = #tpu.dot_dimension_numbers<[1], [0], [0], [1], [0, 0, 1, 1], [], []>} : vector<256x512xbf16>, vector<512x8xbf16>, vector<256x8xf32> -> vector<256x8xf32>
    %20 = arith.truncf %19 : vector<256x8xf32> to vector<256x8xbf16>
    %c0_12 = arith.constant 0 : index
    %c0_13 = arith.constant 0 : index
    %21 = vector.load %arg6[%c0_12, %c0_13] : memref<8x32xbf16, #tpu.memory_space<vmem>>, vector<8x32xbf16>
    %cst_14 = arith.constant dense<0.000000e+00> : vector<256x32xf32>
    %22 = tpu.matmul %20, %21, %cst_14 {dimension_numbers = #tpu.dot_dimension_numbers<[1], [0], [0], [1], [0, 0, 1, 1], [], []>} : vector<256x8xbf16>, vector<8x32xbf16>, vector<256x32xf32> -> vector<256x32xf32>
    %c0_15 = arith.constant 0 : index
    %c0_16 = arith.constant 0 : index
    %c0_17 = arith.constant 0 : index
    %23 = vector.load %arg2[%c0_15, %c0_16, %c0_17] : memref<1x256x4xbf16, #tpu.memory_space<vmem>>, vector<1x256x4xbf16>
    %24 = vector.shape_cast %23 : vector<1x256x4xbf16> to vector<256x4xbf16>
    %c0_18 = arith.constant 0 : index
    %c0_19 = arith.constant 0 : index
    %25 = vector.load %arg7[%c0_18, %c0_19] : memref<4x32xbf16, #tpu.memory_space<vmem>>, vector<4x32xbf16>
    %cst_20 = arith.constant dense<0.000000e+00> : vector<256x32xf32>
    %26 = tpu.matmul %24, %25, %cst_20 {dimension_numbers = #tpu.dot_dimension_numbers<[1], [0], [0], [1], [0, 0, 1, 1], [], []>} : vector<256x4xbf16>, vector<4x32xbf16>, vector<256x32xf32> -> vector<256x32xf32>
    %27 = arith.addf %22, %26 : vector<256x32xf32>
    %28 = vector.extract_strided_slice %27 {offsets = [0, 0], sizes = [64, 32], strides = [1, 1]} : vector<256x32xf32> to vector<64x32xf32>
    %29 = arith.addf %9, %28 : vector<64x32xf32>
    %cst_21 = arith.constant 0.000000e+00 : f32
    %30 = vector.broadcast %cst_21 : f32 to vector<64x32xf32>
    %31 = arith.maximumf %29, %30 : vector<64x32xf32>
    %32 = vector.extract_strided_slice %27 {offsets = [64, 0], sizes = [64, 32], strides = [1, 1]} : vector<256x32xf32> to vector<64x32xf32>
    %33 = arith.addf %9, %32 : vector<64x32xf32>
    %cst_22 = arith.constant 0.000000e+00 : f32
    %34 = vector.broadcast %cst_22 : f32 to vector<64x32xf32>
    %35 = arith.maximumf %33, %34 : vector<64x32xf32>
    %36 = vector.extract_strided_slice %27 {offsets = [128, 0], sizes = [64, 32], strides = [1, 1]} : vector<256x32xf32> to vector<64x32xf32>
    %37 = arith.addf %9, %36 : vector<64x32xf32>
    %cst_23 = arith.constant 0.000000e+00 : f32
    %38 = vector.broadcast %cst_23 : f32 to vector<64x32xf32>
    %39 = arith.maximumf %37, %38 : vector<64x32xf32>
    %40 = vector.extract_strided_slice %27 {offsets = [192, 0], sizes = [64, 32], strides = [1, 1]} : vector<256x32xf32> to vector<64x32xf32>
    %41 = arith.addf %9, %40 : vector<64x32xf32>
    %cst_24 = arith.constant 0.000000e+00 : f32
    %42 = vector.broadcast %cst_24 : f32 to vector<64x32xf32>
    %43 = arith.maximumf %41, %42 : vector<64x32xf32>
    %44 = tpu.concatenate %31, %35, %39, %43 in 0 : vector<64x32xf32>, vector<64x32xf32>, vector<64x32xf32>, vector<64x32xf32> -> vector<256x32xf32>
    %45 = arith.truncf %44 : vector<256x32xf32> to vector<256x32xbf16>
    %c0_25 = arith.constant 0 : index
    %c0_26 = arith.constant 0 : index
    %46 = vector.load %arg8[%c0_25, %c0_26] : memref<32x32xbf16, #tpu.memory_space<vmem>>, vector<32x32xbf16>
    %cst_27 = arith.constant dense<0.000000e+00> : vector<256x32xf32>
    %47 = tpu.matmul %45, %46, %cst_27 {dimension_numbers = #tpu.dot_dimension_numbers<[1], [0], [0], [1], [0, 0, 1, 1], [], []>} : vector<256x32xbf16>, vector<32x32xbf16>, vector<256x32xf32> -> vector<256x32xf32>
    %c0_28 = arith.constant 0 : index
    %c0_29 = arith.constant 0 : index
    %48 = vector.load %arg9[%c0_28, %c0_29] : memref<1x32xf32, #tpu.memory_space<vmem>>, vector<1x32xf32>
    %49 = vector.broadcast %48 : vector<1x32xf32> to vector<256x32xf32>
    %50 = arith.addf %47, %49 : vector<256x32xf32>
    %cst_30 = arith.constant 0.000000e+00 : f32
    %51 = vector.broadcast %cst_30 : f32 to vector<256x32xf32>
    %52 = arith.maximumf %50, %51 : vector<256x32xf32>
    %53 = vector.extract_strided_slice %52 {offsets = [0, 0], sizes = [64, 32], strides = [1, 1]} : vector<256x32xf32> to vector<64x32xf32>
    %54 = vector.extract_strided_slice %52 {offsets = [64, 0], sizes = [64, 32], strides = [1, 1]} : vector<256x32xf32> to vector<64x32xf32>
    %55 = arith.maximumf %53, %54 : vector<64x32xf32>
    %56 = vector.extract_strided_slice %52 {offsets = [128, 0], sizes = [64, 32], strides = [1, 1]} : vector<256x32xf32> to vector<64x32xf32>
    %57 = arith.maximumf %55, %56 : vector<64x32xf32>
    %58 = vector.extract_strided_slice %52 {offsets = [192, 0], sizes = [64, 32], strides = [1, 1]} : vector<256x32xf32> to vector<64x32xf32>
    %59 = arith.maximumf %57, %58 : vector<64x32xf32>
    %c0_31 = arith.constant 0 : index
    %c0_32 = arith.constant 0 : index
    %60 = vector.load %arg10[%c0_31, %c0_32] : memref<8x128xbf16, #tpu.memory_space<vmem>>, vector<8x128xbf16>
    %cst_33 = arith.constant dense<0.000000e+00> : vector<64x128xf32>
    %61 = tpu.matmul %3, %60, %cst_33 {dimension_numbers = #tpu.dot_dimension_numbers<[1], [0], [0], [1], [0, 0, 1, 1], [], []>} : vector<64x8xbf16>, vector<8x128xbf16>, vector<64x128xf32> -> vector<64x128xf32>
    %62 = arith.truncf %59 : vector<64x32xf32> to vector<64x32xbf16>
    %c0_34 = arith.constant 0 : index
    %c0_35 = arith.constant 0 : index
    %63 = vector.load %arg11[%c0_34, %c0_35] : memref<32x128xbf16, #tpu.memory_space<vmem>>, vector<32x128xbf16>
    %cst_36 = arith.constant dense<0.000000e+00> : vector<64x128xf32>
    %64 = tpu.matmul %62, %63, %cst_36 {dimension_numbers = #tpu.dot_dimension_numbers<[1], [0], [0], [1], [0, 0, 1, 1], [], []>} : vector<64x32xbf16>, vector<32x128xbf16>, vector<64x128xf32> -> vector<64x128xf32>
    %65 = arith.addf %61, %64 : vector<64x128xf32>
    %c0_37 = arith.constant 0 : index
    %c0_38 = arith.constant 0 : index
    %66 = vector.load %arg12[%c0_37, %c0_38] : memref<1x128xf32, #tpu.memory_space<vmem>>, vector<1x128xf32>
    %67 = vector.broadcast %66 : vector<1x128xf32> to vector<64x128xf32>
    %68 = arith.addf %65, %67 : vector<64x128xf32>
    %c0_39 = arith.constant 0 : index
    %c0_40 = arith.constant 0 : index
    %69 = vector.load %arg13[%c0_39, %c0_40] : memref<64x128xf32, #tpu.memory_space<vmem>>, vector<64x128xf32>
    tpu.vector_store %arg13[%c0_39, %c0_40], %68 {strides = array<i32>} : memref<64x128xf32, #tpu.memory_space<vmem>>, vector<64x128xf32>,
    return
  }
  func.func @transform_0(%arg0: i32) -> (i32, i32) {
    %c0_i32 = arith.constant 0 : i32
    %c0_i32_0 = arith.constant 0 : i32
    %c0_i32_1 = arith.constant 0 : i32
    return %c0_i32, %c0_i32_0 : i32, i32
  }
  func.func @transform_1(%arg0: i32) -> (i32, i32, i32) {
    %c0_i32 = arith.constant 0 : i32
    %c0_i32_0 = arith.constant 0 : i32
    %c0_i32_1 = arith.constant 0 : i32
    return %arg0, %c0_i32, %c0_i32_0 : i32, i32, i32
  }
  func.func @transform_2(%arg0: i32) -> (i32, i32, i32) {
    %c0_i32 = arith.constant 0 : i32
    %c0_i32_0 = arith.constant 0 : i32
    %c0_i32_1 = arith.constant 0 : i32
    return %arg0, %c0_i32, %c0_i32_0 : i32, i32, i32
  }
  func.func @transform_3(%arg0: i32) -> (i32, i32) {
    %c0_i32 = arith.constant 0 : i32
    %c0_i32_0 = arith.constant 0 : i32
    %c0_i32_1 = arith.constant 0 : i32
    return %c0_i32, %c0_i32_0 : i32, i32
  }
  func.func @transform_4(%arg0: i32) -> (i32, i32) {
    %c0_i32 = arith.constant 0 : i32
    %c0_i32_0 = arith.constant 0 : i32
    %c0_i32_1 = arith.constant 0 : i32
    return %c0_i32, %c0_i32_0 : i32, i32
  }
  func.func @transform_5(%arg0: i32) -> (i32, i32) {
    %c0_i32 = arith.constant 0 : i32
    %c0_i32_0 = arith.constant 0 : i32
    %c0_i32_1 = arith.constant 0 : i32
    return %c0_i32, %c0_i32_0 : i32, i32
  }
  func.func @transform_6(%arg0: i32) -> (i32, i32) {
    %c0_i32 = arith.constant 0 : i32
    %c0_i32_0 = arith.constant 0 : i32
    %c0_i32_1 = arith.constant 0 : i32
    return %c0_i32, %c0_i32_0 : i32, i32
  }
  func.func @transform_7(%arg0: i32) -> (i32, i32) {
    %c0_i32 = arith.constant 0 : i32
    %c0_i32_0 = arith.constant 0 : i32
    %c0_i32_1 = arith.constant 0 : i32
    return %c0_i32, %c0_i32_0 : i32, i32
  }
  func.func @transform_8(%arg0: i32) -> (i32, i32) {
    %c0_i32 = arith.constant 0 : i32
    %c0_i32_0 = arith.constant 0 : i32
    %c0_i32_1 = arith.constant 0 : i32
    return %c0_i32, %c0_i32_0 : i32, i32
  }
  func.func @transform_9(%arg0: i32) -> (i32, i32) {
    %c0_i32 = arith.constant 0 : i32
    %c0_i32_0 = arith.constant 0 : i32
    %c0_i32_1 = arith.constant 0 : i32
    return %c0_i32, %c0_i32_0 : i32, i32
  }
  func.func @transform_10(%arg0: i32) -> (i32, i32) {
    %c0_i32 = arith.constant 0 : i32
    %c0_i32_0 = arith.constant 0 : i32
    %c0_i32_1 = arith.constant 0 : i32
    return %c0_i32, %c0_i32_0 : i32, i32
  }
  func.func @transform_11(%arg0: i32) -> (i32, i32) {
    %c0_i32 = arith.constant 0 : i32
    %c0_i32_0 = arith.constant 0 : i32
    %c0_i32_1 = arith.constant 0 : i32
    return %c0_i32, %c0_i32_0 : i32, i32
  }
  func.func @transform_12(%arg0: i32) -> (i32, i32) {
    %c0_i32 = arith.constant 0 : i32
    %c0_i32_0 = arith.constant 0 : i32
    return %arg0, %c0_i32 : i32, i32
  }
}

</mosaic_0001>

<llo_original>
// kernel: tpu_custom_call.1
$region0: #{tpu_custom_call.1}
  #allocation0 [shape = 'u32[]', space=smem, size = 0x4, offset = 0x4, fixed_abs, tag = 'smem constant byte address 0x4 - core index']
  #allocation1 [shape = 'u32[144,128]{1,0:T(1,128)}', space=vmem, size = 0x12000, scoped, tag = 'internal scratch']
  %s0 = inlined_call_operand.vmem [shape: bf16[512,8], index: 0, kind: input, shape index: {}]
  %s1 = inlined_call_operand.vmem [shape: bf16[8,256,4], index: 1, kind: input, shape index: {}]
  %s2 = inlined_call_operand.vmem [shape: s32[8,256,1], index: 2, kind: input, shape index: {}]
  %s3 = inlined_call_operand.vmem [shape: bf16[8,32], index: 3, kind: input, shape index: {}]
  %s4 = inlined_call_operand.vmem [shape: f32[1,32], index: 4, kind: input, shape index: {}]
  %s5 = inlined_call_operand.vmem [shape: bf16[8,32], index: 5, kind: input, shape index: {}]
  %s6 = inlined_call_operand.vmem [shape: bf16[4,32], index: 6, kind: input, shape index: {}]
  %s7 = inlined_call_operand.vmem [shape: bf16[32,32], index: 7, kind: input, shape index: {}]
  %s8 = inlined_call_operand.vmem [shape: f32[1,32], index: 8, kind: input, shape index: {}]
  %s9 = inlined_call_operand.vmem [shape: bf16[8,128], index: 9, kind: input, shape index: {}]
  %s10 = inlined_call_operand.vmem [shape: bf16[32,128], index: 10, kind: input, shape index: {}]
  %s11 = inlined_call_operand.vmem [shape: f32[1,128], index: 11, kind: input, shape index: {}]
  %s12 = inlined_call_operand.hbm [shape: f32[512,128], index: 12, kind: output, shape index: {}]
  %s13 = sld [smem:[#allocation0]]
  $region81: #{tpu_custom_call.1} parent=0
    _
  %s15 = ssub.s32 1, %s13
  %s16 = scalar_select 0, %s15, %s13
  $region1: #{tpu_custom_call.1} parent=0
    #allocation2 [shape = 'u8[65536]{0}', space=vmem, size = 0x10000, scoped, tag = 'output window, operand 0']
    #allocation3 [shape = 's32[2]{0}', space=sflag, size = 0x8, scoped, tag = 'scoped memory for tpu_custom_call.1']
    %17 = vsyncpa [#allocation3], 0
    %s18 = scalar_lea.sflag [#allocation3], 1
    %19 = vsyncpa %s18, 0
    loop: start=0, step=1, limit=10
    $region2: #{tpu_custom_call.1} parent=1 // loop_pre_header
      _
    $region3: #{tpu_custom_call.1} parent=1 // loop_header
      %s21 = sphi 0, %s25
      %p22 = scmp.ge.s32.totalorder %s21, 10
      %s29 = sphi 0, %s29
      %s31 = sphi 0, %s29
      %s32 = sphi 0, %s31
      %s46 = sphi 0, %s32
      %s52 = sphi 0, %s54
      %s55 = sphi 0, %s52
      %s56 = sphi 0, %s55
      %s72 = sphi 0, %s56
      %s78 = sphi 0, %s80
      %s81 = sphi 0, %s78
      %s82 = sphi 0, %s81
      %s98 = sphi 0, %s82
      %s102 = sphi 0, %s102
      %s104 = sphi 0, %s102
      %s105 = sphi 0, %s104
      %s119 = sphi 0, %s105
      %s123 = sphi 0, %s123
      %s125 = sphi 0, %s123
      %s126 = sphi 0, %s125
      %s140 = sphi 0, %s126
      %s144 = sphi 0, %s144
      %s146 = sphi 0, %s144
      %s147 = sphi 0, %s146
      %s161 = sphi 0, %s147
      %s165 = sphi 0, %s165
      %s167 = sphi 0, %s165
      %s168 = sphi 0, %s167
      %s182 = sphi 0, %s168
      %s186 = sphi 0, %s186
      %s188 = sphi 0, %s186
      %s189 = sphi 0, %s188
      %s203 = sphi 0, %s189
      %s207 = sphi 0, %s207
      %s209 = sphi 0, %s207
      %s210 = sphi 0, %s209
      %s224 = sphi 0, %s210
      %s228 = sphi 0, %s228
      %s230 = sphi 0, %s228
      %s231 = sphi 0, %s230
      %s245 = sphi 0, %s231
      %s249 = sphi 0, %s249
      %s251 = sphi 0, %s249
      %s252 = sphi 0, %s251
      %s266 = sphi 0, %s252
      %s270 = sphi 0, %s270
      %s272 = sphi 0, %s270
      %s273 = sphi 0, %s272
      %s287 = sphi 0, %s273
      %s293 = sphi 0, %s295
      %s296 = sphi 0, %s293
      %s297 = sphi 0, %s296
      %s313 = sphi 0, %s297
    $region4: #{tpu_custom_call.1} parent=1 // loop_header_branch
      %24 = sbr.rel (%p22) target = $region8
    $region5: #{tpu_custom_call.1} parent=1 // loop_body
      %s26 = ssub.s32 %s21, 1
      %s27 = ssub.s32 %s21, 2
      %s28 = sadd.s32 %s21, 1
      %s30 = sadd.s32 %s29, 1
      %p33 = scmp.eq.s32.totalorder %s21, 7
      %p34 = scmp.ne.s32.totalorder %s29, %s31
      %p35 = scmp.eq.s32.totalorder %s21, 0
      %p36 = por %p34, %p35
      %p37 = scmp.ne.s32.totalorder %s29, %s31
      %p38 = scmp.eq.s32.totalorder %s26, 7
      %p39 = por %p37, %p38
      %p40 = scmp.ne.s32.totalorder %s31, %s32
      %p41 = scmp.eq.s32.totalorder %s26, 0
      %p42 = por %p40, %p41
      %p43 = scmp.ne.s32.totalorder %s31, %s32
      %p44 = scmp.eq.s32.totalorder %s27, 7
      %p45 = por %p43, %p44
      %p47 = scmp.ne.s32.totalorder %s32, %s46
      %p48 = scmp.eq.s32.totalorder %s27, 0
      %p49 = por %p47, %p48
      %s50 = ssub.s32 %s21, %s28
      %p51 = scmp.eq.s32.totalorder %s50, 0
      %s53 = sadd.s32 %s52, 1
      %s54 = scalar_select %p51, %s52, %s53
      %p57 = pneg %p51
      %p58 = scmp.eq.s32.totalorder %s21, 7
      %p59 = por %p57, %p58
      %p60 = scmp.ne.s32.totalorder %s52, %s55
      %p61 = scmp.eq.s32.totalorder %s21, 0
      %p62 = por %p60, %p61
      %p63 = scmp.ne.s32.totalorder %s52, %s55
      %p64 = scmp.eq.s32.totalorder %s26, 7
      %p65 = por %p63, %p64
      %p66 = scmp.ne.s32.totalorder %s55, %s56
      %p67 = scmp.eq.s32.totalorder %s26, 0
      %p68 = por %p66, %p67
      %p69 = scmp.ne.s32.totalorder %s55, %s56
      %p70 = scmp.eq.s32.totalorder %s27, 7
      %p71 = por %p69, %p70
      %p73 = scmp.ne.s32.totalorder %s56, %s72
      %p74 = scmp.eq.s32.totalorder %s27, 0
      %p75 = por %p73, %p74
      %s76 = ssub.s32 %s21, %s28
      %p77 = scmp.eq.s32.totalorder %s76, 0
      %s79 = sadd.s32 %s78, 1
      %s80 = scalar_select %p77, %s78, %s79
      %p83 = pneg %p77
      %p84 = scmp.eq.s32.totalorder %s21, 7
      %p85 = por %p83, %p84
      %p86 = scmp.ne.s32.totalorder %s78, %s81
      %p87 = scmp.eq.s32.totalorder %s21, 0
      %p88 = por %p86, %p87
      %p89 = scmp.ne.s32.totalorder %s78, %s81
      %p90 = scmp.eq.s32.totalorder %s26, 7
      %p91 = por %p89, %p90
      %p92 = scmp.ne.s32.totalorder %s81, %s82
      %p93 = scmp.eq.s32.totalorder %s26, 0
      %p94 = por %p92, %p93
      %p95 = scmp.ne.s32.totalorder %s81, %s82
      %p96 = scmp.eq.s32.totalorder %s27, 7
      %p97 = por %p95, %p96
      %p99 = scmp.ne.s32.totalorder %s82, %s98
      %p100 = scmp.eq.s32.totalorder %s27, 0
      %p101 = por %p99, %p100
      %s103 = sadd.s32 %s102, 1
      %p106 = scmp.eq.s32.totalorder %s21, 7
      %p107 = scmp.ne.s32.totalorder %s102, %s104
      %p108 = scmp.eq.s32.totalorder %s21, 0
      %p109 = por %p107, %p108
      %p110 = scmp.ne.s32.totalorder %s102, %s104
      %p111 = scmp.eq.s32.totalorder %s26, 7
      %p112 = por %p110, %p111
      %p113 = scmp.ne.s32.totalorder %s104, %s105
      %p114 = scmp.eq.s32.totalorder %s26, 0
      %p115 = por %p113, %p114
      %p116 = scmp.ne.s32.totalorder %s104, %s105
      %p117 = scmp.eq.s32.totalorder %s27, 7
      %p118 = por %p116, %p117
      %p120 = scmp.ne.s32.totalorder %s105, %s119
      %p121 = scmp.eq.s32.totalorder %s27, 0
      %p122 = por %p120, %p121
      %s124 = sadd.s32 %s123, 1
      %p127 = scmp.eq.s32.totalorder %s21, 7
      %p128 = scmp.ne.s32.totalorder %s123, %s125
      %p129 = scmp.eq.s32.totalorder %s21, 0
      %p130 = por %p128, %p129
      %p131 = scmp.ne.s32.totalorder %s123, %s125
      %p132 = scmp.eq.s32.totalorder %s26, 7
      %p133 = por %p131, %p132
      %p134 = scmp.ne.s32.totalorder %s125, %s126
      %p135 = scmp.eq.s32.totalorder %s26, 0
      %p136 = por %p134, %p135
      %p137 = scmp.ne.s32.totalorder %s125, %s126
      %p138 = scmp.eq.s32.totalorder %s27, 7
      %p139 = por %p137, %p138
      %p141 = scmp.ne.s32.totalorder %s126, %s140
      %p142 = scmp.eq.s32.totalorder %s27, 0
      %p143 = por %p141, %p142
      %s145 = sadd.s32 %s144, 1
      %p148 = scmp.eq.s32.totalorder %s21, 7
      %p149 = scmp.ne.s32.totalorder %s144, %s146
      %p150 = scmp.eq.s32.totalorder %s21, 0
      %p151 = por %p149, %p150
      %p152 = scmp.ne.s32.totalorder %s144, %s146
      %p153 = scmp.eq.s32.totalorder %s26, 7
      %p154 = por %p152, %p153
      %p155 = scmp.ne.s32.totalorder %s146, %s147
      %p156 = scmp.eq.s32.totalorder %s26, 0
      %p157 = por %p155, %p156
      %p158 = scmp.ne.s32.totalorder %s146, %s147
      %p159 = scmp.eq.s32.totalorder %s27, 7
      %p160 = por %p158, %p159
      %p162 = scmp.ne.s32.totalorder %s147, %s161
      %p163 = scmp.eq.s32.totalorder %s27, 0
      %p164 = por %p162, %p163
      %s166 = sadd.s32 %s165, 1
      %p169 = scmp.eq.s32.totalorder %s21, 7
      %p170 = scmp.ne.s32.totalorder %s165, %s167
      %p171 = scmp.eq.s32.totalorder %s21, 0
      %p172 = por %p170, %p171
      %p173 = scmp.ne.s32.totalorder %s165, %s167
      %p174 = scmp.eq.s32.totalorder %s26, 7
      %p175 = por %p173, %p174
      %p176 = scmp.ne.s32.totalorder %s167, %s168
      %p177 = scmp.eq.s32.totalorder %s26, 0
      %p178 = por %p176, %p177
      %p179 = scmp.ne.s32.totalorder %s167, %s168
      %p180 = scmp.eq.s32.totalorder %s27, 7
      %p181 = por %p179, %p180
      %p183 = scmp.ne.s32.totalorder %s168, %s182
      %p184 = scmp.eq.s32.totalorder %s27, 0
      %p185 = por %p183, %p184
      %s187 = sadd.s32 %s186, 1
      %p190 = scmp.eq.s32.totalorder %s21, 7
      %p191 = scmp.ne.s32.totalorder %s186, %s188
      %p192 = scmp.eq.s32.totalorder %s21, 0
      %p193 = por %p191, %p192
      %p194 = scmp.ne.s32.totalorder %s186, %s188
      %p195 = scmp.eq.s32.totalorder %s26, 7
      %p196 = por %p194, %p195
      %p197 = scmp.ne.s32.totalorder %s188, %s189
      %p198 = scmp.eq.s32.totalorder %s26, 0
      %p199 = por %p197, %p198
      %p200 = scmp.ne.s32.totalorder %s188, %s189
      %p201 = scmp.eq.s32.totalorder %s27, 7
      %p202 = por %p200, %p201
      %p204 = scmp.ne.s32.totalorder %s189, %s203
      %p205 = scmp.eq.s32.totalorder %s27, 0
      %p206 = por %p204, %p205
      %s208 = sadd.s32 %s207, 1
      %p211 = scmp.eq.s32.totalorder %s21, 7
      %p212 = scmp.ne.s32.totalorder %s207, %s209
      %p213 = scmp.eq.s32.totalorder %s21, 0
      %p214 = por %p212, %p213
      %p215 = scmp.ne.s32.totalorder %s207, %s209
      %p216 = scmp.eq.s32.totalorder %s26, 7
      %p217 = por %p215, %p216
      %p218 = scmp.ne.s32.totalorder %s209, %s210
      %p219 = scmp.eq.s32.totalorder %s26, 0
      %p220 = por %p218, %p219
      %p221 = scmp.ne.s32.totalorder %s209, %s210
      %p222 = scmp.eq.s32.totalorder %s27, 7
      %p223 = por %p221, %p222
      %p225 = scmp.ne.s32.totalorder %s210, %s224
      %p226 = scmp.eq.s32.totalorder %s27, 0
      %p227 = por %p225, %p226
      %s229 = sadd.s32 %s228, 1
      %p232 = scmp.eq.s32.totalorder %s21, 7
      %p233 = scmp.ne.s32.totalorder %s228, %s230
      %p234 = scmp.eq.s32.totalorder %s21, 0
      %p235 = por %p233, %p234
      %p236 = scmp.ne.s32.totalorder %s228, %s230
      %p237 = scmp.eq.s32.totalorder %s26, 7
      %p238 = por %p236, %p237
      %p239 = scmp.ne.s32.totalorder %s230, %s231
      %p240 = scmp.eq.s32.totalorder %s26, 0
      %p241 = por %p239, %p240
      %p242 = scmp.ne.s32.totalorder %s230, %s231
      %p243 = scmp.eq.s32.totalorder %s27, 7
      %p244 = por %p242, %p243
      %p246 = scmp.ne.s32.totalorder %s231, %s245
      %p247 = scmp.eq.s32.totalorder %s27, 0
      %p248 = por %p246, %p247
      %s250 = sadd.s32 %s249, 1
      %p253 = scmp.eq.s32.totalorder %s21, 7
      %p254 = scmp.ne.s32.totalorder %s249, %s251
      %p255 = scmp.eq.s32.totalorder %s21, 0
      %p256 = por %p254, %p255
      %p257 = scmp.ne.s32.totalorder %s249, %s251
      %p258 = scmp.eq.s32.totalorder %s26, 7
      %p259 = por %p257, %p258
      %p260 = scmp.ne.s32.totalorder %s251, %s252
      %p261 = scmp.eq.s32.totalorder %s26, 0
      %p262 = por %p260, %p261
      %p263 = scmp.ne.s32.totalorder %s251, %s252
      %p264 = scmp.eq.s32.totalorder %s27, 7
      %p265 = por %p263, %p264
      %p267 = scmp.ne.s32.totalorder %s252, %s266
      %p268 = scmp.eq.s32.totalorder %s27, 0
      %p269 = por %p267, %p268
      %s271 = sadd.s32 %s270, 1
      %p274 = scmp.eq.s32.totalorder %s21, 7
      %p275 = scmp.ne.s32.totalorder %s270, %s272
      %p276 = scmp.eq.s32.totalorder %s21, 0
      %p277 = por %p275, %p276
      %p278 = scmp.ne.s32.totalorder %s270, %s272
      %p279 = scmp.eq.s32.totalorder %s26, 7
      %p280 = por %p278, %p279
      %p281 = scmp.ne.s32.totalorder %s272, %s273
      %p282 = scmp.eq.s32.totalorder %s26, 0
      %p283 = por %p281, %p282
      %p284 = scmp.ne.s32.totalorder %s272, %s273
      %p285 = scmp.eq.s32.totalorder %s27, 7
      %p286 = por %p284, %p285
      %p288 = scmp.ne.s32.totalorder %s273, %s287
      %p289 = scmp.eq.s32.totalorder %s27, 0
      %p290 = por %p288, %p289
      %s291 = ssub.s32 %s21, %s28
      %p292 = scmp.eq.s32.totalorder %s291, 0
      %s294 = sadd.s32 %s293, 1
      %s295 = scalar_select %p292, %s293, %s294
      %p298 = pneg %p292
      %p299 = scmp.eq.s32.totalorder %s21, 7
      %p300 = por %p298, %p299
      %p301 = scmp.ne.s32.totalorder %s293, %s296
      %p302 = scmp.eq.s32.totalorder %s21, 0
      %p303 = por %p301, %p302
      %p304 = scmp.ne.s32.totalorder %s293, %s296
      %p305 = scmp.eq.s32.totalorder %s26, 7
      %p306 = por %p304, %p305
      %p307 = scmp.ne.s32.totalorder %s296, %s297
      %p308 = scmp.eq.s32.totalorder %s26, 0
      %p309 = por %p307, %p308
      %p310 = scmp.ne.s32.totalorder %s296, %s297
      %p311 = scmp.eq.s32.totalorder %s27, 7
      %p312 = por %p310, %p311
      %p314 = scmp.ne.s32.totalorder %s297, %s313
      %p315 = scmp.eq.s32.totalorder %s27, 0
      %p316 = por %p314, %p315
      %p317 = scmp.le.s32.totalorder 1, %s21
      %p318 = scmp.lt.s32.totalorder %s21, 9
      %p319 = pnand %p317, %p318
      %p320 = pneg %p319
      // Predicated region
      $region9: #{tpu_custom_call.1} parent=5 // pred_check
        _
      $region10: #{tpu_custom_call.1} parent=5 // pred_check_branch
        %322 = sbr.rel (%p319) target = $region12
      $region11: #{tpu_custom_call.1} parent=5 // pred_region
        %s323 = ssub.s32 %s21, 1
        // Predicated region
        $region13: #{tpu_custom_call.1} parent=11 // pred_check
          %p324 = pneg %p42
        $region14: #{tpu_custom_call.1} parent=11 // pred_check_branch
          %326 = sbr.rel (%p324) target = $region16
        $region15: #{tpu_custom_call.1} parent=11 // pred_region
          _
        $region16: #{tpu_custom_call.1} parent=11 // pred_fallthru
          _
        // Predicated region
        $region17: #{tpu_custom_call.1} parent=11 // pred_check
          %p327 = pneg %p115
        $region18: #{tpu_custom_call.1} parent=11 // pred_check_branch
          %329 = sbr.rel (%p327) target = $region20
        $region19: #{tpu_custom_call.1} parent=11 // pred_region
          _
        $region20: #{tpu_custom_call.1} parent=11 // pred_fallthru
          _
        // Predicated region
        $region21: #{tpu_custom_call.1} parent=11 // pred_check
          %p330 = pneg %p136
        $region22: #{tpu_custom_call.1} parent=11 // pred_check_branch
          %332 = sbr.rel (%p330) target = $region24
        $region23: #{tpu_custom_call.1} parent=11 // pred_region
          _
        $region24: #{tpu_custom_call.1} parent=11 // pred_fallthru
          _
        // Predicated region
        $region25: #{tpu_custom_call.1} parent=11 // pred_check
          %p333 = pneg %p157
        $region26: #{tpu_custom_call.1} parent=11 // pred_check_branch
          %335 = sbr.rel (%p333) target = $region28
        $region27: #{tpu_custom_call.1} parent=11 // pred_region
          _
        $region28: #{tpu_custom_call.1} parent=11 // pred_fallthru
          _
        // Predicated region
        $region29: #{tpu_custom_call.1} parent=11 // pred_check
          %p336 = pneg %p178
        $region30: #{tpu_custom_call.1} parent=11 // pred_check_branch
          %338 = sbr.rel (%p336) target = $region32
        $region31: #{tpu_custom_call.1} parent=11 // pred_region
          _
        $region32: #{tpu_custom_call.1} parent=11 // pred_fallthru
          _
        // Predicated region
        $region33: #{tpu_custom_call.1} parent=11 // pred_check
          %p339 = pneg %p199
        $region34: #{tpu_custom_call.1} parent=11 // pred_check_branch
          %341 = sbr.rel (%p339) target = $region36
        $region35: #{tpu_custom_call.1} parent=11 // pred_region
          _
        $region36: #{tpu_custom_call.1} parent=11 // pred_fallthru
          _
        // Predicated region
        $region37: #{tpu_custom_call.1} parent=11 // pred_check
          %p342 = pneg %p220
        $region38: #{tpu_custom_call.1} parent=11 // pred_check_branch
          %344 = sbr.rel (%p342) target = $region40
        $region39: #{tpu_custom_call.1} parent=11 // pred_region
          _
        $region40: #{tpu_custom_call.1} parent=11 // pred_fallthru
          _
        // Predicated region
        $region41: #{tpu_custom_call.1} parent=11 // pred_check
          %p345 = pneg %p241
        $region42: #{tpu_custom_call.1} parent=11 // pred_check_branch
          %347 = sbr.rel (%p345) target = $region44
        $region43: #{tpu_custom_call.1} parent=11 // pred_region
          _
        $region44: #{tpu_custom_call.1} parent=11 // pred_fallthru
          _
        // Predicated region
        $region45: #{tpu_custom_call.1} parent=11 // pred_check
          %p348 = pneg %p262
        $region46: #{tpu_custom_call.1} parent=11 // pred_check_branch
          %350 = sbr.rel (%p348) target = $region48
        $region47: #{tpu_custom_call.1} parent=11 // pred_region
          _
        $region48: #{tpu_custom_call.1} parent=11 // pred_fallthru
          _
        // Predicated region
        $region49: #{tpu_custom_call.1} parent=11 // pred_check
          %p351 = pneg %p283
        $region50: #{tpu_custom_call.1} parent=11 // pred_check_branch
          %353 = sbr.rel (%p351) target = $region52
        $region51: #{tpu_custom_call.1} parent=11 // pred_region
          _
        $region52: #{tpu_custom_call.1} parent=11 // pred_fallthru
          _
      $region12: #{tpu_custom_call.1} parent=5 // pred_fallthru
        _
      %p354 = scmp.lt.s32.totalorder %s21, 8
      // Predicated region
      $region53: #{tpu_custom_call.1} parent=5 // pred_check
        %p355 = pneg %p354
      $region54: #{tpu_custom_call.1} parent=5 // pred_check_branch
        %357 = sbr.rel (%p355) target = $region56
      $region55: #{tpu_custom_call.1} parent=5 // pred_region
        // Predicated region
        $region57: #{tpu_custom_call.1} parent=55 // pred_check
          %p358 = pneg %p62
        $region58: #{tpu_custom_call.1} parent=55 // pred_check_branch
          %360 = sbr.rel (%p358) target = $region60
        $region59: #{tpu_custom_call.1} parent=55 // pred_region
          %p361 = scmp.lt.s32.totalorder %s21, 7
          %s362 = scalar_select %p361, %s21, 7
          %s363 = smul.addr %s362, 32
          %s364 = smul.addr %s363, 4
          %s365 = scalar_lea.vmem %s1, %s364
        $region60: #{tpu_custom_call.1} parent=55 // pred_fallthru
          _
        // Predicated region
        $region61: #{tpu_custom_call.1} parent=55 // pred_check
          %p366 = pneg %p88
        $region62: #{tpu_custom_call.1} parent=55 // pred_check_branch
          %368 = sbr.rel (%p366) target = $region64
        $region63: #{tpu_custom_call.1} parent=55 // pred_region
          %p369 = scmp.lt.s32.totalorder %s21, 7
          %s370 = scalar_select %p369, %s21, 7
          %s371 = smul.addr %s370, 32
          %s372 = smul.addr %s371, 8
          %s373 = scalar_lea.vmem %s2, %s372
        $region64: #{tpu_custom_call.1} parent=55 // pred_fallthru
          _
      $region56: #{tpu_custom_call.1} parent=5 // pred_fallthru
        _
      %p374 = scmp.le.s32.totalorder 1, %s21
      %p375 = scmp.lt.s32.totalorder %s21, 9
      %p376 = pnand %p374, %p375
      %p377 = pneg %p376
      // Predicated region
      $region65: #{tpu_custom_call.1} parent=5 // pred_check
        _
      $region66: #{tpu_custom_call.1} parent=5 // pred_check_branch
        %379 = sbr.rel (%p376) target = $region68
      $region67: #{tpu_custom_call.1} parent=5 // pred_region
        %s380 = ssub.s32 %s21, 1
        %p381 = pneg %p42
        %p382 = pneg %p39
        %p383 = scmp.lt.s32.totalorder %s26, 7
        %s384 = scalar_select %p383, %s26, 7
        %s385 = smul.addr %s384, 32
        %s386 = smul.addr %s385, 4
        %s387 = scalar_lea.vmem %s1, %s386
        %p388 = pneg %p68
        %p389 = pneg %p65
        %p390 = scmp.lt.s32.totalorder %s26, 7
        %s391 = scalar_select %p390, %s26, 7
        %s392 = smul.addr %s391, 32
        %s393 = smul.addr %s392, 8
        %s394 = scalar_lea.vmem %s2, %s393
        %p395 = pneg %p94
        %p396 = pneg %p91
        %p397 = pneg %p115
        %p398 = pneg %p112
        %p399 = pneg %p136
        %p400 = pneg %p133
        %p401 = pneg %p157
        %p402 = pneg %p154
        %p403 = pneg %p178
        %p404 = pneg %p175
        %p405 = pneg %p199
        %p406 = pneg %p196
        %p407 = pneg %p220
        %p408 = pneg %p217
        %p409 = pneg %p241
        %p410 = pneg %p238
        %p411 = pneg %p262
        %p412 = pneg %p259
        %p413 = pneg %p283
        %p414 = pneg %p280
        %p415 = pneg %p309
        %p416 = pneg %p306
        %s417 = sand.u32 %s296, 1
        %s418 = scalar_lea.sflag [#allocation3], %s417
        %s419 = sand.u32 %s296, 1
        %s420 = smul.addr %s419, 64
        %s421 = scalar_lea.vmem [#allocation2], %s420
        %p422 = scmp.lt.s32.totalorder %s26, 7
        %s423 = scalar_select %p422, %s26, 7
        %s424 = smul.addr %s423, 32
        %s425 = smul.addr %s424, 4
        %s426 = scalar_lea.vmem %s1, %s425
        %p427 = scmp.lt.s32.totalorder %s26, 7
        %s428 = scalar_select %p427, %s26, 7
        %s429 = smul.addr %s428, 32
        %s430 = smul.addr %s429, 8
        %s431 = scalar_lea.vmem %s2, %s430
        %s432 = smul.u32 8, %s26
        %s434 = smul.u32 %s26, 64
        %s435 = sshra.s32 %s434, 3
        %s436 = sand.u32 %s434, 7
        %s437 = smul.addr %s435, 4
        %s438 = scalar_lea.vmem %s0, %s437
        %v439 = vld [vmem:[%s438] sm:$0xf]
        %v440 = vld [vmem:[%s438 + $0x4] sm:$0xf]
        %v441 = vld [vmem:[%s438 + $0x8] sm:$0xf]
        %v442 = vld [vmem:[%s438 + $0xc] sm:$0xf]
        %v443 = vld [vmem:[%s438 + $0x10] sm:$0xf]
        %v444 = vld [vmem:[%s438 + $0x14] sm:$0xf]
        %v445 = vld [vmem:[%s438 + $0x18] sm:$0xf]
        %v446 = vld [vmem:[%s438 + $0x1c] sm:$0xf]
        %v447 = vld [vmem:[%s0] sm:$0xf]
        %v448 = vld [vmem:[%s0 + $0x4] sm:$0xf]
        %v449 = vld [vmem:[%s0 + $0x8] sm:$0xf]
        %v450 = vld [vmem:[%s0 + $0xc] sm:$0xf]
        %v451 = vld [vmem:[%s0 + $0x10] sm:$0xf]
        %v452 = vld [vmem:[%s0 + $0x14] sm:$0xf]
        %v453 = vld [vmem:[%s0 + $0x18] sm:$0xf]
        %v454 = vld [vmem:[%s0 + $0x1c] sm:$0xf]
        %v455 = vld [vmem:[%s0 + $0x20] sm:$0xf]
        %v456 = vld [vmem:[%s0 + $0x24] sm:$0xf]
        %v457 = vld [vmem:[%s0 + $0x28] sm:$0xf]
        %v458 = vld [vmem:[%s0 + $0x2c] sm:$0xf]
        %v459 = vld [vmem:[%s0 + $0x30] sm:$0xf]
        %v460 = vld [vmem:[%s0 + $0x34] sm:$0xf]
        %v461 = vld [vmem:[%s0 + $0x38] sm:$0xf]
        %v462 = vld [vmem:[%s0 + $0x3c] sm:$0xf]
        %v463 = vld [vmem:[%s0 + $0x40] sm:$0xf]
        %v464 = vld [vmem:[%s0 + $0x44] sm:$0xf]
        %v465 = vld [vmem:[%s0 + $0x48] sm:$0xf]
        %v466 = vld [vmem:[%s0 + $0x4c] sm:$0xf]
        %v467 = vld [vmem:[%s0 + $0x50] sm:$0xf]
        %v468 = vld [vmem:[%s0 + $0x54] sm:$0xf]
        %v469 = vld [vmem:[%s0 + $0x58] sm:$0xf]
        %v470 = vld [vmem:[%s0 + $0x5c] sm:$0xf]
        %v471 = vld [vmem:[%s0 + $0x60] sm:$0xf]
        %v472 = vld [vmem:[%s0 + $0x64] sm:$0xf]
        %v473 = vld [vmem:[%s0 + $0x68] sm:$0xf]
        %v474 = vld [vmem:[%s0 + $0x6c] sm:$0xf]
        %v475 = vld [vmem:[%s0 + $0x70] sm:$0xf]
        %v476 = vld [vmem:[%s0 + $0x74] sm:$0xf]
        %v477 = vld [vmem:[%s0 + $0x78] sm:$0xf]
        %v478 = vld [vmem:[%s0 + $0x7c] sm:$0xf]
        %v479 = vld [vmem:[%s0 + $0x80] sm:$0xf]
        %v480 = vld [vmem:[%s0 + $0x84] sm:$0xf]
        %v481 = vld [vmem:[%s0 + $0x88] sm:$0xf]
        %v482 = vld [vmem:[%s0 + $0x8c] sm:$0xf]
        %v483 = vld [vmem:[%s0 + $0x90] sm:$0xf]
        %v484 = vld [vmem:[%s0 + $0x94] sm:$0xf]
        %v485 = vld [vmem:[%s0 + $0x98] sm:$0xf]
        %v486 = vld [vmem:[%s0 + $0x9c] sm:$0xf]
        %v487 = vld [vmem:[%s0 + $0xa0] sm:$0xf]
        %v488 = vld [vmem:[%s0 + $0xa4] sm:$0xf]
        %v489 = vld [vmem:[%s0 + $0xa8] sm:$0xf]
        %v490 = vld [vmem:[%s0 + $0xac] sm:$0xf]
        %v491 = vld [vmem:[%s0 + $0xb0] sm:$0xf]
        %v492 = vld [vmem:[%s0 + $0xb4] sm:$0xf]
        %v493 = vld [vmem:[%s0 + $0xb8] sm:$0xf]
        %v494 = vld [vmem:[%s0 + $0xbc] sm:$0xf]
        %v495 = vld [vmem:[%s0 + $0xc0] sm:$0xf]
        %v496 = vld [vmem:[%s0 + $0xc4] sm:$0xf]
        %v497 = vld [vmem:[%s0 + $0xc8] sm:$0xf]
        %v498 = vld [vmem:[%s0 + $0xcc] sm:$0xf]
        %v499 = vld [vmem:[%s0 + $0xd0] sm:$0xf]
        %v500 = vld [vmem:[%s0 + $0xd4] sm:$0xf]
        %v501 = vld [vmem:[%s0 + $0xd8] sm:$0xf]
        %v502 = vld [vmem:[%s0 + $0xdc] sm:$0xf]
        %v503 = vld [vmem:[%s0 + $0xe0] sm:$0xf]
        %v504 = vld [vmem:[%s0 + $0xe4] sm:$0xf]
        %v505 = vld [vmem:[%s0 + $0xe8] sm:$0xf]
        %v506 = vld [vmem:[%s0 + $0xec] sm:$0xf]
        %v507 = vld [vmem:[%s0 + $0xf0] sm:$0xf]
        %v508 = vld [vmem:[%s0 + $0xf4] sm:$0xf]
        %v509 = vld [vmem:[%s0 + $0xf8] sm:$0xf]
        %v510 = vld [vmem:[%s0 + $0xfc] sm:$0xf]
        %v511 = vld [vmem:[%s3] sm:$0xf]
        %v512 = vld [vmem:[%s4] sm:$0x1]
        %v514 = vlaneseq
        %v515 = vshrl.u32 %v514, 7
        %v516 = vsub.s32 0, %v515
        %v517 = vrot.slane %v512, %v516
        %v527 = vunpack.c.l.b16 %v439
        %v528 = vunpack.c.l.b16 %v440
        %v529 = vunpack.c.l.b16 %v441
        %v530 = vunpack.c.l.b16 %v442
        %v531 = vunpack.c.l.b16 %v443
        %v532 = vunpack.c.l.b16 %v444
        %v533 = vunpack.c.l.b16 %v445
        %v534 = vunpack.c.l.b16 %v446
        %v535 = vpack.c.b16 %v528, %v527
        %v536 = vpack.c.b16 %v530, %v529
        %v537 = vpack.c.b16 %v532, %v531
        %v538 = vpack.c.b16 %v534, %v533
        %vm539 = vcmask 64512
        %v541 = vsel %vm539, %v535, 0
        %v544 = vsel %vm539, %v536, 0
        %v547 = vsel %vm539, %v537, 0
        %v550 = vsel %vm539, %v538, 0
        %vm552 = vcmask 1043456
        %v554 = vsel %vm552, %v511, 0
        %556 = vmatprep.subr.bf16.mxu0 0
        %557 = vmatpush1.bf16.msra.mxu0 %v554
        %558 = vmatprep.subr.bf16.mxu0 0
        %559 = vmatpush1.bf16.msra.mxu0 0
        %560 = vmatprep.subr.bf16.mxu0 0
        %561 = vmatpush1.bf16.msra.mxu0 0
        %562 = vmatprep.subr.bf16.mxu0 0
        %563 = vmatpush1.bf16.msra.mxu0 0
        %564 = vmatprep.subr.bf16.mxu0 0
        %565 = vmatpush1.bf16.msra.mxu0 0
        %566 = vmatprep.subr.bf16.mxu0 0
        %567 = vmatpush1.bf16.msra.mxu0 0
        %568 = vmatprep.subr.bf16.mxu0 0
        %569 = vmatpush1.bf16.msra.mxu0 0
        %570 = vmatprep.subr.bf16.mxu0 0
        %571 = vmatpush1.bf16.msra.mxu0 0
        %572 = vmatprep.subr.bf16.mxu0 0
        %573 = vmatpush1.bf16.msra.mxu0 0
        %574 = vmatprep.subr.bf16.mxu0 0
        %575 = vmatpush1.bf16.msra.mxu0 0
        %576 = vmatprep.subr.bf16.mxu0 0
        %577 = vmatpush1.bf16.msra.mxu0 0
        %578 = vmatprep.subr.bf16.mxu0 0
        %579 = vmatpush1.bf16.msra.mxu0 0
        %580 = vmatprep.subr.bf16.mxu0 0
        %581 = vmatpush1.bf16.msra.mxu0 0
        %582 = vmatprep.subr.bf16.mxu0 0
        %583 = vmatpush1.bf16.msra.mxu0 0
        %584 = vmatprep.subr.bf16.mxu0 0
        %585 = vmatpush1.bf16.msra.mxu0 0
        %586 = vmatprep.subr.bf16.mxu0 0
        %587 = vmatpush1.bf16.msra.mxu0 0
        %588 = vmatprep.mubr.bf16.mxu0 0
        %589 = vmatmul.mubr.bf16.gmra.mrb[0].mxu0 %v541
        %v590 = vpop.f32.mrb[0].mxu0
        %v591 = vadd.f32 %v517, %v590
        %v592 = vpop.f32.mrb[0].mxu0
        %v593 = vpop.f32.mrb[0].mxu0
        %v594 = vadd.f32 %v517, %v593
        %v595 = vpop.f32.mrb[0].mxu0
        %596 = vmatprep.mubr.bf16.mxu0 0
        %597 = vmatmul.mubr.bf16.gmra.mrb[0].mxu0 %v544
        %v598 = vpop.f32.mrb[0].mxu0
        %v599 = vadd.f32 %v517, %v598
        %v600 = vpop.f32.mrb[0].mxu0
        %v601 = vpop.f32.mrb[0].mxu0
        %v602 = vadd.f32 %v517, %v601
        %v603 = vpop.f32.mrb[0].mxu0
        %604 = vmatprep.mubr.bf16.mxu0 0
        %605 = vmatmul.mubr.bf16.gmra.mrb[0].mxu0 %v547
        %v606 = vpop.f32.mrb[0].mxu0
        %v607 = vadd.f32 %v517, %v606
        %v608 = vpop.f32.mrb[0].mxu0
        %v609 = vpop.f32.mrb[0].mxu0
        %v610 = vadd.f32 %v517, %v609
        %v611 = vpop.f32.mrb[0].mxu0
        %612 = vmatprep.mubr.bf16.mxu0 0
        %613 = vmatmul.mubr.bf16.gmra.mrb[0].mxu0 %v550
        %v614 = vpop.f32.mrb[0].mxu0
        %v615 = vadd.f32 %v517, %v614
        %v616 = vpop.f32.mrb[0].mxu0
        %v617 = vpop.f32.mrb[0].mxu0
        %v618 = vadd.f32 %v517, %v617
        %v619 = vpop.f32.mrb[0].mxu0
        %620 = vdwg.mxu0
        %v621 = vld [vmem:[%s431] sm:$0xff]
        %v622 = vld [vmem:[%s431 + $0x8] sm:$0xff]
        %v623 = vld [vmem:[%s431 + $0x10] sm:$0xff]
        %v624 = vld [vmem:[%s431 + $0x18] sm:$0xff]
        %v625 = vld [vmem:[%s431 + $0x20] sm:$0xff]
        %v626 = vld [vmem:[%s431 + $0x28] sm:$0xff]
        %v627 = vld [vmem:[%s431 + $0x30] sm:$0xff]
        %v628 = vld [vmem:[%s431 + $0x38] sm:$0xff]
        %v629 = vld [vmem:[%s431 + $0x40] sm:$0xff]
        %v630 = vld [vmem:[%s431 + $0x48] sm:$0xff]
        %v631 = vld [vmem:[%s431 + $0x50] sm:$0xff]
        %v632 = vld [vmem:[%s431 + $0x58] sm:$0xff]
        %v633 = vld [vmem:[%s431 + $0x60] sm:$0xff]
        %v634 = vld [vmem:[%s431 + $0x68] sm:$0xff]
        %v635 = vld [vmem:[%s431 + $0x70] sm:$0xff]
        %v636 = vld [vmem:[%s431 + $0x78] sm:$0xff]
        %v637 = vld [vmem:[%s431 + $0x80] sm:$0xff]
        %v638 = vld [vmem:[%s431 + $0x88] sm:$0xff]
        %v639 = vld [vmem:[%s431 + $0x90] sm:$0xff]
        %v640 = vld [vmem:[%s431 + $0x98] sm:$0xff]
        %v641 = vld [vmem:[%s431 + $0xa0] sm:$0xff]
        %v642 = vld [vmem:[%s431 + $0xa8] sm:$0xff]
        %v643 = vld [vmem:[%s431 + $0xb0] sm:$0xff]
        %v644 = vld [vmem:[%s431 + $0xb8] sm:$0xff]
        %v645 = vld [vmem:[%s431 + $0xc0] sm:$0xff]
        %v646 = vld [vmem:[%s431 + $0xc8] sm:$0xff]
        %v647 = vld [vmem:[%s431 + $0xd0] sm:$0xff]
        %v648 = vld [vmem:[%s431 + $0xd8] sm:$0xff]
        %v649 = vld [vmem:[%s431 + $0xe0] sm:$0xff]
        %v650 = vld [vmem:[%s431 + $0xe8] sm:$0xff]
        %v651 = vld [vmem:[%s431 + $0xf0] sm:$0xff]
        %v652 = vld [vmem:[%s431 + $0xf8] sm:$0xff]
        %v653 = vlaneseq
        %v654 = vand.u32 %v653, 127
        %v655 = vadd.s32 %v654, 128
        %v656 = vadd.s32 %v654, 256
        %v657 = vadd.s32 %v654, 384
        %658 = vset.pattern.permute.xlu0 0
        %659 = vperm.xlu0 %658, %v621
        %v660 = vpop.permute.xlu0 %659
        %661 = vset.pattern.permute.xlu0 0
        %662 = vperm.xlu0 %661, %v622
        %v663 = vpop.permute.xlu0 %662
        %664 = vset.pattern.permute.xlu0 0
        %665 = vperm.xlu0 %664, %v623
        %v666 = vpop.permute.xlu0 %665
        %667 = vset.pattern.permute.xlu0 0
        %668 = vperm.xlu0 %667, %v624
        %v669 = vpop.permute.xlu0 %668
        %670 = vset.pattern.permute.xlu0 0
        %671 = vperm.xlu0 %670, %v625
        %v672 = vpop.permute.xlu0 %671
        %673 = vset.pattern.permute.xlu0 0
        %674 = vperm.xlu0 %673, %v626
        %v675 = vpop.permute.xlu0 %674
        %676 = vset.pattern.permute.xlu0 0
        %677 = vperm.xlu0 %676, %v627
        %v678 = vpop.permute.xlu0 %677
        %679 = vset.pattern.permute.xlu0 0
        %680 = vperm.xlu0 %679, %v628
        %v681 = vpop.permute.xlu0 %680
        %682 = vset.pattern.permute.xlu0 0
        %683 = vperm.xlu0 %682, %v629
        %v684 = vpop.permute.xlu0 %683
        %685 = vset.pattern.permute.xlu0 0
        %686 = vperm.xlu0 %685, %v630
        %v687 = vpop.permute.xlu0 %686
        %688 = vset.pattern.permute.xlu0 0
        %689 = vperm.xlu0 %688, %v631
        %v690 = vpop.permute.xlu0 %689
        %691 = vset.pattern.permute.xlu0 0
        %692 = vperm.xlu0 %691, %v632
        %v693 = vpop.permute.xlu0 %692
        %694 = vset.pattern.permute.xlu0 0
        %695 = vperm.xlu0 %694, %v633
        %v696 = vpop.permute.xlu0 %695
        %697 = vset.pattern.permute.xlu0 0
        %698 = vperm.xlu0 %697, %v634
        %v699 = vpop.permute.xlu0 %698
        %700 = vset.pattern.permute.xlu0 0
        %701 = vperm.xlu0 %700, %v635
        %v702 = vpop.permute.xlu0 %701
        %703 = vset.pattern.permute.xlu0 0
        %704 = vperm.xlu0 %703, %v636
        %v705 = vpop.permute.xlu0 %704
        %706 = vset.pattern.permute.xlu0 0
        %707 = vperm.xlu0 %706, %v637
        %v708 = vpop.permute.xlu0 %707
        %709 = vset.pattern.permute.xlu0 0
        %710 = vperm.xlu0 %709, %v638
        %v711 = vpop.permute.xlu0 %710
        %712 = vset.pattern.permute.xlu0 0
        %713 = vperm.xlu0 %712, %v639
        %v714 = vpop.permute.xlu0 %713
        %715 = vset.pattern.permute.xlu0 0
        %716 = vperm.xlu0 %715, %v640
        %v717 = vpop.permute.xlu0 %716
        %718 = vset.pattern.permute.xlu0 0
        %719 = vperm.xlu0 %718, %v641
        %v720 = vpop.permute.xlu0 %719
        %721 = vset.pattern.permute.xlu0 0
        %722 = vperm.xlu0 %721, %v642
        %v723 = vpop.permute.xlu0 %722
        %724 = vset.pattern.permute.xlu0 0
        %725 = vperm.xlu0 %724, %v643
        %v726 = vpop.permute.xlu0 %725
        %727 = vset.pattern.permute.xlu0 0
        %728 = vperm.xlu0 %727, %v644
        %v729 = vpop.permute.xlu0 %728
        %730 = vset.pattern.permute.xlu0 0
        %731 = vperm.xlu0 %730, %v645
        %v732 = vpop.permute.xlu0 %731
        %733 = vset.pattern.permute.xlu0 0
        %734 = vperm.xlu0 %733, %v646
        %v735 = vpop.permute.xlu0 %734
        %736 = vset.pattern.permute.xlu0 0
        %737 = vperm.xlu0 %736, %v647
        %v738 = vpop.permute.xlu0 %737
        %739 = vset.pattern.permute.xlu0 0
        %740 = vperm.xlu0 %739, %v648
        %v741 = vpop.permute.xlu0 %740
        %742 = vset.pattern.permute.xlu0 0
        %743 = vperm.xlu0 %742, %v649
        %v744 = vpop.permute.xlu0 %743
        %745 = vset.pattern.permute.xlu0 0
        %746 = vperm.xlu0 %745, %v650
        %v747 = vpop.permute.xlu0 %746
        %748 = vset.pattern.permute.xlu0 0
        %749 = vperm.xlu0 %748, %v651
        %v750 = vpop.permute.xlu0 %749
        %751 = vset.pattern.permute.xlu0 0
        %752 = vperm.xlu0 %751, %v652
        %v753 = vpop.permute.xlu0 %752
        %vm754 = vcmp.eq.s32.totalorder %v660, %v654
        %vm755 = vcmp.eq.s32.totalorder %v660, %v655
        %vm756 = vcmp.eq.s32.totalorder %v660, %v656
        %vm757 = vcmp.eq.s32.totalorder %v660, %v657
        %vm758 = vcmp.eq.s32.totalorder %v663, %v654
        %vm759 = vcmp.eq.s32.totalorder %v663, %v655
        %vm760 = vcmp.eq.s32.totalorder %v663, %v656
        %vm761 = vcmp.eq.s32.totalorder %v663, %v657
        %vm762 = vcmp.eq.s32.totalorder %v666, %v654
        %vm763 = vcmp.eq.s32.totalorder %v666, %v655
        %vm764 = vcmp.eq.s32.totalorder %v666, %v656
        %vm765 = vcmp.eq.s32.totalorder %v666, %v657
        %vm766 = vcmp.eq.s32.totalorder %v669, %v654
        %vm767 = vcmp.eq.s32.totalorder %v669, %v655
        %vm768 = vcmp.eq.s32.totalorder %v669, %v656
        %vm769 = vcmp.eq.s32.totalorder %v669, %v657
        %vm770 = vcmp.eq.s32.totalorder %v672, %v654
        %vm771 = vcmp.eq.s32.totalorder %v672, %v655
        %vm772 = vcmp.eq.s32.totalorder %v672, %v656
        %vm773 = vcmp.eq.s32.totalorder %v672, %v657
        %vm774 = vcmp.eq.s32.totalorder %v675, %v654
        %vm775 = vcmp.eq.s32.totalorder %v675, %v655
        %vm776 = vcmp.eq.s32.totalorder %v675, %v656
        %vm777 = vcmp.eq.s32.totalorder %v675, %v657
        %vm778 = vcmp.eq.s32.totalorder %v678, %v654
        %vm779 = vcmp.eq.s32.totalorder %v678, %v655
        %vm780 = vcmp.eq.s32.totalorder %v678, %v656
        %vm781 = vcmp.eq.s32.totalorder %v678, %v657
        %vm782 = vcmp.eq.s32.totalorder %v681, %v654
        %vm783 = vcmp.eq.s32.totalorder %v681, %v655
        %vm784 = vcmp.eq.s32.totalorder %v681, %v656
        %vm785 = vcmp.eq.s32.totalorder %v681, %v657
        %vm786 = vcmp.eq.s32.totalorder %v684, %v654
        %vm787 = vcmp.eq.s32.totalorder %v684, %v655
        %vm788 = vcmp.eq.s32.totalorder %v684, %v656
        %vm789 = vcmp.eq.s32.totalorder %v684, %v657
        %vm790 = vcmp.eq.s32.totalorder %v687, %v654
        %vm791 = vcmp.eq.s32.totalorder %v687, %v655
        %vm792 = vcmp.eq.s32.totalorder %v687, %v656
        %vm793 = vcmp.eq.s32.totalorder %v687, %v657
        %vm794 = vcmp.eq.s32.totalorder %v690, %v654
        %vm795 = vcmp.eq.s32.totalorder %v690, %v655
        %vm796 = vcmp.eq.s32.totalorder %v690, %v656
        %vm797 = vcmp.eq.s32.totalorder %v690, %v657
        %vm798 = vcmp.eq.s32.totalorder %v693, %v654
        %vm799 = vcmp.eq.s32.totalorder %v693, %v655
        %vm800 = vcmp.eq.s32.totalorder %v693, %v656
        %vm801 = vcmp.eq.s32.totalorder %v693, %v657
        %vm802 = vcmp.eq.s32.totalorder %v696, %v654
        %vm803 = vcmp.eq.s32.totalorder %v696, %v655
        %vm804 = vcmp.eq.s32.totalorder %v696, %v656
        %vm805 = vcmp.eq.s32.totalorder %v696, %v657
        %vm806 = vcmp.eq.s32.totalorder %v699, %v654
        %vm807 = vcmp.eq.s32.totalorder %v699, %v655
        %vm808 = vcmp.eq.s32.totalorder %v699, %v656
        %vm809 = vcmp.eq.s32.totalorder %v699, %v657
        %vm810 = vcmp.eq.s32.totalorder %v702, %v654
        %vm811 = vcmp.eq.s32.totalorder %v702, %v655
        %vm812 = vcmp.eq.s32.totalorder %v702, %v656
        %vm813 = vcmp.eq.s32.totalorder %v702, %v657
        %vm814 = vcmp.eq.s32.totalorder %v705, %v654
        %vm815 = vcmp.eq.s32.totalorder %v705, %v655
        %vm816 = vcmp.eq.s32.totalorder %v705, %v656
        %vm817 = vcmp.eq.s32.totalorder %v705, %v657
        %vm818 = vcmp.eq.s32.totalorder %v708, %v654
        %vm819 = vcmp.eq.s32.totalorder %v708, %v655
        %vm820 = vcmp.eq.s32.totalorder %v708, %v656
        %vm821 = vcmp.eq.s32.totalorder %v708, %v657
        %vm822 = vcmp.eq.s32.totalorder %v711, %v654
        %vm823 = vcmp.eq.s32.totalorder %v711, %v655
        %vm824 = vcmp.eq.s32.totalorder %v711, %v656
        %vm825 = vcmp.eq.s32.totalorder %v711, %v657
        %vm826 = vcmp.eq.s32.totalorder %v714, %v654
        %vm827 = vcmp.eq.s32.totalorder %v714, %v655
        %vm828 = vcmp.eq.s32.totalorder %v714, %v656
        %vm829 = vcmp.eq.s32.totalorder %v714, %v657
        %vm830 = vcmp.eq.s32.totalorder %v717, %v654
        %vm831 = vcmp.eq.s32.totalorder %v717, %v655
        %vm832 = vcmp.eq.s32.totalorder %v717, %v656
        %vm833 = vcmp.eq.s32.totalorder %v717, %v657
        %vm834 = vcmp.eq.s32.totalorder %v720, %v654
        %vm835 = vcmp.eq.s32.totalorder %v720, %v655
        %vm836 = vcmp.eq.s32.totalorder %v720, %v656
        %vm837 = vcmp.eq.s32.totalorder %v720, %v657
        %vm838 = vcmp.eq.s32.totalorder %v723, %v654
        %vm839 = vcmp.eq.s32.totalorder %v723, %v655
        %vm840 = vcmp.eq.s32.totalorder %v723, %v656
        %vm841 = vcmp.eq.s32.totalorder %v723, %v657
        %vm842 = vcmp.eq.s32.totalorder %v726, %v654
        %vm843 = vcmp.eq.s32.totalorder %v726, %v655
        %vm844 = vcmp.eq.s32.totalorder %v726, %v656
        %vm845 = vcmp.eq.s32.totalorder %v726, %v657
        %vm846 = vcmp.eq.s32.totalorder %v729, %v654
        %vm847 = vcmp.eq.s32.totalorder %v729, %v655
        %vm848 = vcmp.eq.s32.totalorder %v729, %v656
        %vm849 = vcmp.eq.s32.totalorder %v729, %v657
        %vm850 = vcmp.eq.s32.totalorder %v732, %v654
        %vm851 = vcmp.eq.s32.totalorder %v732, %v655
        %vm852 = vcmp.eq.s32.totalorder %v732, %v656
        %vm853 = vcmp.eq.s32.totalorder %v732, %v657
        %vm854 = vcmp.eq.s32.totalorder %v735, %v654
        %vm855 = vcmp.eq.s32.totalorder %v735, %v655
        %vm856 = vcmp.eq.s32.totalorder %v735, %v656
        %vm857 = vcmp.eq.s32.totalorder %v735, %v657
        %vm858 = vcmp.eq.s32.totalorder %v738, %v654
        %vm859 = vcmp.eq.s32.totalorder %v738, %v655
        %vm860 = vcmp.eq.s32.totalorder %v738, %v656
        %vm861 = vcmp.eq.s32.totalorder %v738, %v657
        %vm862 = vcmp.eq.s32.totalorder %v741, %v654
        %vm863 = vcmp.eq.s32.totalorder %v741, %v655
        %vm864 = vcmp.eq.s32.totalorder %v741, %v656
        %vm865 = vcmp.eq.s32.totalorder %v741, %v657
        %vm866 = vcmp.eq.s32.totalorder %v744, %v654
        %vm867 = vcmp.eq.s32.totalorder %v744, %v655
        %vm868 = vcmp.eq.s32.totalorder %v744, %v656
        %vm869 = vcmp.eq.s32.totalorder %v744, %v657
        %vm870 = vcmp.eq.s32.totalorder %v747, %v654
        %vm871 = vcmp.eq.s32.totalorder %v747, %v655
        %vm872 = vcmp.eq.s32.totalorder %v747, %v656
        %vm873 = vcmp.eq.s32.totalorder %v747, %v657
        %vm874 = vcmp.eq.s32.totalorder %v750, %v654
        %vm875 = vcmp.eq.s32.totalorder %v750, %v655
        %vm876 = vcmp.eq.s32.totalorder %v750, %v656
        %vm877 = vcmp.eq.s32.totalorder %v750, %v657
        %vm878 = vcmp.eq.s32.totalorder %v753, %v654
        %vm879 = vcmp.eq.s32.totalorder %v753, %v655
        %vm880 = vcmp.eq.s32.totalorder %v753, %v656
        %vm881 = vcmp.eq.s32.totalorder %v753, %v657
        %v882 = vsel %vm754, 1.0, 0.0
        %v883 = vsel %vm755, 1.0, 0.0
        %v884 = vsel %vm756, 1.0, 0.0
        %v885 = vsel %vm757, 1.0, 0.0
        %v886 = vsel %vm758, 1.0, 0.0
        %v887 = vsel %vm759, 1.0, 0.0
        %v888 = vsel %vm760, 1.0, 0.0
        %v889 = vsel %vm761, 1.0, 0.0
        %v890 = vsel %vm762, 1.0, 0.0
        %v891 = vsel %vm763, 1.0, 0.0
        %v892 = vsel %vm764, 1.0, 0.0
        %v893 = vsel %vm765, 1.0, 0.0
        %v894 = vsel %vm766, 1.0, 0.0
        %v895 = vsel %vm767, 1.0, 0.0
        %v896 = vsel %vm768, 1.0, 0.0
        %v897 = vsel %vm769, 1.0, 0.0
        %v898 = vsel %vm770, 1.0, 0.0
        %v899 = vsel %vm771, 1.0, 0.0
        %v900 = vsel %vm772, 1.0, 0.0
        %v901 = vsel %vm773, 1.0, 0.0
        %v902 = vsel %vm774, 1.0, 0.0
        %v903 = vsel %vm775, 1.0, 0.0
        %v904 = vsel %vm776, 1.0, 0.0
        %v905 = vsel %vm777, 1.0, 0.0
        %v906 = vsel %vm778, 1.0, 0.0
        %v907 = vsel %vm779, 1.0, 0.0
        %v908 = vsel %vm780, 1.0, 0.0
        %v909 = vsel %vm781, 1.0, 0.0
        %v910 = vsel %vm782, 1.0, 0.0
        %v911 = vsel %vm783, 1.0, 0.0
        %v912 = vsel %vm784, 1.0, 0.0
        %v913 = vsel %vm785, 1.0, 0.0
        %v914 = vsel %vm786, 1.0, 0.0
        %v915 = vsel %vm787, 1.0, 0.0
        %v916 = vsel %vm788, 1.0, 0.0
        %v917 = vsel %vm789, 1.0, 0.0
        %v918 = vsel %vm790, 1.0, 0.0
        %v919 = vsel %vm791, 1.0, 0.0
        %v920 = vsel %vm792, 1.0, 0.0
        %v921 = vsel %vm793, 1.0, 0.0
        %v922 = vsel %vm794, 1.0, 0.0
        %v923 = vsel %vm795, 1.0, 0.0
        %v924 = vsel %vm796, 1.0, 0.0
        %v925 = vsel %vm797, 1.0, 0.0
        %v926 = vsel %vm798, 1.0, 0.0
        %v927 = vsel %vm799, 1.0, 0.0
        %v928 = vsel %vm800, 1.0, 0.0
        %v929 = vsel %vm801, 1.0, 0.0
        %v930 = vsel %vm802, 1.0, 0.0
        %v931 = vsel %vm803, 1.0, 0.0
        %v932 = vsel %vm804, 1.0, 0.0
        %v933 = vsel %vm805, 1.0, 0.0
        %v934 = vsel %vm806, 1.0, 0.0
        %v935 = vsel %vm807, 1.0, 0.0
        %v936 = vsel %vm808, 1.0, 0.0
        %v937 = vsel %vm809, 1.0, 0.0
        %v938 = vsel %vm810, 1.0, 0.0
        %v939 = vsel %vm811, 1.0, 0.0
        %v940 = vsel %vm812, 1.0, 0.0
        %v941 = vsel %vm813, 1.0, 0.0
        %v942 = vsel %vm814, 1.0, 0.0
        %v943 = vsel %vm815, 1.0, 0.0
        %v944 = vsel %vm816, 1.0, 0.0
        %v945 = vsel %vm817, 1.0, 0.0
        %v946 = vsel %vm818, 1.0, 0.0
        %v947 = vsel %vm819, 1.0, 0.0
        %v948 = vsel %vm820, 1.0, 0.0
        %v949 = vsel %vm821, 1.0, 0.0
        %v950 = vsel %vm822, 1.0, 0.0
        %v951 = vsel %vm823, 1.0, 0.0
        %v952 = vsel %vm824, 1.0, 0.0
        %v953 = vsel %vm825, 1.0, 0.0
        %v954 = vsel %vm826, 1.0, 0.0
        %v955 = vsel %vm827, 1.0, 0.0
        %v956 = vsel %vm828, 1.0, 0.0
        %v957 = vsel %vm829, 1.0, 0.0
        %v958 = vsel %vm830, 1.0, 0.0
        %v959 = vsel %vm831, 1.0, 0.0
        %v960 = vsel %vm832, 1.0, 0.0
        %v961 = vsel %vm833, 1.0, 0.0
        %v962 = vsel %vm834, 1.0, 0.0
        %v963 = vsel %vm835, 1.0, 0.0
        %v964 = vsel %vm836, 1.0, 0.0
        %v965 = vsel %vm837, 1.0, 0.0
        %v966 = vsel %vm838, 1.0, 0.0
        %v967 = vsel %vm839, 1.0, 0.0
        %v968 = vsel %vm840, 1.0, 0.0
        %v969 = vsel %vm841, 1.0, 0.0
        %v970 = vsel %vm842, 1.0, 0.0
        %v971 = vsel %vm843, 1.0, 0.0
        %v972 = vsel %vm844, 1.0, 0.0
        %v973 = vsel %vm845, 1.0, 0.0
        %v974 = vsel %vm846, 1.0, 0.0
        %v975 = vsel %vm847, 1.0, 0.0
        %v976 = vsel %vm848, 1.0, 0.0
        %v977 = vsel %vm849, 1.0, 0.0
        %v978 = vsel %vm850, 1.0, 0.0
        %v979 = vsel %vm851, 1.0, 0.0
        %v980 = vsel %vm852, 1.0, 0.0
        %v981 = vsel %vm853, 1.0, 0.0
        %v982 = vsel %vm854, 1.0, 0.0
        %v983 = vsel %vm855, 1.0, 0.0
        %v984 = vsel %vm856, 1.0, 0.0
        %v985 = vsel %vm857, 1.0, 0.0
        %v986 = vsel %vm858, 1.0, 0.0
        %v987 = vsel %vm859, 1.0, 0.0
        %v988 = vsel %vm860, 1.0, 0.0
        %v989 = vsel %vm861, 1.0, 0.0
        %v990 = vsel %vm862, 1.0, 0.0
        %v991 = vsel %vm863, 1.0, 0.0
        %v992 = vsel %vm864, 1.0, 0.0
        %v993 = vsel %vm865, 1.0, 0.0
        %v994 = vsel %vm866, 1.0, 0.0
        %v995 = vsel %vm867, 1.0, 0.0
        %v996 = vsel %vm868, 1.0, 0.0
        %v997 = vsel %vm869, 1.0, 0.0
        %v998 = vsel %vm870, 1.0, 0.0
        %v999 = vsel %vm871, 1.0, 0.0
        %v1000 = vsel %vm872, 1.0, 0.0
        %v1001 = vsel %vm873, 1.0, 0.0
        %v1002 = vsel %vm874, 1.0, 0.0
        %v1003 = vsel %vm875, 1.0, 0.0
        %v1004 = vsel %vm876, 1.0, 0.0
        %v1005 = vsel %vm877, 1.0, 0.0
        %v1006 = vsel %vm878, 1.0, 0.0
        %v1007 = vsel %vm879, 1.0, 0.0
        %v1008 = vsel %vm880, 1.0, 0.0
        %v1009 = vsel %vm881, 1.0, 0.0
        %v1010 = vpack.c.bf16 %v886, %v882
        %v1011 = vpack.c.bf16 %v887, %v883
        %v1012 = vpack.c.bf16 %v888, %v884
        %v1013 = vpack.c.bf16 %v889, %v885
        %v1014 = vpack.c.bf16 %v894, %v890
        %v1015 = vpack.c.bf16 %v895, %v891
        %v1016 = vpack.c.bf16 %v896, %v892
        %v1017 = vpack.c.bf16 %v897, %v893
        %v1018 = vpack.c.bf16 %v902, %v898
        %v1019 = vpack.c.bf16 %v903, %v899
        %v1020 = vpack.c.bf16 %v904, %v900
        %v1021 = vpack.c.bf16 %v905, %v901
        %v1022 = vpack.c.bf16 %v910, %v906
        %v1023 = vpack.c.bf16 %v911, %v907
        %v1024 = vpack.c.bf16 %v912, %v908
        %v1025 = vpack.c.bf16 %v913, %v909
        %v1026 = vpack.c.bf16 %v918, %v914
        %v1027 = vpack.c.bf16 %v919, %v915
        %v1028 = vpack.c.bf16 %v920, %v916
        %v1029 = vpack.c.bf16 %v921, %v917
        %v1030 = vpack.c.bf16 %v926, %v922
        %v1031 = vpack.c.bf16 %v927, %v923
        %v1032 = vpack.c.bf16 %v928, %v924
        %v1033 = vpack.c.bf16 %v929, %v925
        %v1034 = vpack.c.bf16 %v934, %v930
        %v1035 = vpack.c.bf16 %v935, %v931
        %v1036 = vpack.c.bf16 %v936, %v932
        %v1037 = vpack.c.bf16 %v937, %v933
        %v1038 = vpack.c.bf16 %v942, %v938
        %v1039 = vpack.c.bf16 %v943, %v939
        %v1040 = vpack.c.bf16 %v944, %v940
        %v1041 = vpack.c.bf16 %v945, %v941
        %v1042 = vpack.c.bf16 %v950, %v946
        %v1043 = vpack.c.bf16 %v951, %v947
        %v1044 = vpack.c.bf16 %v952, %v948
        %v1045 = vpack.c.bf16 %v953, %v949
        %v1046 = vpack.c.bf16 %v958, %v954
        %v1047 = vpack.c.bf16 %v959, %v955
        %v1048 = vpack.c.bf16 %v960, %v956
        %v1049 = vpack.c.bf16 %v961, %v957
        %v1050 = vpack.c.bf16 %v966, %v962
        %v1051 = vpack.c.bf16 %v967, %v963
        %v1052 = vpack.c.bf16 %v968, %v964
        %v1053 = vpack.c.bf16 %v969, %v965
        %v1054 = vpack.c.bf16 %v974, %v970
        %v1055 = vpack.c.bf16 %v975, %v971
        %v1056 = vpack.c.bf16 %v976, %v972
        %v1057 = vpack.c.bf16 %v977, %v973
        %v1058 = vpack.c.bf16 %v982, %v978
        %v1059 = vpack.c.bf16 %v983, %v979
        %v1060 = vpack.c.bf16 %v984, %v980
        %v1061 = vpack.c.bf16 %v985, %v981
        %v1062 = vpack.c.bf16 %v990, %v986
        %v1063 = vpack.c.bf16 %v991, %v987
        %v1064 = vpack.c.bf16 %v992, %v988
        %v1065 = vpack.c.bf16 %v993, %v989
        %v1066 = vpack.c.bf16 %v998, %v994
        %v1067 = vpack.c.bf16 %v999, %v995
        %v1068 = vpack.c.bf16 %v1000, %v996
        %v1069 = vpack.c.bf16 %v1001, %v997
        %v1070 = vpack.c.bf16 %v1006, %v1002
        %v1071 = vpack.c.bf16 %v1007, %v1003
        %v1072 = vpack.c.bf16 %v1008, %v1004
        %v1073 = vpack.c.bf16 %v1009, %v1005
        %v1138 = vunpack.c.l.b16 %v447
        %v1139 = vunpack.c.l.b16 %v448
        %v1140 = vunpack.c.l.b16 %v449
        %v1141 = vunpack.c.l.b16 %v450
        %v1142 = vunpack.c.l.b16 %v451
        %v1143 = vunpack.c.l.b16 %v452
        %v1144 = vunpack.c.l.b16 %v453
        %v1145 = vunpack.c.l.b16 %v454
        %v1146 = vunpack.c.l.b16 %v455
        %v1147 = vunpack.c.l.b16 %v456
        %v1148 = vunpack.c.l.b16 %v457
        %v1149 = vunpack.c.l.b16 %v458
        %v1150 = vunpack.c.l.b16 %v459
        %v1151 = vunpack.c.l.b16 %v460
        %v1152 = vunpack.c.l.b16 %v461
        %v1153 = vunpack.c.l.b16 %v462
        %v1154 = vunpack.c.l.b16 %v463
        %v1155 = vunpack.c.l.b16 %v464
        %v1156 = vunpack.c.l.b16 %v465
        %v1157 = vunpack.c.l.b16 %v466
        %v1158 = vunpack.c.l.b16 %v467
        %v1159 = vunpack.c.l.b16 %v468
        %v1160 = vunpack.c.l.b16 %v469
        %v1161 = vunpack.c.l.b16 %v470
        %v1162 = vunpack.c.l.b16 %v471
        %v1163 = vunpack.c.l.b16 %v472
        %v1164 = vunpack.c.l.b16 %v473
        %v1165 = vunpack.c.l.b16 %v474
        %v1166 = vunpack.c.l.b16 %v475
        %v1167 = vunpack.c.l.b16 %v476
        %v1168 = vunpack.c.l.b16 %v477
        %v1169 = vunpack.c.l.b16 %v478
        %v1170 = vunpack.c.l.b16 %v479
        %v1171 = vunpack.c.l.b16 %v480
        %v1172 = vunpack.c.l.b16 %v481
        %v1173 = vunpack.c.l.b16 %v482
        %v1174 = vunpack.c.l.b16 %v483
        %v1175 = vunpack.c.l.b16 %v484
        %v1176 = vunpack.c.l.b16 %v485
        %v1177 = vunpack.c.l.b16 %v486
        %v1178 = vunpack.c.l.b16 %v487
        %v1179 = vunpack.c.l.b16 %v488
        %v1180 = vunpack.c.l.b16 %v489
        %v1181 = vunpack.c.l.b16 %v490
        %v1182 = vunpack.c.l.b16 %v491
        %v1183 = vunpack.c.l.b16 %v492
        %v1184 = vunpack.c.l.b16 %v493
        %v1185 = vunpack.c.l.b16 %v494
        %v1186 = vunpack.c.l.b16 %v495
        %v1187 = vunpack.c.l.b16 %v496
        %v1188 = vunpack.c.l.b16 %v497
        %v1189 = vunpack.c.l.b16 %v498
        %v1190 = vunpack.c.l.b16 %v499
        %v1191 = vunpack.c.l.b16 %v500
        %v1192 = vunpack.c.l.b16 %v501
        %v1193 = vunpack.c.l.b16 %v502
        %v1194 = vunpack.c.l.b16 %v503
        %v1195 = vunpack.c.l.b16 %v504
        %v1196 = vunpack.c.l.b16 %v505
        %v1197 = vunpack.c.l.b16 %v506
        %v1198 = vunpack.c.l.b16 %v507
        %v1199 = vunpack.c.l.b16 %v508
        %v1200 = vunpack.c.l.b16 %v509
        %v1201 = vunpack.c.l.b16 %v510
        %v1202 = vpack.c.b16 %v1139, %v1138
        %v1203 = vpack.c.b16 %v1141, %v1140
        %v1204 = vpack.c.b16 %v1143, %v1142
        %v1205 = vpack.c.b16 %v1145, %v1144
        %v1206 = vpack.c.b16 %v1147, %v1146
        %v1207 = vpack.c.b16 %v1149, %v1148
        %v1208 = vpack.c.b16 %v1151, %v1150
        %v1209 = vpack.c.b16 %v1153, %v1152
        %v1210 = vpack.c.b16 %v1155, %v1154
        %v1211 = vpack.c.b16 %v1157, %v1156
        %v1212 = vpack.c.b16 %v1159, %v1158
        %v1213 = vpack.c.b16 %v1161, %v1160
        %v1214 = vpack.c.b16 %v1163, %v1162
        %v1215 = vpack.c.b16 %v1165, %v1164
        %v1216 = vpack.c.b16 %v1167, %v1166
        %v1217 = vpack.c.b16 %v1169, %v1168
        %v1218 = vpack.c.b16 %v1171, %v1170
        %v1219 = vpack.c.b16 %v1173, %v1172
        %v1220 = vpack.c.b16 %v1175, %v1174
        %v1221 = vpack.c.b16 %v1177, %v1176
        %v1222 = vpack.c.b16 %v1179, %v1178
        %v1223 = vpack.c.b16 %v1181, %v1180
        %v1224 = vpack.c.b16 %v1183, %v1182
        %v1225 = vpack.c.b16 %v1185, %v1184
        %v1226 = vpack.c.b16 %v1187, %v1186
        %v1227 = vpack.c.b16 %v1189, %v1188
        %v1228 = vpack.c.b16 %v1191, %v1190
        %v1229 = vpack.c.b16 %v1193, %v1192
        %v1230 = vpack.c.b16 %v1195, %v1194
        %v1231 = vpack.c.b16 %v1197, %v1196
        %v1232 = vpack.c.b16 %v1199, %v1198
        %v1233 = vpack.c.b16 %v1201, %v1200
        %1266 = vmatprep.subr.bf16.mxu0 0
        %1267 = vmatpush1.bf16.msra.mxu0 %v1202
        %1268 = vmatprep.subr.bf16.mxu0 0
        %1269 = vmatpush1.bf16.msra.mxu0 %v1203
        %1270 = vmatprep.subr.bf16.mxu0 0
        %1271 = vmatpush1.bf16.msra.mxu0 %v1204
        %1272 = vmatprep.subr.bf16.mxu0 0
        %1273 = vmatpush1.bf16.msra.mxu0 %v1205
        %1274 = vmatprep.subr.bf16.mxu0 0
        %1275 = vmatpush1.bf16.msra.mxu0 %v1206
        %1276 = vmatprep.subr.bf16.mxu0 0
        %1277 = vmatpush1.bf16.msra.mxu0 %v1207
        %1278 = vmatprep.subr.bf16.mxu0 0
        %1279 = vmatpush1.bf16.msra.mxu0 %v1208
        %1280 = vmatprep.subr.bf16.mxu0 0
        %1281 = vmatpush1.bf16.msra.mxu0 %v1209
        %1282 = vmatprep.subr.bf16.mxu0 0
        %1283 = vmatpush1.bf16.msra.mxu0 %v1210
        %1284 = vmatprep.subr.bf16.mxu0 0
        %1285 = vmatpush1.bf16.msra.mxu0 %v1211
        %1286 = vmatprep.subr.bf16.mxu0 0
        %1287 = vmatpush1.bf16.msra.mxu0 %v1212
        %1288 = vmatprep.subr.bf16.mxu0 0
        %1289 = vmatpush1.bf16.msra.mxu0 %v1213
        %1290 = vmatprep.subr.bf16.mxu0 0
        %1291 = vmatpush1.bf16.msra.mxu0 %v1214
        %1292 = vmatprep.subr.bf16.mxu0 0
        %1293 = vmatpush1.bf16.msra.mxu0 %v1215
        %1294 = vmatprep.subr.bf16.mxu0 0
        %1295 = vmatpush1.bf16.msra.mxu0 %v1216
        %1296 = vmatprep.subr.bf16.mxu0 0
        %1297 = vmatpush1.bf16.msra.mxu0 %v1217
        %1298 = vmatprep.mubr.bf16.mxu0 %v1011
        %1299 = vmatmul.mubr.bf16.gmra.mrb[0].mxu0 %v1010
        %v1300 = vpop.f32.mrb[0].mxu0
        %v1301 = vadd.f32 0.0, %v1300
        %v1302 = vpop.f32.mrb[0].mxu0
        %v1303 = vpop.f32.mrb[0].mxu0
        %v1304 = vadd.f32 0.0, %v1303
        %v1305 = vpop.f32.mrb[0].mxu0
        %1306 = vmatprep.mubr.bf16.mxu0 %v1015
        %1307 = vmatmul.mubr.bf16.gmra.mrb[0].mxu0 %v1014
        %v1308 = vpop.f32.mrb[0].mxu0
        %v1309 = vadd.f32 0.0, %v1308
        %v1310 = vpop.f32.mrb[0].mxu0
        %v1311 = vpop.f32.mrb[0].mxu0
        %v1312 = vadd.f32 0.0, %v1311
        %v1313 = vpop.f32.mrb[0].mxu0
        %1314 = vmatprep.mubr.bf16.mxu0 %v1019
        %1315 = vmatmul.mubr.bf16.gmra.mrb[0].mxu0 %v1018
        %v1316 = vpop.f32.mrb[0].mxu0
        %v1317 = vadd.f32 0.0, %v1316
        %v1318 = vpop.f32.mrb[0].mxu0
        %v1319 = vpop.f32.mrb[0].mxu0
        %v1320 = vadd.f32 0.0, %v1319
        %v1321 = vpop.f32.mrb[0].mxu0
        %1322 = vmatprep.mubr.bf16.mxu0 %v1023
        %1323 = vmatmul.mubr.bf16.gmra.mrb[0].mxu0 %v1022
        %v1324 = vpop.f32.mrb[0].mxu0
        %v1325 = vadd.f32 0.0, %v1324
        %v1326 = vpop.f32.mrb[0].mxu0
        %v1327 = vpop.f32.mrb[0].mxu0
        %v1328 = vadd.f32 0.0, %v1327
        %v1329 = vpop.f32.mrb[0].mxu0
        %1330 = vmatprep.mubr.bf16.mxu0 %v1027
        %1331 = vmatmul.mubr.bf16.gmra.mrb[0].mxu0 %v1026
        %v1332 = vpop.f32.mrb[0].mxu0
        %v1333 = vadd.f32 0.0, %v1332
        %v1334 = vpop.f32.mrb[0].mxu0
        %v1335 = vpop.f32.mrb[0].mxu0
        %v1336 = vadd.f32 0.0, %v1335
        %v1337 = vpop.f32.mrb[0].mxu0
        %1338 = vmatprep.mubr.bf16.mxu0 %v1031
        %1339 = vmatmul.mubr.bf16.gmra.mrb[0].mxu0 %v1030
        %v1340 = vpop.f32.mrb[0].mxu0
        %v1341 = vadd.f32 0.0, %v1340
        %v1342 = vpop.f32.mrb[0].mxu0
        %v1343 = vpop.f32.mrb[0].mxu0
        %v1344 = vadd.f32 0.0, %v1343
        %v1345 = vpop.f32.mrb[0].mxu0
        %1346 = vmatprep.mubr.bf16.mxu0 %v1035
        %1347 = vmatmul.mubr.bf16.gmra.mrb[0].mxu0 %v1034
        %v1348 = vpop.f32.mrb[0].mxu0
        %v1349 = vadd.f32 0.0, %v1348
        %v1350 = vpop.f32.mrb[0].mxu0
        %v1351 = vpop.f32.mrb[0].mxu0
        %v1352 = vadd.f32 0.0, %v1351
        %v1353 = vpop.f32.mrb[0].mxu0
        %1354 = vmatprep.mubr.bf16.mxu0 %v1039
        %1355 = vmatmul.mubr.bf16.gmra.mrb[0].mxu0 %v1038
        %v1356 = vpop.f32.mrb[0].mxu0
        %v1357 = vadd.f32 0.0, %v1356
        %v1358 = vpop.f32.mrb[0].mxu0
        %v1359 = vpop.f32.mrb[0].mxu0
        %v1360 = vadd.f32 0.0, %v1359
        %v1361 = vpop.f32.mrb[0].mxu0
        %1362 = vmatprep.mubr.bf16.mxu0 %v1043
        %1363 = vmatmul.mubr.bf16.gmra.mrb[0].mxu0 %v1042
        %v1364 = vpop.f32.mrb[0].mxu0
        %v1365 = vadd.f32 0.0, %v1364
        %v1366 = vpop.f32.mrb[0].mxu0
        %v1367 = vpop.f32.mrb[0].mxu0
        %v1368 = vadd.f32 0.0, %v1367
        %v1369 = vpop.f32.mrb[0].mxu0
        %1370 = vmatprep.mubr.bf16.mxu0 %v1047
        %1371 = vmatmul.mubr.bf16.gmra.mrb[0].mxu0 %v1046
        %v1372 = vpop.f32.mrb[0].mxu0
        %v1373 = vadd.f32 0.0, %v1372
        %v1374 = vpop.f32.mrb[0].mxu0
        %v1375 = vpop.f32.mrb[0].mxu0
        %v1376 = vadd.f32 0.0, %v1375
        %v1377 = vpop.f32.mrb[0].mxu0
        %1378 = vmatprep.mubr.bf16.mxu0 %v1051
        %1379 = vmatmul.mubr.bf16.gmra.mrb[0].mxu0 %v1050
        %v1380 = vpop.f32.mrb[0].mxu0
        %v1381 = vadd.f32 0.0, %v1380
        %v1382 = vpop.f32.mrb[0].mxu0
        %v1383 = vpop.f32.mrb[0].mxu0
        %v1384 = vadd.f32 0.0, %v1383
        %v1385 = vpop.f32.mrb[0].mxu0
        %1386 = vmatprep.mubr.bf16.mxu0 %v1055
        %1387 = vmatmul.mubr.bf16.gmra.mrb[0].mxu0 %v1054
        %v1388 = vpop.f32.mrb[0].mxu0
        %v1389 = vadd.f32 0.0, %v1388
        %v1390 = vpop.f32.mrb[0].mxu0
        %v1391 = vpop.f32.mrb[0].mxu0
        %v1392 = vadd.f32 0.0, %v1391
        %v1393 = vpop.f32.mrb[0].mxu0
        %1394 = vmatprep.mubr.bf16.mxu0 %v1059
        %1395 = vmatmul.mubr.bf16.gmra.mrb[0].mxu0 %v1058
        %v1396 = vpop.f32.mrb[0].mxu0
        %v1397 = vadd.f32 0.0, %v1396
        %v1398 = vpop.f32.mrb[0].mxu0
        %v1399 = vpop.f32.mrb[0].mxu0
        %v1400 = vadd.f32 0.0, %v1399
        %v1401 = vpop.f32.mrb[0].mxu0
        %1402 = vmatprep.mubr.bf16.mxu0 %v1063
        %1403 = vmatmul.mubr.bf16.gmra.mrb[0].mxu0 %v1062
        %v1404 = vpop.f32.mrb[0].mxu0
        %v1405 = vadd.f32 0.0, %v1404
        %v1406 = vpop.f32.mrb[0].mxu0
        %v1407 = vpop.f32.mrb[0].mxu0
        %v1408 = vadd.f32 0.0, %v1407
        %v1409 = vpop.f32.mrb[0].mxu0
        %1410 = vmatprep.mubr.bf16.mxu0 %v1067
        %1411 = vmatmul.mubr.bf16.gmra.mrb[0].mxu0 %v1066
        %v1412 = vpop.f32.mrb[0].mxu0
        %v1413 = vadd.f32 0.0, %v1412
        %v1414 = vpop.f32.mrb[0].mxu0
        %v1415 = vpop.f32.mrb[0].mxu0
        %v1416 = vadd.f32 0.0, %v1415
        %v1417 = vpop.f32.mrb[0].mxu0
        %1418 = vmatprep.mubr.bf16.mxu0 %v1071
        %1419 = vmatmul.mubr.bf16.gmra.mrb[0].mxu0 %v1070
        %v1420 = vpop.f32.mrb[0].mxu0
        %v1421 = vadd.f32 0.0, %v1420
        %v1422 = vpop.f32.mrb[0].mxu0
        %v1423 = vpop.f32.mrb[0].mxu0
        %v1424 = vadd.f32 0.0, %v1423
        %v1425 = vpop.f32.mrb[0].mxu0
        %1426 = vdwg.mxu0
        %1427 = vmatprep.subr.bf16.mxu0 0
        %1428 = vmatpush1.bf16.msra.mxu0 %v1218
        %1429 = vmatprep.subr.bf16.mxu0 0
        %1430 = vmatpush1.bf16.msra.mxu0 %v1219
        %1431 = vmatprep.subr.bf16.mxu0 0
        %1432 = vmatpush1.bf16.msra.mxu0 %v1220
        %1433 = vmatprep.subr.bf16.mxu0 0
        %1434 = vmatpush1.bf16.msra.mxu0 %v1221
        %1435 = vmatprep.subr.bf16.mxu0 0
        %1436 = vmatpush1.bf16.msra.mxu0 %v1222
        %1437 = vmatprep.subr.bf16.mxu0 0
        %1438 = vmatpush1.bf16.msra.mxu0 %v1223
        %1439 = vmatprep.subr.bf16.mxu0 0
        %1440 = vmatpush1.bf16.msra.mxu0 %v1224
        %1441 = vmatprep.subr.bf16.mxu0 0
        %1442 = vmatpush1.bf16.msra.mxu0 %v1225
        %1443 = vmatprep.subr.bf16.mxu0 0
        %1444 = vmatpush1.bf16.msra.mxu0 %v1226
        %1445 = vmatprep.subr.bf16.mxu0 0
        %1446 = vmatpush1.bf16.msra.mxu0 %v1227
        %1447 = vmatprep.subr.bf16.mxu0 0
        %1448 = vmatpush1.bf16.msra.mxu0 %v1228
        %1449 = vmatprep.subr.bf16.mxu0 0
        %1450 = vmatpush1.bf16.msra.mxu0 %v1229
        %1451 = vmatprep.subr.bf16.mxu0 0
        %1452 = vmatpush1.bf16.msra.mxu0 %v1230
        %1453 = vmatprep.subr.bf16.mxu0 0
        %1454 = vmatpush1.bf16.msra.mxu0 %v1231
        %1455 = vmatprep.subr.bf16.mxu0 0
        %1456 = vmatpush1.bf16.msra.mxu0 %v1232
        %1457 = vmatprep.subr.bf16.mxu0 0
        %1458 = vmatpush1.bf16.msra.mxu0 %v1233
        %1459 = vmatprep.mubr.bf16.mxu0 %v1013
        %1460 = vmatmul.mubr.bf16.gmra.mrb[0].mxu0 %v1012
        %v1461 = vpop.f32.mrb[0].mxu0
        %v1462 = vadd.f32 %v1301, %v1461
        %v1463 = vpop.f32.mrb[0].mxu0
        %v1464 = vpop.f32.mrb[0].mxu0
        %v1465 = vadd.f32 %v1304, %v1464
        %v1466 = vpop.f32.mrb[0].mxu0
        %1467 = vmatprep.mubr.bf16.mxu0 %v1017
        %1468 = vmatmul.mubr.bf16.gmra.mrb[0].mxu0 %v1016
        %v1469 = vpop.f32.mrb[0].mxu0
        %v1470 = vadd.f32 %v1309, %v1469
        %v1471 = vpop.f32.mrb[0].mxu0
        %v1472 = vpop.f32.mrb[0].mxu0
        %v1473 = vadd.f32 %v1312, %v1472
        %v1474 = vpop.f32.mrb[0].mxu0
        %1475 = vmatprep.mubr.bf16.mxu0 %v1021
        %1476 = vmatmul.mubr.bf16.gmra.mrb[0].mxu0 %v1020
        %v1477 = vpop.f32.mrb[0].mxu0
        %v1478 = vadd.f32 %v1317, %v1477
        %v1479 = vpop.f32.mrb[0].mxu0
        %v1480 = vpop.f32.mrb[0].mxu0
        %v1481 = vadd.f32 %v1320, %v1480
        %v1482 = vpop.f32.mrb[0].mxu0
        %1483 = vmatprep.mubr.bf16.mxu0 %v1025
        %1484 = vmatmul.mubr.bf16.gmra.mrb[0].mxu0 %v1024
        %v1485 = vpop.f32.mrb[0].mxu0
        %v1486 = vadd.f32 %v1325, %v1485
        %v1487 = vpop.f32.mrb[0].mxu0
        %v1488 = vpop.f32.mrb[0].mxu0
        %v1489 = vadd.f32 %v1328, %v1488
        %v1490 = vpop.f32.mrb[0].mxu0
        %1491 = vmatprep.mubr.bf16.mxu0 %v1029
        %1492 = vmatmul.mubr.bf16.gmra.mrb[0].mxu0 %v1028
        %v1493 = vpop.f32.mrb[0].mxu0
        %v1494 = vadd.f32 %v1333, %v1493
        %v1495 = vpop.f32.mrb[0].mxu0
        %v1496 = vpop.f32.mrb[0].mxu0
        %v1497 = vadd.f32 %v1336, %v1496
        %v1498 = vpop.f32.mrb[0].mxu0
        %1499 = vmatprep.mubr.bf16.mxu0 %v1033
        %1500 = vmatmul.mubr.bf16.gmra.mrb[0].mxu0 %v1032
        %v1501 = vpop.f32.mrb[0].mxu0
        %v1502 = vadd.f32 %v1341, %v1501
        %v1503 = vpop.f32.mrb[0].mxu0
        %v1504 = vpop.f32.mrb[0].mxu0
        %v1505 = vadd.f32 %v1344, %v1504
        %v1506 = vpop.f32.mrb[0].mxu0
        %1507 = vmatprep.mubr.bf16.mxu0 %v1037
        %1508 = vmatmul.mubr.bf16.gmra.mrb[0].mxu0 %v1036
        %v1509 = vpop.f32.mrb[0].mxu0
        %v1510 = vadd.f32 %v1349, %v1509
        %v1511 = vpop.f32.mrb[0].mxu0
        %v1512 = vpop.f32.mrb[0].mxu0
        %v1513 = vadd.f32 %v1352, %v1512
        %v1514 = vpop.f32.mrb[0].mxu0
        %1515 = vmatprep.mubr.bf16.mxu0 %v1041
        %1516 = vmatmul.mubr.bf16.gmra.mrb[0].mxu0 %v1040
        %v1517 = vpop.f32.mrb[0].mxu0
        %v1518 = vadd.f32 %v1357, %v1517
        %v1519 = vpop.f32.mrb[0].mxu0
        %v1520 = vpop.f32.mrb[0].mxu0
        %v1521 = vadd.f32 %v1360, %v1520
        %v1522 = vpop.f32.mrb[0].mxu0
        %1523 = vmatprep.mubr.bf16.mxu0 %v1045
        %1524 = vmatmul.mubr.bf16.gmra.mrb[0].mxu0 %v1044
        %v1525 = vpop.f32.mrb[0].mxu0
        %v1526 = vadd.f32 %v1365, %v1525
        %v1527 = vpop.f32.mrb[0].mxu0
        %v1528 = vpop.f32.mrb[0].mxu0
        %v1529 = vadd.f32 %v1368, %v1528
        %v1530 = vpop.f32.mrb[0].mxu0
        %1531 = vmatprep.mubr.bf16.mxu0 %v1049
        %1532 = vmatmul.mubr.bf16.gmra.mrb[0].mxu0 %v1048
        %v1533 = vpop.f32.mrb[0].mxu0
        %v1534 = vadd.f32 %v1373, %v1533
        %v1535 = vpop.f32.mrb[0].mxu0
        %v1536 = vpop.f32.mrb[0].mxu0
        %v1537 = vadd.f32 %v1376, %v1536
        %v1538 = vpop.f32.mrb[0].mxu0
        %1539 = vmatprep.mubr.bf16.mxu0 %v1053
        %1540 = vmatmul.mubr.bf16.gmra.mrb[0].mxu0 %v1052
        %v1541 = vpop.f32.mrb[0].mxu0
        %v1542 = vadd.f32 %v1381, %v1541
        %v1543 = vpop.f32.mrb[0].mxu0
        %v1544 = vpop.f32.mrb[0].mxu0
        %v1545 = vadd.f32 %v1384, %v1544
        %v1546 = vpop.f32.mrb[0].mxu0
        %1547 = vmatprep.mubr.bf16.mxu0 %v1057
        %1548 = vmatmul.mubr.bf16.gmra.mrb[0].mxu0 %v1056
        %v1549 = vpop.f32.mrb[0].mxu0
        %v1550 = vadd.f32 %v1389, %v1549
        %v1551 = vpop.f32.mrb[0].mxu0
        %v1552 = vpop.f32.mrb[0].mxu0
        %v1553 = vadd.f32 %v1392, %v1552
        %v1554 = vpop.f32.mrb[0].mxu0
        %1555 = vmatprep.mubr.bf16.mxu0 %v1061
        %1556 = vmatmul.mubr.bf16.gmra.mrb[0].mxu0 %v1060
        %v1557 = vpop.f32.mrb[0].mxu0
        %v1558 = vadd.f32 %v1397, %v1557
        %v1559 = vpop.f32.mrb[0].mxu0
        %v1560 = vpop.f32.mrb[0].mxu0
        %v1561 = vadd.f32 %v1400, %v1560
        %v1562 = vpop.f32.mrb[0].mxu0
        %1563 = vmatprep.mubr.bf16.mxu0 %v1065
        %1564 = vmatmul.mubr.bf16.gmra.mrb[0].mxu0 %v1064
        %v1565 = vpop.f32.mrb[0].mxu0
        %v1566 = vadd.f32 %v1405, %v1565
        %v1567 = vpop.f32.mrb[0].mxu0
        %v1568 = vpop.f32.mrb[0].mxu0
        %v1569 = vadd.f32 %v1408, %v1568
        %v1570 = vpop.f32.mrb[0].mxu0
        %1571 = vmatprep.mubr.bf16.mxu0 %v1069
        %1572 = vmatmul.mubr.bf16.gmra.mrb[0].mxu0 %v1068
        %v1573 = vpop.f32.mrb[0].mxu0
        %v1574 = vadd.f32 %v1413, %v1573
        %v1575 = vpop.f32.mrb[0].mxu0
        %v1576 = vpop.f32.mrb[0].mxu0
        %v1577 = vadd.f32 %v1416, %v1576
        %v1578 = vpop.f32.mrb[0].mxu0
        %1579 = vmatprep.mubr.bf16.mxu0 %v1073
        %1580 = vmatmul.mubr.bf16.gmra.mrb[0].mxu0 %v1072
        %v1581 = vpop.f32.mrb[0].mxu0
        %v1582 = vadd.f32 %v1421, %v1581
        %v1583 = vpop.f32.mrb[0].mxu0
        %v1584 = vpop.f32.mrb[0].mxu0
        %v1585 = vadd.f32 %v1424, %v1584
        %v1586 = vpop.f32.mrb[0].mxu0
        %1587 = vdwg.mxu0
        %v1588 = vpack.c.bf16 %v1465, %v1462
        %v1589 = vpack.c.bf16 %v1473, %v1470
        %v1590 = vpack.c.bf16 %v1481, %v1478
        %v1591 = vpack.c.bf16 %v1489, %v1486
        %v1592 = vpack.c.bf16 %v1497, %v1494
        %v1593 = vpack.c.bf16 %v1505, %v1502
        %v1594 = vpack.c.bf16 %v1513, %v1510
        %v1595 = vpack.c.bf16 %v1521, %v1518
        %v1596 = vpack.c.bf16 %v1529, %v1526
        %v1597 = vpack.c.bf16 %v1537, %v1534
        %v1598 = vpack.c.bf16 %v1545, %v1542
        %v1599 = vpack.c.bf16 %v1553, %v1550
        %v1600 = vpack.c.bf16 %v1561, %v1558
        %v1601 = vpack.c.bf16 %v1569, %v1566
        %v1602 = vpack.c.bf16 %v1577, %v1574
        %v1603 = vpack.c.bf16 %v1585, %v1582
        %v1604 = vld [vmem:[%s5] sm:$0xf]
        %v1605 = vld [vmem:[%s426] sm:$0xf]
        %v1606 = vld [vmem:[%s426 + $0x4] sm:$0xf]
        %v1607 = vld [vmem:[%s426 + $0x8] sm:$0xf]
        %v1608 = vld [vmem:[%s426 + $0xc] sm:$0xf]
        %v1609 = vld [vmem:[%s426 + $0x10] sm:$0xf]
        %v1610 = vld [vmem:[%s426 + $0x14] sm:$0xf]
        %v1611 = vld [vmem:[%s426 + $0x18] sm:$0xf]
        %v1612 = vld [vmem:[%s426 + $0x1c] sm:$0xf]
        %v1613 = vld [vmem:[%s426 + $0x20] sm:$0xf]
        %v1614 = vld [vmem:[%s426 + $0x24] sm:$0xf]
        %v1615 = vld [vmem:[%s426 + $0x28] sm:$0xf]
        %v1616 = vld [vmem:[%s426 + $0x2c] sm:$0xf]
        %v1617 = vld [vmem:[%s426 + $0x30] sm:$0xf]
        %v1618 = vld [vmem:[%s426 + $0x34] sm:$0xf]
        %v1619 = vld [vmem:[%s426 + $0x38] sm:$0xf]
        %v1620 = vld [vmem:[%s426 + $0x3c] sm:$0xf]
        %v1621 = vld [vmem:[%s426 + $0x40] sm:$0xf]
        %v1622 = vld [vmem:[%s426 + $0x44] sm:$0xf]
        %v1623 = vld [vmem:[%s426 + $0x48] sm:$0xf]
        %v1624 = vld [vmem:[%s426 + $0x4c] sm:$0xf]
        %v1625 = vld [vmem:[%s426 + $0x50] sm:$0xf]
        %v1626 = vld [vmem:[%s426 + $0x54] sm:$0xf]
        %v1627 = vld [vmem:[%s426 + $0x58] sm:$0xf]
        %v1628 = vld [vmem:[%s426 + $0x5c] sm:$0xf]
        %v1629 = vld [vmem:[%s426 + $0x60] sm:$0xf]
        %v1630 = vld [vmem:[%s426 + $0x64] sm:$0xf]
        %v1631 = vld [vmem:[%s426 + $0x68] sm:$0xf]
        %v1632 = vld [vmem:[%s426 + $0x6c] sm:$0xf]
        %v1633 = vld [vmem:[%s426 + $0x70] sm:$0xf]
        %v1634 = vld [vmem:[%s426 + $0x74] sm:$0xf]
        %v1635 = vld [vmem:[%s426 + $0x78] sm:$0xf]
        %v1636 = vld [vmem:[%s426 + $0x7c] sm:$0xf]
        %v1637 = vld [vmem:[%s6] sm:$0x3]
        %v1670 = vunpack.c.l.b16 %v1605
        %v1671 = vunpack.c.l.b16 %v1606
        %v1672 = vunpack.c.l.b16 %v1607
        %v1673 = vunpack.c.l.b16 %v1608
        %v1674 = vunpack.c.l.b16 %v1609
        %v1675 = vunpack.c.l.b16 %v1610
        %v1676 = vunpack.c.l.b16 %v1611
        %v1677 = vunpack.c.l.b16 %v1612
        %v1678 = vunpack.c.l.b16 %v1613
        %v1679 = vunpack.c.l.b16 %v1614
        %v1680 = vunpack.c.l.b16 %v1615
        %v1681 = vunpack.c.l.b16 %v1616
        %v1682 = vunpack.c.l.b16 %v1617
        %v1683 = vunpack.c.l.b16 %v1618
        %v1684 = vunpack.c.l.b16 %v1619
        %v1685 = vunpack.c.l.b16 %v1620
        %v1686 = vunpack.c.l.b16 %v1621
        %v1687 = vunpack.c.l.b16 %v1622
        %v1688 = vunpack.c.l.b16 %v1623
        %v1689 = vunpack.c.l.b16 %v1624
        %v1690 = vunpack.c.l.b16 %v1625
        %v1691 = vunpack.c.l.b16 %v1626
        %v1692 = vunpack.c.l.b16 %v1627
        %v1693 = vunpack.c.l.b16 %v1628
        %v1694 = vunpack.c.l.b16 %v1629
        %v1695 = vunpack.c.l.b16 %v1630
        %v1696 = vunpack.c.l.b16 %v1631
        %v1697 = vunpack.c.l.b16 %v1632
        %v1698 = vunpack.c.l.b16 %v1633
        %v1699 = vunpack.c.l.b16 %v1634
        %v1700 = vunpack.c.l.b16 %v1635
        %v1701 = vunpack.c.l.b16 %v1636
        %v1702 = vpack.c.b16 %v1671, %v1670
        %v1703 = vpack.c.b16 %v1673, %v1672
        %v1704 = vpack.c.b16 %v1675, %v1674
        %v1705 = vpack.c.b16 %v1677, %v1676
        %v1706 = vpack.c.b16 %v1679, %v1678
        %v1707 = vpack.c.b16 %v1681, %v1680
        %v1708 = vpack.c.b16 %v1683, %v1682
        %v1709 = vpack.c.b16 %v1685, %v1684
        %v1710 = vpack.c.b16 %v1687, %v1686
        %v1711 = vpack.c.b16 %v1689, %v1688
        %v1712 = vpack.c.b16 %v1691, %v1690
        %v1713 = vpack.c.b16 %v1693, %v1692
        %v1714 = vpack.c.b16 %v1695, %v1694
        %v1715 = vpack.c.b16 %v1697, %v1696
        %v1716 = vpack.c.b16 %v1699, %v1698
        %v1717 = vpack.c.b16 %v1701, %v1700
        %vm1718 = vcmask 31744
        %v1720 = vsel %vm1718, %v1702, 0
        %v1723 = vsel %vm1718, %v1703, 0
        %v1726 = vsel %vm1718, %v1704, 0
        %v1729 = vsel %vm1718, %v1705, 0
        %v1732 = vsel %vm1718, %v1706, 0
        %v1735 = vsel %vm1718, %v1707, 0
        %v1738 = vsel %vm1718, %v1708, 0
        %v1741 = vsel %vm1718, %v1709, 0
        %v1744 = vsel %vm1718, %v1710, 0
        %v1747 = vsel %vm1718, %v1711, 0
        %v1750 = vsel %vm1718, %v1712, 0
        %v1753 = vsel %vm1718, %v1713, 0
        %v1756 = vsel %vm1718, %v1714, 0
        %v1759 = vsel %vm1718, %v1715, 0
        %v1762 = vsel %vm1718, %v1716, 0
        %v1765 = vsel %vm1718, %v1717, 0
        %vm1767 = vcmask 1041408
        %v1769 = vsel %vm1767, %v1637, 0
        %1771 = vmatprep.subr.bf16.mxu0 0
        %1772 = vmatpush1.bf16.msra.mxu0 %v1769
        %1773 = vmatprep.subr.bf16.mxu0 0
        %1774 = vmatpush1.bf16.msra.mxu0 0
        %1775 = vmatprep.subr.bf16.mxu0 0
        %1776 = vmatpush1.bf16.msra.mxu0 0
        %1777 = vmatprep.subr.bf16.mxu0 0
        %1778 = vmatpush1.bf16.msra.mxu0 0
        %1779 = vmatprep.subr.bf16.mxu0 0
        %1780 = vmatpush1.bf16.msra.mxu0 0
        %1781 = vmatprep.subr.bf16.mxu0 0
        %1782 = vmatpush1.bf16.msra.mxu0 0
        %1783 = vmatprep.subr.bf16.mxu0 0
        %1784 = vmatpush1.bf16.msra.mxu0 0
        %1785 = vmatprep.subr.bf16.mxu0 0
        %1786 = vmatpush1.bf16.msra.mxu0 0
        %1787 = vmatprep.subr.bf16.mxu0 0
        %1788 = vmatpush1.bf16.msra.mxu0 0
        %1789 = vmatprep.subr.bf16.mxu0 0
        %1790 = vmatpush1.bf16.msra.mxu0 0
        %1791 = vmatprep.subr.bf16.mxu0 0
        %1792 = vmatpush1.bf16.msra.mxu0 0
        %1793 = vmatprep.subr.bf16.mxu0 0
        %1794 = vmatpush1.bf16.msra.mxu0 0
        %1795 = vmatprep.subr.bf16.mxu0 0
        %1796 = vmatpush1.bf16.msra.mxu0 0
        %1797 = vmatprep.subr.bf16.mxu0 0
        %1798 = vmatpush1.bf16.msra.mxu0 0
        %1799 = vmatprep.subr.bf16.mxu0 0
        %1800 = vmatpush1.bf16.msra.mxu0 0
        %1801 = vmatprep.subr.bf16.mxu0 0
        %1802 = vmatpush1.bf16.msra.mxu0 0
        %1803 = vmatprep.mubr.bf16.mxu0 0
        %1804 = vmatmul.mubr.bf16.gmra.mrb[0].mxu0 %v1720
        %v1805 = vpop.f32.mrb[0].mxu0
        %v1806 = vadd.f32 0.0, %v1805
        %v1807 = vpop.f32.mrb[0].mxu0
        %v1808 = vpop.f32.mrb[0].mxu0
        %v1809 = vadd.f32 0.0, %v1808
        %v1810 = vpop.f32.mrb[0].mxu0
        %1811 = vmatprep.mubr.bf16.mxu0 0
        %1812 = vmatmul.mubr.bf16.gmra.mrb[0].mxu0 %v1723
        %v1813 = vpop.f32.mrb[0].mxu0
        %v1814 = vadd.f32 0.0, %v1813
        %v1815 = vpop.f32.mrb[0].mxu0
        %v1816 = vpop.f32.mrb[0].mxu0
        %v1817 = vadd.f32 0.0, %v1816
        %v1818 = vpop.f32.mrb[0].mxu0
        %1819 = vmatprep.mubr.bf16.mxu0 0
        %1820 = vmatmul.mubr.bf16.gmra.mrb[0].mxu0 %v1726
        %v1821 = vpop.f32.mrb[0].mxu0
        %v1822 = vadd.f32 0.0, %v1821
        %v1823 = vpop.f32.mrb[0].mxu0
        %v1824 = vpop.f32.mrb[0].mxu0
        %v1825 = vadd.f32 0.0, %v1824
        %v1826 = vpop.f32.mrb[0].mxu0
        %1827 = vmatprep.mubr.bf16.mxu0 0
        %1828 = vmatmul.mubr.bf16.gmra.mrb[0].mxu0 %v1729
        %v1829 = vpop.f32.mrb[0].mxu0
        %v1830 = vadd.f32 0.0, %v1829
        %v1831 = vpop.f32.mrb[0].mxu0
        %v1832 = vpop.f32.mrb[0].mxu0
        %v1833 = vadd.f32 0.0, %v1832
        %v1834 = vpop.f32.mrb[0].mxu0
        %1835 = vmatprep.mubr.bf16.mxu0 0
        %1836 = vmatmul.mubr.bf16.gmra.mrb[0].mxu0 %v1732
        %v1837 = vpop.f32.mrb[0].mxu0
        %v1838 = vadd.f32 0.0, %v1837
        %v1839 = vpop.f32.mrb[0].mxu0
        %v1840 = vpop.f32.mrb[0].mxu0
        %v1841 = vadd.f32 0.0, %v1840
        %v1842 = vpop.f32.mrb[0].mxu0
        %1843 = vmatprep.mubr.bf16.mxu0 0
        %1844 = vmatmul.mubr.bf16.gmra.mrb[0].mxu0 %v1735
        %v1845 = vpop.f32.mrb[0].mxu0
        %v1846 = vadd.f32 0.0, %v1845
        %v1847 = vpop.f32.mrb[0].mxu0
        %v1848 = vpop.f32.mrb[0].mxu0
        %v1849 = vadd.f32 0.0, %v1848
        %v1850 = vpop.f32.mrb[0].mxu0
        %1851 = vmatprep.mubr.bf16.mxu0 0
        %1852 = vmatmul.mubr.bf16.gmra.mrb[0].mxu0 %v1738
        %v1853 = vpop.f32.mrb[0].mxu0
        %v1854 = vadd.f32 0.0, %v1853
        %v1855 = vpop.f32.mrb[0].mxu0
        %v1856 = vpop.f32.mrb[0].mxu0
        %v1857 = vadd.f32 0.0, %v1856
        %v1858 = vpop.f32.mrb[0].mxu0
        %1859 = vmatprep.mubr.bf16.mxu0 0
        %1860 = vmatmul.mubr.bf16.gmra.mrb[0].mxu0 %v1741
        %v1861 = vpop.f32.mrb[0].mxu0
        %v1862 = vadd.f32 0.0, %v1861
        %v1863 = vpop.f32.mrb[0].mxu0
        %v1864 = vpop.f32.mrb[0].mxu0
        %v1865 = vadd.f32 0.0, %v1864
        %v1866 = vpop.f32.mrb[0].mxu0
        %1867 = vmatprep.mubr.bf16.mxu0 0
        %1868 = vmatmul.mubr.bf16.gmra.mrb[0].mxu0 %v1744
        %v1869 = vpop.f32.mrb[0].mxu0
        %v1870 = vadd.f32 0.0, %v1869
        %v1871 = vpop.f32.mrb[0].mxu0
        %v1872 = vpop.f32.mrb[0].mxu0
        %v1873 = vadd.f32 0.0, %v1872
        %v1874 = vpop.f32.mrb[0].mxu0
        %1875 = vmatprep.mubr.bf16.mxu0 0
        %1876 = vmatmul.mubr.bf16.gmra.mrb[0].mxu0 %v1747
        %v1877 = vpop.f32.mrb[0].mxu0
        %v1878 = vadd.f32 0.0, %v1877
        %v1879 = vpop.f32.mrb[0].mxu0
        %v1880 = vpop.f32.mrb[0].mxu0
        %v1881 = vadd.f32 0.0, %v1880
        %v1882 = vpop.f32.mrb[0].mxu0
        %1883 = vmatprep.mubr.bf16.mxu0 0
        %1884 = vmatmul.mubr.bf16.gmra.mrb[0].mxu0 %v1750
        %v1885 = vpop.f32.mrb[0].mxu0
        %v1886 = vadd.f32 0.0, %v1885
        %v1887 = vpop.f32.mrb[0].mxu0
        %v1888 = vpop.f32.mrb[0].mxu0
        %v1889 = vadd.f32 0.0, %v1888
        %v1890 = vpop.f32.mrb[0].mxu0
        %1891 = vmatprep.mubr.bf16.mxu0 0
        %1892 = vmatmul.mubr.bf16.gmra.mrb[0].mxu0 %v1753
        %v1893 = vpop.f32.mrb[0].mxu0
        %v1894 = vadd.f32 0.0, %v1893
        %v1895 = vpop.f32.mrb[0].mxu0
        %v1896 = vpop.f32.mrb[0].mxu0
        %v1897 = vadd.f32 0.0, %v1896
        %v1898 = vpop.f32.mrb[0].mxu0
        %1899 = vmatprep.mubr.bf16.mxu0 0
        %1900 = vmatmul.mubr.bf16.gmra.mrb[0].mxu0 %v1756
        %v1901 = vpop.f32.mrb[0].mxu0
        %v1902 = vadd.f32 0.0, %v1901
        %v1903 = vpop.f32.mrb[0].mxu0
        %v1904 = vpop.f32.mrb[0].mxu0
        %v1905 = vadd.f32 0.0, %v1904
        %v1906 = vpop.f32.mrb[0].mxu0
        %1907 = vmatprep.mubr.bf16.mxu0 0
        %1908 = vmatmul.mubr.bf16.gmra.mrb[0].mxu0 %v1759
        %v1909 = vpop.f32.mrb[0].mxu0
        %v1910 = vadd.f32 0.0, %v1909
        %v1911 = vpop.f32.mrb[0].mxu0
        %v1912 = vpop.f32.mrb[0].mxu0
        %v1913 = vadd.f32 0.0, %v1912
        %v1914 = vpop.f32.mrb[0].mxu0
        %1915 = vmatprep.mubr.bf16.mxu0 0
        %1916 = vmatmul.mubr.bf16.gmra.mrb[0].mxu0 %v1762
        %v1917 = vpop.f32.mrb[0].mxu0
        %v1918 = vadd.f32 0.0, %v1917
        %v1919 = vpop.f32.mrb[0].mxu0
        %v1920 = vpop.f32.mrb[0].mxu0
        %v1921 = vadd.f32 0.0, %v1920
        %v1922 = vpop.f32.mrb[0].mxu0
        %1923 = vmatprep.mubr.bf16.mxu0 0
        %1924 = vmatmul.mubr.bf16.gmra.mrb[0].mxu0 %v1765
        %v1925 = vpop.f32.mrb[0].mxu0
        %v1926 = vadd.f32 0.0, %v1925
        %v1927 = vpop.f32.mrb[0].mxu0
        %v1928 = vpop.f32.mrb[0].mxu0
        %v1929 = vadd.f32 0.0, %v1928
        %v1930 = vpop.f32.mrb[0].mxu0
        %1931 = vdwg.mxu0
        %v1933 = vsel %vm539, %v1588, 0
        %v1936 = vsel %vm539, %v1589, 0
        %v1939 = vsel %vm539, %v1590, 0
        %v1942 = vsel %vm539, %v1591, 0
        %v1945 = vsel %vm539, %v1592, 0
        %v1948 = vsel %vm539, %v1593, 0
        %v1951 = vsel %vm539, %v1594, 0
        %v1954 = vsel %vm539, %v1595, 0
        %v1957 = vsel %vm539, %v1596, 0
        %v1960 = vsel %vm539, %v1597, 0
        %v1963 = vsel %vm539, %v1598, 0
        %v1966 = vsel %vm539, %v1599, 0
        %v1969 = vsel %vm539, %v1600, 0
        %v1972 = vsel %vm539, %v1601, 0
        %v1975 = vsel %vm539, %v1602, 0
        %v1978 = vsel %vm539, %v1603, 0
        %v1981 = vsel %vm552, %v1604, 0
        %1983 = vmatprep.subr.bf16.mxu0 0
        %1984 = vmatpush1.bf16.msra.mxu0 %v1981
        %1985 = vmatprep.subr.bf16.mxu0 0
        %1986 = vmatpush1.bf16.msra.mxu0 0
        %1987 = vmatprep.subr.bf16.mxu0 0
        %1988 = vmatpush1.bf16.msra.mxu0 0
        %1989 = vmatprep.subr.bf16.mxu0 0
        %1990 = vmatpush1.bf16.msra.mxu0 0
        %1991 = vmatprep.subr.bf16.mxu0 0
        %1992 = vmatpush1.bf16.msra.mxu0 0
        %1993 = vmatprep.subr.bf16.mxu0 0
        %1994 = vmatpush1.bf16.msra.mxu0 0
        %1995 = vmatprep.subr.bf16.mxu0 0
        %1996 = vmatpush1.bf16.msra.mxu0 0
        %1997 = vmatprep.subr.bf16.mxu0 0
        %1998 = vmatpush1.bf16.msra.mxu0 0
        %1999 = vmatprep.subr.bf16.mxu0 0
        %2000 = vmatpush1.bf16.msra.mxu0 0
        %2001 = vmatprep.subr.bf16.mxu0 0
        %2002 = vmatpush1.bf16.msra.mxu0 0
        %2003 = vmatprep.subr.bf16.mxu0 0
        %2004 = vmatpush1.bf16.msra.mxu0 0
        %2005 = vmatprep.subr.bf16.mxu0 0
        %2006 = vmatpush1.bf16.msra.mxu0 0
        %2007 = vmatprep.subr.bf16.mxu0 0
        %2008 = vmatpush1.bf16.msra.mxu0 0
        %2009 = vmatprep.subr.bf16.mxu0 0
        %2010 = vmatpush1.bf16.msra.mxu0 0
        %2011 = vmatprep.subr.bf16.mxu0 0
        %2012 = vmatpush1.bf16.msra.mxu0 0
        %2013 = vmatprep.subr.bf16.mxu0 0
        %2014 = vmatpush1.bf16.msra.mxu0 0
        %2015 = vmatprep.mubr.bf16.mxu0 0
        %2016 = vmatmul.mubr.bf16.gmra.mrb[0].mxu0 %v1933
        %v2017 = vpop.f32.mrb[0].mxu0
        %v2018 = vadd.f32 %v1806, %v2017
        %v2019 = vpop.f32.mrb[0].mxu0
        %v2020 = vpop.f32.mrb[0].mxu0
        %v2021 = vadd.f32 %v1809, %v2020
        %v2022 = vpop.f32.mrb[0].mxu0
        %2023 = vmatprep.mubr.bf16.mxu0 0
        %2024 = vmatmul.mubr.bf16.gmra.mrb[0].mxu0 %v1936
        %v2025 = vpop.f32.mrb[0].mxu0
        %v2026 = vadd.f32 %v1814, %v2025
        %v2027 = vpop.f32.mrb[0].mxu0
        %v2028 = vpop.f32.mrb[0].mxu0
        %v2029 = vadd.f32 %v1817, %v2028
        %v2030 = vpop.f32.mrb[0].mxu0
        %2031 = vmatprep.mubr.bf16.mxu0 0
        %2032 = vmatmul.mubr.bf16.gmra.mrb[0].mxu0 %v1939
        %v2033 = vpop.f32.mrb[0].mxu0
        %v2034 = vadd.f32 %v1822, %v2033
        %v2035 = vpop.f32.mrb[0].mxu0
        %v2036 = vpop.f32.mrb[0].mxu0
        %v2037 = vadd.f32 %v1825, %v2036
        %v2038 = vpop.f32.mrb[0].mxu0
        %2039 = vmatprep.mubr.bf16.mxu0 0
        %2040 = vmatmul.mubr.bf16.gmra.mrb[0].mxu0 %v1942
        %v2041 = vpop.f32.mrb[0].mxu0
        %v2042 = vadd.f32 %v1830, %v2041
        %v2043 = vpop.f32.mrb[0].mxu0
        %v2044 = vpop.f32.mrb[0].mxu0
        %v2045 = vadd.f32 %v1833, %v2044
        %v2046 = vpop.f32.mrb[0].mxu0
        %2047 = vmatprep.mubr.bf16.mxu0 0
        %2048 = vmatmul.mubr.bf16.gmra.mrb[0].mxu0 %v1945
        %v2049 = vpop.f32.mrb[0].mxu0
        %v2050 = vadd.f32 %v1838, %v2049
        %v2051 = vpop.f32.mrb[0].mxu0
        %v2052 = vpop.f32.mrb[0].mxu0
        %v2053 = vadd.f32 %v1841, %v2052
        %v2054 = vpop.f32.mrb[0].mxu0
        %2055 = vmatprep.mubr.bf16.mxu0 0
        %2056 = vmatmul.mubr.bf16.gmra.mrb[0].mxu0 %v1948
        %v2057 = vpop.f32.mrb[0].mxu0
        %v2058 = vadd.f32 %v1846, %v2057
        %v2059 = vpop.f32.mrb[0].mxu0
        %v2060 = vpop.f32.mrb[0].mxu0
        %v2061 = vadd.f32 %v1849, %v2060
        %v2062 = vpop.f32.mrb[0].mxu0
        %2063 = vmatprep.mubr.bf16.mxu0 0
        %2064 = vmatmul.mubr.bf16.gmra.mrb[0].mxu0 %v1951
        %v2065 = vpop.f32.mrb[0].mxu0
        %v2066 = vadd.f32 %v1854, %v2065
        %v2067 = vpop.f32.mrb[0].mxu0
        %v2068 = vpop.f32.mrb[0].mxu0
        %v2069 = vadd.f32 %v1857, %v2068
        %v2070 = vpop.f32.mrb[0].mxu0
        %2071 = vmatprep.mubr.bf16.mxu0 0
        %2072 = vmatmul.mubr.bf16.gmra.mrb[0].mxu0 %v1954
        %v2073 = vpop.f32.mrb[0].mxu0
        %v2074 = vadd.f32 %v1862, %v2073
        %v2075 = vpop.f32.mrb[0].mxu0
        %v2076 = vpop.f32.mrb[0].mxu0
        %v2077 = vadd.f32 %v1865, %v2076
        %v2078 = vpop.f32.mrb[0].mxu0
        %2079 = vmatprep.mubr.bf16.mxu0 0
        %2080 = vmatmul.mubr.bf16.gmra.mrb[0].mxu0 %v1957
        %v2081 = vpop.f32.mrb[0].mxu0
        %v2082 = vadd.f32 %v1870, %v2081
        %v2083 = vpop.f32.mrb[0].mxu0
        %v2084 = vpop.f32.mrb[0].mxu0
        %v2085 = vadd.f32 %v1873, %v2084
        %v2086 = vpop.f32.mrb[0].mxu0
        %2087 = vmatprep.mubr.bf16.mxu0 0
        %2088 = vmatmul.mubr.bf16.gmra.mrb[0].mxu0 %v1960
        %v2089 = vpop.f32.mrb[0].mxu0
        %v2090 = vadd.f32 %v1878, %v2089
        %v2091 = vpop.f32.mrb[0].mxu0
        %v2092 = vpop.f32.mrb[0].mxu0
        %v2093 = vadd.f32 %v1881, %v2092
        %v2094 = vpop.f32.mrb[0].mxu0
        %2095 = vmatprep.mubr.bf16.mxu0 0
        %2096 = vmatmul.mubr.bf16.gmra.mrb[0].mxu0 %v1963
        %v2097 = vpop.f32.mrb[0].mxu0
        %v2098 = vadd.f32 %v1886, %v2097
        %v2099 = vpop.f32.mrb[0].mxu0
        %v2100 = vpop.f32.mrb[0].mxu0
        %v2101 = vadd.f32 %v1889, %v2100
        %v2102 = vpop.f32.mrb[0].mxu0
        %2103 = vmatprep.mubr.bf16.mxu0 0
        %2104 = vmatmul.mubr.bf16.gmra.mrb[0].mxu0 %v1966
        %v2105 = vpop.f32.mrb[0].mxu0
        %v2106 = vadd.f32 %v1894, %v2105
        %v2107 = vpop.f32.mrb[0].mxu0
        %v2108 = vpop.f32.mrb[0].mxu0
        %v2109 = vadd.f32 %v1897, %v2108
        %v2110 = vpop.f32.mrb[0].mxu0
        %2111 = vmatprep.mubr.bf16.mxu0 0
        %2112 = vmatmul.mubr.bf16.gmra.mrb[0].mxu0 %v1969
        %v2113 = vpop.f32.mrb[0].mxu0
        %v2114 = vadd.f32 %v1902, %v2113
        %v2115 = vpop.f32.mrb[0].mxu0
        %v2116 = vpop.f32.mrb[0].mxu0
        %v2117 = vadd.f32 %v1905, %v2116
        %v2118 = vpop.f32.mrb[0].mxu0
        %2119 = vmatprep.mubr.bf16.mxu0 0
        %2120 = vmatmul.mubr.bf16.gmra.mrb[0].mxu0 %v1972
        %v2121 = vpop.f32.mrb[0].mxu0
        %v2122 = vadd.f32 %v1910, %v2121
        %v2123 = vpop.f32.mrb[0].mxu0
        %v2124 = vpop.f32.mrb[0].mxu0
        %v2125 = vadd.f32 %v1913, %v2124
        %v2126 = vpop.f32.mrb[0].mxu0
        %2127 = vmatprep.mubr.bf16.mxu0 0
        %2128 = vmatmul.mubr.bf16.gmra.mrb[0].mxu0 %v1975
        %v2129 = vpop.f32.mrb[0].mxu0
        %v2130 = vadd.f32 %v1918, %v2129
        %v2131 = vpop.f32.mrb[0].mxu0
        %v2132 = vpop.f32.mrb[0].mxu0
        %v2133 = vadd.f32 %v1921, %v2132
        %v2134 = vpop.f32.mrb[0].mxu0
        %2135 = vmatprep.mubr.bf16.mxu0 0
        %2136 = vmatmul.mubr.bf16.gmra.mrb[0].mxu0 %v1978
        %v2137 = vpop.f32.mrb[0].mxu0
        %v2138 = vadd.f32 %v1926, %v2137
        %v2139 = vpop.f32.mrb[0].mxu0
        %v2140 = vpop.f32.mrb[0].mxu0
        %v2141 = vadd.f32 %v1929, %v2140
        %v2142 = vpop.f32.mrb[0].mxu0
        %2143 = vdwg.mxu0
        %v2144 = vadd.f32 %v591, %v2018
        %v2145 = vadd.f32 %v594, %v2021
        %v2146 = vadd.f32 %v599, %v2026
        %v2147 = vadd.f32 %v602, %v2029
        %v2148 = vadd.f32 %v607, %v2034
        %v2149 = vadd.f32 %v610, %v2037
        %v2150 = vadd.f32 %v615, %v2042
        %v2151 = vadd.f32 %v618, %v2045
        %v2152 = vmax.f32 %v2144, 0.0
        %v2153 = vmax.f32 %v2145, 0.0
        %v2154 = vmax.f32 %v2146, 0.0
        %v2155 = vmax.f32 %v2147, 0.0
        %v2156 = vmax.f32 %v2148, 0.0
        %v2157 = vmax.f32 %v2149, 0.0
        %v2158 = vmax.f32 %v2150, 0.0
        %v2159 = vmax.f32 %v2151, 0.0
        %v2160 = vadd.f32 %v591, %v2050
        %v2161 = vadd.f32 %v594, %v2053
        %v2162 = vadd.f32 %v599, %v2058
        %v2163 = vadd.f32 %v602, %v2061
        %v2164 = vadd.f32 %v607, %v2066
        %v2165 = vadd.f32 %v610, %v2069
        %v2166 = vadd.f32 %v615, %v2074
        %v2167 = vadd.f32 %v618, %v2077
        %v2168 = vmax.f32 %v2160, 0.0
        %v2169 = vmax.f32 %v2161, 0.0
        %v2170 = vmax.f32 %v2162, 0.0
        %v2171 = vmax.f32 %v2163, 0.0
        %v2172 = vmax.f32 %v2164, 0.0
        %v2173 = vmax.f32 %v2165, 0.0
        %v2174 = vmax.f32 %v2166, 0.0
        %v2175 = vmax.f32 %v2167, 0.0
        %v2176 = vadd.f32 %v591, %v2082
        %v2177 = vadd.f32 %v594, %v2085
        %v2178 = vadd.f32 %v599, %v2090
        %v2179 = vadd.f32 %v602, %v2093
        %v2180 = vadd.f32 %v607, %v2098
        %v2181 = vadd.f32 %v610, %v2101
        %v2182 = vadd.f32 %v615, %v2106
        %v2183 = vadd.f32 %v618, %v2109
        %v2184 = vmax.f32 %v2176, 0.0
        %v2185 = vmax.f32 %v2177, 0.0
        %v2186 = vmax.f32 %v2178, 0.0
        %v2187 = vmax.f32 %v2179, 0.0
        %v2188 = vmax.f32 %v2180, 0.0
        %v2189 = vmax.f32 %v2181, 0.0
        %v2190 = vmax.f32 %v2182, 0.0
        %v2191 = vmax.f32 %v2183, 0.0
        %v2192 = vadd.f32 %v591, %v2114
        %v2193 = vadd.f32 %v594, %v2117
        %v2194 = vadd.f32 %v599, %v2122
        %v2195 = vadd.f32 %v602, %v2125
        %v2196 = vadd.f32 %v607, %v2130
        %v2197 = vadd.f32 %v610, %v2133
        %v2198 = vadd.f32 %v615, %v2138
        %v2199 = vadd.f32 %v618, %v2141
        %v2200 = vmax.f32 %v2192, 0.0
        %v2201 = vmax.f32 %v2193, 0.0
        %v2202 = vmax.f32 %v2194, 0.0
        %v2203 = vmax.f32 %v2195, 0.0
        %v2204 = vmax.f32 %v2196, 0.0
        %v2205 = vmax.f32 %v2197, 0.0
        %v2206 = vmax.f32 %v2198, 0.0
        %v2207 = vmax.f32 %v2199, 0.0
        %v2208 = vpack.c.bf16 %v2153, %v2152
        %v2209 = vpack.c.bf16 %v2155, %v2154
        %v2210 = vpack.c.bf16 %v2157, %v2156
        %v2211 = vpack.c.bf16 %v2159, %v2158
        %v2212 = vpack.c.bf16 %v2169, %v2168
        %v2213 = vpack.c.bf16 %v2171, %v2170
        %v2214 = vpack.c.bf16 %v2173, %v2172
        %v2215 = vpack.c.bf16 %v2175, %v2174
        %v2216 = vpack.c.bf16 %v2185, %v2184
        %v2217 = vpack.c.bf16 %v2187, %v2186
        %v2218 = vpack.c.bf16 %v2189, %v2188
        %v2219 = vpack.c.bf16 %v2191, %v2190
        %v2220 = vpack.c.bf16 %v2201, %v2200
        %v2221 = vpack.c.bf16 %v2203, %v2202
        %v2222 = vpack.c.bf16 %v2205, %v2204
        %v2223 = vpack.c.bf16 %v2207, %v2206
        %v2224 = vld [vmem:[%s7] sm:$0xf]
        %v2225 = vld [vmem:[%s7 + $0x4] sm:$0xf]
        %v2226 = vld [vmem:[%s7 + $0x8] sm:$0xf]
        %v2227 = vld [vmem:[%s7 + $0xc] sm:$0xf]
        %v2228 = vld [vmem:[%s8] sm:$0x1]
        %v2230 = vlaneseq
        %v2231 = vshrl.u32 %v2230, 7
        %v2232 = vsub.s32 0, %v2231
        %v2233 = vrot.slane %v2228, %v2232
        %v2239 = vunpack.c.l.b16 %v2224
        %v2240 = vunpack.c.l.b16 %v2225
        %v2241 = vunpack.c.l.b16 %v2226
        %v2242 = vunpack.c.l.b16 %v2227
        %v2243 = vpack.c.b16 %v2240, %v2239
        %v2244 = vpack.c.b16 %v2242, %v2241
        %vm2247 = vcmask 261120
        %v2249 = vsel %vm2247, %v2208, 0
        %v2252 = vsel %vm2247, %v2209, 0
        %v2255 = vsel %vm2247, %v2210, 0
        %v2258 = vsel %vm2247, %v2211, 0
        %v2261 = vsel %vm2247, %v2212, 0
        %v2264 = vsel %vm2247, %v2213, 0
        %v2267 = vsel %vm2247, %v2214, 0
        %v2270 = vsel %vm2247, %v2215, 0
        %v2273 = vsel %vm2247, %v2216, 0
        %v2276 = vsel %vm2247, %v2217, 0
        %v2279 = vsel %vm2247, %v2218, 0
        %v2282 = vsel %vm2247, %v2219, 0
        %v2285 = vsel %vm2247, %v2220, 0
        %v2288 = vsel %vm2247, %v2221, 0
        %v2291 = vsel %vm2247, %v2222, 0
        %v2294 = vsel %vm2247, %v2223, 0
        %2296 = vmatprep.subr.bf16.mxu0 0
        %2297 = vmatpush1.bf16.msra.mxu0 %v2243
        %2298 = vmatprep.subr.bf16.mxu0 0
        %2299 = vmatpush1.bf16.msra.mxu0 %v2244
        %2300 = vmatprep.subr.bf16.mxu0 0
        %2301 = vmatpush1.bf16.msra.mxu0 0
        %2302 = vmatprep.subr.bf16.mxu0 0
        %2303 = vmatpush1.bf16.msra.mxu0 0
        %2304 = vmatprep.subr.bf16.mxu0 0
        %2305 = vmatpush1.bf16.msra.mxu0 0
        %2306 = vmatprep.subr.bf16.mxu0 0
        %2307 = vmatpush1.bf16.msra.mxu0 0
        %2308 = vmatprep.subr.bf16.mxu0 0
        %2309 = vmatpush1.bf16.msra.mxu0 0
        %2310 = vmatprep.subr.bf16.mxu0 0
        %2311 = vmatpush1.bf16.msra.mxu0 0
        %2312 = vmatprep.subr.bf16.mxu0 0
        %2313 = vmatpush1.bf16.msra.mxu0 0
        %2314 = vmatprep.subr.bf16.mxu0 0
        %2315 = vmatpush1.bf16.msra.mxu0 0
        %2316 = vmatprep.subr.bf16.mxu0 0
        %2317 = vmatpush1.bf16.msra.mxu0 0
        %2318 = vmatprep.subr.bf16.mxu0 0
        %2319 = vmatpush1.bf16.msra.mxu0 0
        %2320 = vmatprep.subr.bf16.mxu0 0
        %2321 = vmatpush1.bf16.msra.mxu0 0
        %2322 = vmatprep.subr.bf16.mxu0 0
        %2323 = vmatpush1.bf16.msra.mxu0 0
        %2324 = vmatprep.subr.bf16.mxu0 0
        %2325 = vmatpush1.bf16.msra.mxu0 0
        %2326 = vmatprep.subr.bf16.mxu0 0
        %2327 = vmatpush1.bf16.msra.mxu0 0
        %2328 = vmatprep.mubr.bf16.mxu0 0
        %2329 = vmatmul.mubr.bf16.gmra.mrb[0].mxu0 %v2249
        %v2330 = vpop.f32.mrb[0].mxu0
        %v2331 = vadd.f32 %v2233, %v2330
        %v2332 = vpop.f32.mrb[0].mxu0
        %v2333 = vpop.f32.mrb[0].mxu0
        %v2334 = vadd.f32 %v2233, %v2333
        %v2335 = vpop.f32.mrb[0].mxu0
        %2336 = vmatprep.mubr.bf16.mxu0 0
        %2337 = vmatmul.mubr.bf16.gmra.mrb[0].mxu0 %v2252
        %v2338 = vpop.f32.mrb[0].mxu0
        %v2339 = vadd.f32 %v2233, %v2338
        %v2340 = vpop.f32.mrb[0].mxu0
        %v2341 = vpop.f32.mrb[0].mxu0
        %v2342 = vadd.f32 %v2233, %v2341
        %v2343 = vpop.f32.mrb[0].mxu0
        %2344 = vmatprep.mubr.bf16.mxu0 0
        %2345 = vmatmul.mubr.bf16.gmra.mrb[0].mxu0 %v2255
        %v2346 = vpop.f32.mrb[0].mxu0
        %v2347 = vadd.f32 %v2233, %v2346
        %v2348 = vpop.f32.mrb[0].mxu0
        %v2349 = vpop.f32.mrb[0].mxu0
        %v2350 = vadd.f32 %v2233, %v2349
        %v2351 = vpop.f32.mrb[0].mxu0
        %2352 = vmatprep.mubr.bf16.mxu0 0
        %2353 = vmatmul.mubr.bf16.gmra.mrb[0].mxu0 %v2258
        %v2354 = vpop.f32.mrb[0].mxu0
        %v2355 = vadd.f32 %v2233, %v2354
        %v2356 = vpop.f32.mrb[0].mxu0
        %v2357 = vpop.f32.mrb[0].mxu0
        %v2358 = vadd.f32 %v2233, %v2357
        %v2359 = vpop.f32.mrb[0].mxu0
        %2360 = vmatprep.mubr.bf16.mxu0 0
        %2361 = vmatmul.mubr.bf16.gmra.mrb[0].mxu0 %v2261
        %v2362 = vpop.f32.mrb[0].mxu0
        %v2363 = vadd.f32 %v2233, %v2362
        %v2364 = vpop.f32.mrb[0].mxu0
        %v2365 = vpop.f32.mrb[0].mxu0
        %v2366 = vadd.f32 %v2233, %v2365
        %v2367 = vpop.f32.mrb[0].mxu0
        %2368 = vmatprep.mubr.bf16.mxu0 0
        %2369 = vmatmul.mubr.bf16.gmra.mrb[0].mxu0 %v2264
        %v2370 = vpop.f32.mrb[0].mxu0
        %v2371 = vadd.f32 %v2233, %v2370
        %v2372 = vpop.f32.mrb[0].mxu0
        %v2373 = vpop.f32.mrb[0].mxu0
        %v2374 = vadd.f32 %v2233, %v2373
        %v2375 = vpop.f32.mrb[0].mxu0
        %2376 = vmatprep.mubr.bf16.mxu0 0
        %2377 = vmatmul.mubr.bf16.gmra.mrb[0].mxu0 %v2267
        %v2378 = vpop.f32.mrb[0].mxu0
        %v2379 = vadd.f32 %v2233, %v2378
        %v2380 = vpop.f32.mrb[0].mxu0
        %v2381 = vpop.f32.mrb[0].mxu0
        %v2382 = vadd.f32 %v2233, %v2381
        %v2383 = vpop.f32.mrb[0].mxu0
        %2384 = vmatprep.mubr.bf16.mxu0 0
        %2385 = vmatmul.mubr.bf16.gmra.mrb[0].mxu0 %v2270
        %v2386 = vpop.f32.mrb[0].mxu0
        %v2387 = vadd.f32 %v2233, %v2386
        %v2388 = vpop.f32.mrb[0].mxu0
        %v2389 = vpop.f32.mrb[0].mxu0
        %v2390 = vadd.f32 %v2233, %v2389
        %v2391 = vpop.f32.mrb[0].mxu0
        %2392 = vmatprep.mubr.bf16.mxu0 0
        %2393 = vmatmul.mubr.bf16.gmra.mrb[0].mxu0 %v2273
        %v2394 = vpop.f32.mrb[0].mxu0
        %v2395 = vadd.f32 %v2233, %v2394
        %v2396 = vpop.f32.mrb[0].mxu0
        %v2397 = vpop.f32.mrb[0].mxu0
        %v2398 = vadd.f32 %v2233, %v2397
        %v2399 = vpop.f32.mrb[0].mxu0
        %2400 = vmatprep.mubr.bf16.mxu0 0
        %2401 = vmatmul.mubr.bf16.gmra.mrb[0].mxu0 %v2276
        %v2402 = vpop.f32.mrb[0].mxu0
        %v2403 = vadd.f32 %v2233, %v2402
        %v2404 = vpop.f32.mrb[0].mxu0
        %v2405 = vpop.f32.mrb[0].mxu0
        %v2406 = vadd.f32 %v2233, %v2405
        %v2407 = vpop.f32.mrb[0].mxu0
        %2408 = vmatprep.mubr.bf16.mxu0 0
        %2409 = vmatmul.mubr.bf16.gmra.mrb[0].mxu0 %v2279
        %v2410 = vpop.f32.mrb[0].mxu0
        %v2411 = vadd.f32 %v2233, %v2410
        %v2412 = vpop.f32.mrb[0].mxu0
        %v2413 = vpop.f32.mrb[0].mxu0
        %v2414 = vadd.f32 %v2233, %v2413
        %v2415 = vpop.f32.mrb[0].mxu0
        %2416 = vmatprep.mubr.bf16.mxu0 0
        %2417 = vmatmul.mubr.bf16.gmra.mrb[0].mxu0 %v2282
        %v2418 = vpop.f32.mrb[0].mxu0
        %v2419 = vadd.f32 %v2233, %v2418
        %v2420 = vpop.f32.mrb[0].mxu0
        %v2421 = vpop.f32.mrb[0].mxu0
        %v2422 = vadd.f32 %v2233, %v2421
        %v2423 = vpop.f32.mrb[0].mxu0
        %2424 = vmatprep.mubr.bf16.mxu0 0
        %2425 = vmatmul.mubr.bf16.gmra.mrb[0].mxu0 %v2285
        %v2426 = vpop.f32.mrb[0].mxu0
        %v2427 = vadd.f32 %v2233, %v2426
        %v2428 = vpop.f32.mrb[0].mxu0
        %v2429 = vpop.f32.mrb[0].mxu0
        %v2430 = vadd.f32 %v2233, %v2429
        %v2431 = vpop.f32.mrb[0].mxu0
        %2432 = vmatprep.mubr.bf16.mxu0 0
        %2433 = vmatmul.mubr.bf16.gmra.mrb[0].mxu0 %v2288
        %v2434 = vpop.f32.mrb[0].mxu0
        %v2435 = vadd.f32 %v2233, %v2434
        %v2436 = vpop.f32.mrb[0].mxu0
        %v2437 = vpop.f32.mrb[0].mxu0
        %v2438 = vadd.f32 %v2233, %v2437
        %v2439 = vpop.f32.mrb[0].mxu0
        %2440 = vmatprep.mubr.bf16.mxu0 0
        %2441 = vmatmul.mubr.bf16.gmra.mrb[0].mxu0 %v2291
        %v2442 = vpop.f32.mrb[0].mxu0
        %v2443 = vadd.f32 %v2233, %v2442
        %v2444 = vpop.f32.mrb[0].mxu0
        %v2445 = vpop.f32.mrb[0].mxu0
        %v2446 = vadd.f32 %v2233, %v2445
        %v2447 = vpop.f32.mrb[0].mxu0
        %2448 = vmatprep.mubr.bf16.mxu0 0
        %2449 = vmatmul.mubr.bf16.gmra.mrb[0].mxu0 %v2294
        %v2450 = vpop.f32.mrb[0].mxu0
        %v2451 = vadd.f32 %v2233, %v2450
        %v2452 = vpop.f32.mrb[0].mxu0
        %v2453 = vpop.f32.mrb[0].mxu0
        %v2454 = vadd.f32 %v2233, %v2453
        %v2455 = vpop.f32.mrb[0].mxu0
        %2456 = vdwg.mxu0
        %v2457 = vmax.f32 %v2331, 0.0
        %v2458 = vmax.f32 %v2334, 0.0
        %v2459 = vmax.f32 %v2339, 0.0
        %v2460 = vmax.f32 %v2342, 0.0
        %v2461 = vmax.f32 %v2347, 0.0
        %v2462 = vmax.f32 %v2350, 0.0
        %v2463 = vmax.f32 %v2355, 0.0
        %v2464 = vmax.f32 %v2358, 0.0
        %v2465 = vmax.f32 %v2363, 0.0
        %v2466 = vmax.f32 %v2366, 0.0
        %v2467 = vmax.f32 %v2371, 0.0
        %v2468 = vmax.f32 %v2374, 0.0
        %v2469 = vmax.f32 %v2379, 0.0
        %v2470 = vmax.f32 %v2382, 0.0
        %v2471 = vmax.f32 %v2387, 0.0
        %v2472 = vmax.f32 %v2390, 0.0
        %v2473 = vmax.f32 %v2395, 0.0
        %v2474 = vmax.f32 %v2398, 0.0
        %v2475 = vmax.f32 %v2403, 0.0
        %v2476 = vmax.f32 %v2406, 0.0
        %v2477 = vmax.f32 %v2411, 0.0
        %v2478 = vmax.f32 %v2414, 0.0
        %v2479 = vmax.f32 %v2419, 0.0
        %v2480 = vmax.f32 %v2422, 0.0
        %v2481 = vmax.f32 %v2427, 0.0
        %v2482 = vmax.f32 %v2430, 0.0
        %v2483 = vmax.f32 %v2435, 0.0
        %v2484 = vmax.f32 %v2438, 0.0
        %v2485 = vmax.f32 %v2443, 0.0
        %v2486 = vmax.f32 %v2446, 0.0
        %v2487 = vmax.f32 %v2451, 0.0
        %v2488 = vmax.f32 %v2454, 0.0
        %v2489 = vmax.f32 %v2457, %v2465
        %v2490 = vmax.f32 %v2458, %v2466
        %v2491 = vmax.f32 %v2459, %v2467
        %v2492 = vmax.f32 %v2460, %v2468
        %v2493 = vmax.f32 %v2461, %v2469
        %v2494 = vmax.f32 %v2462, %v2470
        %v2495 = vmax.f32 %v2463, %v2471
        %v2496 = vmax.f32 %v2464, %v2472
        %v2497 = vmax.f32 %v2489, %v2473
        %v2498 = vmax.f32 %v2490, %v2474
        %v2499 = vmax.f32 %v2491, %v2475
        %v2500 = vmax.f32 %v2492, %v2476
        %v2501 = vmax.f32 %v2493, %v2477
        %v2502 = vmax.f32 %v2494, %v2478
        %v2503 = vmax.f32 %v2495, %v2479
        %v2504 = vmax.f32 %v2496, %v2480
        %v2505 = vmax.f32 %v2497, %v2481
        %v2506 = vmax.f32 %v2498, %v2482
        %v2507 = vmax.f32 %v2499, %v2483
        %v2508 = vmax.f32 %v2500, %v2484
        %v2509 = vmax.f32 %v2501, %v2485
        %v2510 = vmax.f32 %v2502, %v2486
        %v2511 = vmax.f32 %v2503, %v2487
        %v2512 = vmax.f32 %v2504, %v2488
        %v2513 = vld [vmem:[%s9] sm:$0xf]
        %v2514 = vpack.c.bf16 %v2506, %v2505
        %v2515 = vpack.c.bf16 %v2508, %v2507
        %v2516 = vpack.c.bf16 %v2510, %v2509
        %v2517 = vpack.c.bf16 %v2512, %v2511
        %v2518 = vld [vmem:[%s10] sm:$0xf]
        %v2519 = vld [vmem:[%s10 + $0x4] sm:$0xf]
        %v2520 = vld [vmem:[%s10 + $0x8] sm:$0xf]
        %v2521 = vld [vmem:[%s10 + $0xc] sm:$0xf]
        %v2526 = vunpack.c.l.b16 %v2518
        %v2527 = vunpack.c.l.b16 %v2519
        %v2528 = vunpack.c.l.b16 %v2520
        %v2529 = vunpack.c.l.b16 %v2521
        %v2530 = vpack.c.b16 %v2527, %v2526
        %v2531 = vpack.c.b16 %v2529, %v2528
        %v2535 = vsel %vm2247, %v2514, 0
        %v2538 = vsel %vm2247, %v2515, 0
        %v2541 = vsel %vm2247, %v2516, 0
        %v2544 = vsel %vm2247, %v2517, 0
        %2546 = vmatprep.subr.bf16.mxu0 0
        %2547 = vmatpush1.bf16.msra.mxu0 %v2530
        %2548 = vmatprep.subr.bf16.mxu0 0
        %2549 = vmatpush1.bf16.msra.mxu0 %v2531
        %2550 = vmatprep.subr.bf16.mxu0 0
        %2551 = vmatpush1.bf16.msra.mxu0 0
        %2552 = vmatprep.subr.bf16.mxu0 0
        %2553 = vmatpush1.bf16.msra.mxu0 0
        %2554 = vmatprep.subr.bf16.mxu0 0
        %2555 = vmatpush1.bf16.msra.mxu0 0
        %2556 = vmatprep.subr.bf16.mxu0 0
        %2557 = vmatpush1.bf16.msra.mxu0 0
        %2558 = vmatprep.subr.bf16.mxu0 0
        %2559 = vmatpush1.bf16.msra.mxu0 0
        %2560 = vmatprep.subr.bf16.mxu0 0
        %2561 = vmatpush1.bf16.msra.mxu0 0
        %2562 = vmatprep.subr.bf16.mxu0 0
        %2563 = vmatpush1.bf16.msra.mxu0 0
        %2564 = vmatprep.subr.bf16.mxu0 0
        %2565 = vmatpush1.bf16.msra.mxu0 0
        %2566 = vmatprep.subr.bf16.mxu0 0
        %2567 = vmatpush1.bf16.msra.mxu0 0
        %2568 = vmatprep.subr.bf16.mxu0 0
        %2569 = vmatpush1.bf16.msra.mxu0 0
        %2570 = vmatprep.subr.bf16.mxu0 0
        %2571 = vmatpush1.bf16.msra.mxu0 0
        %2572 = vmatprep.subr.bf16.mxu0 0
        %2573 = vmatpush1.bf16.msra.mxu0 0
        %2574 = vmatprep.subr.bf16.mxu0 0
        %2575 = vmatpush1.bf16.msra.mxu0 0
        %2576 = vmatprep.subr.bf16.mxu0 0
        %2577 = vmatpush1.bf16.msra.mxu0 0
        %2578 = vmatprep.mubr.bf16.mxu0 0
        %2579 = vmatmul.mubr.bf16.gmra.mrb[0].mxu0 %v2535
        %v2580 = vpop.f32.mrb[0].mxu0
        %v2581 = vadd.f32 0.0, %v2580
        %v2582 = vpop.f32.mrb[0].mxu0
        %v2583 = vpop.f32.mrb[0].mxu0
        %v2584 = vadd.f32 0.0, %v2583
        %v2585 = vpop.f32.mrb[0].mxu0
        %2586 = vmatprep.mubr.bf16.mxu0 0
        %2587 = vmatmul.mubr.bf16.gmra.mrb[0].mxu0 %v2538
        %v2588 = vpop.f32.mrb[0].mxu0
        %v2589 = vadd.f32 0.0, %v2588
        %v2590 = vpop.f32.mrb[0].mxu0
        %v2591 = vpop.f32.mrb[0].mxu0
        %v2592 = vadd.f32 0.0, %v2591
        %v2593 = vpop.f32.mrb[0].mxu0
        %2594 = vmatprep.mubr.bf16.mxu0 0
        %2595 = vmatmul.mubr.bf16.gmra.mrb[0].mxu0 %v2541
        %v2596 = vpop.f32.mrb[0].mxu0
        %v2597 = vadd.f32 0.0, %v2596
        %v2598 = vpop.f32.mrb[0].mxu0
        %v2599 = vpop.f32.mrb[0].mxu0
        %v2600 = vadd.f32 0.0, %v2599
        %v2601 = vpop.f32.mrb[0].mxu0
        %2602 = vmatprep.mubr.bf16.mxu0 0
        %2603 = vmatmul.mubr.bf16.gmra.mrb[0].mxu0 %v2544
        %v2604 = vpop.f32.mrb[0].mxu0
        %v2605 = vadd.f32 0.0, %v2604
        %v2606 = vpop.f32.mrb[0].mxu0
        %v2607 = vpop.f32.mrb[0].mxu0
        %v2608 = vadd.f32 0.0, %v2607
        %v2609 = vpop.f32.mrb[0].mxu0
        %2610 = vdwg.mxu0
        %v2612 = vsel %vm552, %v2513, 0
        %2614 = vmatprep.subr.bf16.mxu0 0
        %2615 = vmatpush1.bf16.msra.mxu0 %v2612
        %2616 = vmatprep.subr.bf16.mxu0 0
        %2617 = vmatpush1.bf16.msra.mxu0 0
        %2618 = vmatprep.subr.bf16.mxu0 0
        %2619 = vmatpush1.bf16.msra.mxu0 0
        %2620 = vmatprep.subr.bf16.mxu0 0
        %2621 = vmatpush1.bf16.msra.mxu0 0
        %2622 = vmatprep.subr.bf16.mxu0 0
        %2623 = vmatpush1.bf16.msra.mxu0 0
        %2624 = vmatprep.subr.bf16.mxu0 0
        %2625 = vmatpush1.bf16.msra.mxu0 0
        %2626 = vmatprep.subr.bf16.mxu0 0
        %2627 = vmatpush1.bf16.msra.mxu0 0
        %2628 = vmatprep.subr.bf16.mxu0 0
        %2629 = vmatpush1.bf16.msra.mxu0 0
        %2630 = vmatprep.subr.bf16.mxu0 0
        %2631 = vmatpush1.bf16.msra.mxu0 0
        %2632 = vmatprep.subr.bf16.mxu0 0
        %2633 = vmatpush1.bf16.msra.mxu0 0
        %2634 = vmatprep.subr.bf16.mxu0 0
        %2635 = vmatpush1.bf16.msra.mxu0 0
        %2636 = vmatprep.subr.bf16.mxu0 0
        %2637 = vmatpush1.bf16.msra.mxu0 0
        %2638 = vmatprep.subr.bf16.mxu0 0
        %2639 = vmatpush1.bf16.msra.mxu0 0
        %2640 = vmatprep.subr.bf16.mxu0 0
        %2641 = vmatpush1.bf16.msra.mxu0 0
        %2642 = vmatprep.subr.bf16.mxu0 0
        %2643 = vmatpush1.bf16.msra.mxu0 0
        %2644 = vmatprep.subr.bf16.mxu0 0
        %2645 = vmatpush1.bf16.msra.mxu0 0
        %2646 = vmatprep.mubr.bf16.mxu0 0
        %2647 = vmatmul.mubr.bf16.gmra.mrb[0].mxu0 %v541
        %v2648 = vpop.f32.mrb[0].mxu0
        %v2649 = vadd.f32 %v2581, %v2648
        %v2650 = vpop.f32.mrb[0].mxu0
        %v2651 = vpop.f32.mrb[0].mxu0
        %v2652 = vadd.f32 %v2584, %v2651
        %v2653 = vpop.f32.mrb[0].mxu0
        %2654 = vmatprep.mubr.bf16.mxu0 0
        %2655 = vmatmul.mubr.bf16.gmra.mrb[0].mxu0 %v544
        %v2656 = vpop.f32.mrb[0].mxu0
        %v2657 = vadd.f32 %v2589, %v2656
        %v2658 = vpop.f32.mrb[0].mxu0
        %v2659 = vpop.f32.mrb[0].mxu0
        %v2660 = vadd.f32 %v2592, %v2659
        %v2661 = vpop.f32.mrb[0].mxu0
        %2662 = vmatprep.mubr.bf16.mxu0 0
        %2663 = vmatmul.mubr.bf16.gmra.mrb[0].mxu0 %v547
        %v2664 = vpop.f32.mrb[0].mxu0
        %v2665 = vadd.f32 %v2597, %v2664
        %v2666 = vpop.f32.mrb[0].mxu0
        %v2667 = vpop.f32.mrb[0].mxu0
        %v2668 = vadd.f32 %v2600, %v2667
        %v2669 = vpop.f32.mrb[0].mxu0
        %2670 = vmatprep.mubr.bf16.mxu0 0
        %2671 = vmatmul.mubr.bf16.gmra.mrb[0].mxu0 %v550
        %v2672 = vpop.f32.mrb[0].mxu0
        %v2673 = vadd.f32 %v2605, %v2672
        %v2674 = vpop.f32.mrb[0].mxu0
        %v2675 = vpop.f32.mrb[0].mxu0
        %v2676 = vadd.f32 %v2608, %v2675
        %v2677 = vpop.f32.mrb[0].mxu0
        %2678 = vdwg.mxu0
        %v2679 = vld [vmem:[%s11] sm:$0x1]
        %v2681 = vlaneseq
        %v2682 = vshrl.u32 %v2681, 7
        %v2683 = vsub.s32 0, %v2682
        %v2684 = vrot.slane %v2679, %v2683
        %v2686 = vadd.f32 %v2649, %v2684
        %v2687 = vadd.f32 %v2652, %v2684
        %v2688 = vadd.f32 %v2657, %v2684
        %v2689 = vadd.f32 %v2660, %v2684
        %v2690 = vadd.f32 %v2665, %v2684
        %v2691 = vadd.f32 %v2668, %v2684
        %v2692 = vadd.f32 %v2673, %v2684
        %v2693 = vadd.f32 %v2676, %v2684
        %2694 = vst [vmem:[%s421] sm:$0xff] %v2686
        %2695 = vst [vmem:[%s421 + $0x8] sm:$0xff] %v2687
        %2696 = vst [vmem:[%s421 + $0x10] sm:$0xff] %v2688
        %2697 = vst [vmem:[%s421 + $0x18] sm:$0xff] %v2689
        %2698 = vst [vmem:[%s421 + $0x20] sm:$0xff] %v2690
        %2699 = vst [vmem:[%s421 + $0x28] sm:$0xff] %v2691
        %2700 = vst [vmem:[%s421 + $0x30] sm:$0xff] %v2692
        %2701 = vst [vmem:[%s421 + $0x38] sm:$0xff] %v2693
        %s2702 = sand.u32 %s296, 1
        %s2703 = scalar_lea.sflag [#allocation3], %s2702
        %s2704 = sand.u32 %s296, 1
        %s2705 = smul.addr %s2704, 64
        %s2706 = scalar_lea.vmem [#allocation2], %s2705
        // Predicated region
        $region69: #{tpu_custom_call.1} parent=67 // pred_check
          %p2707 = pneg %p306
        $region70: #{tpu_custom_call.1} parent=67 // pred_check_branch
          %2709 = sbr.rel (%p2707) target = $region72
        $region71: #{tpu_custom_call.1} parent=67 // pred_region
          %s2710 = smul.u32 8, %s26
          %s2712 = ssub.s32 1024, 1024
          %2713 = vsyncadd %s2703, %s2712
          %s2714 = smul.addr %s2710, 128
          %s2715 = scalar_lea.hbm %s12, %s2714
          %s2716 = sshll.u32 %s2706, 4
          %s2717 = int_to_ptr.vmem [resolvable:$true] %s2716
          %2722 = dma.vmem_to_hbm [thread:$0]  %s2717, 1024, %s2715, %s2703, 128, 128, 8
        $region72: #{tpu_custom_call.1} parent=67 // pred_fallthru
          _
      $region68: #{tpu_custom_call.1} parent=5 // pred_fallthru
        _
      %p2723 = scmp.le.s32.totalorder 2, %s21
      // Predicated region
      $region73: #{tpu_custom_call.1} parent=5 // pred_check
        %p2724 = pneg %p2723
      $region74: #{tpu_custom_call.1} parent=5 // pred_check_branch
        %2726 = sbr.rel (%p2724) target = $region76
      $region75: #{tpu_custom_call.1} parent=5 // pred_region
        %s2727 = ssub.s32 %s21, 2
        // Predicated region
        $region77: #{tpu_custom_call.1} parent=75 // pred_check
          %p2728 = pneg %p312
        $region78: #{tpu_custom_call.1} parent=75 // pred_check_branch
          %2730 = sbr.rel (%p2728) target = $region80
        $region79: #{tpu_custom_call.1} parent=75 // pred_region
          %s2731 = sand.u32 %s297, 1
          %s2732 = scalar_lea.sflag [#allocation3], %s2731
          %s2733 = sand.u32 %s297, 1
          %s2734 = smul.addr %s2733, 64
          %s2735 = scalar_lea.vmem [#allocation2], %s2734
          %2736 = dma.done %s2732, 1024
        $region80: #{tpu_custom_call.1} parent=75 // pred_fallthru
          _
      $region76: #{tpu_custom_call.1} parent=5 // pred_fallthru
        _
    $region6: #{tpu_custom_call.1} parent=1 // loop_footer
      %s25 = sadd.s32 1, %s21
    $region7: #{tpu_custom_call.1} parent=1 // loop_footer_branch
      %20 = sbr.rel target = $region3
    $region8: #{tpu_custom_call.1} parent=1 // loop_exit
      _
    %2737 = vsyncpa [#allocation3], 1
    %s2738 = scalar_lea.sflag [#allocation3], 1
    %2739 = vsyncpa %s2738, 1

// kernel: tpu_custom_call.1
$region0: #{tpu_custom_call.1}
  #allocation0 [shape = 'u32[]', space=smem, size = 0x4, offset = 0x4, fixed_abs, tag = 'smem constant byte address 0x4 - core index']
  #allocation1 [shape = 'u32[144,128]{1,0:T(1,128)}', space=vmem, size = 0x12000, scoped, tag = 'internal scratch']
  %s0 = inlined_call_operand.vmem [shape: bf16[512,8], index: 0, kind: input, shape index: {}]
  %s1 = inlined_call_operand.vmem [shape: bf16[8,256,4], index: 1, kind: input, shape index: {}]
  %s2 = inlined_call_operand.vmem [shape: s32[8,256,1], index: 2, kind: input, shape index: {}]
  %s3 = inlined_call_operand.vmem [shape: bf16[8,32], index: 3, kind: input, shape index: {}]
  %s4 = inlined_call_operand.vmem [shape: f32[1,32], index: 4, kind: input, shape index: {}]
  %s5 = inlined_call_operand.vmem [shape: bf16[8,32], index: 5, kind: input, shape index: {}]
  %s6 = inlined_call_operand.vmem [shape: bf16[4,32], index: 6, kind: input, shape index: {}]
  %s7 = inlined_call_operand.vmem [shape: bf16[32,32], index: 7, kind: input, shape index: {}]
  %s8 = inlined_call_operand.vmem [shape: f32[1,32], index: 8, kind: input, shape index: {}]
  %s9 = inlined_call_operand.vmem [shape: bf16[8,128], index: 9, kind: input, shape index: {}]
  %s10 = inlined_call_operand.vmem [shape: bf16[32,128], index: 10, kind: input, shape index: {}]
  %s11 = inlined_call_operand.vmem [shape: f32[1,128], index: 11, kind: input, shape index: {}]
  %s12 = inlined_call_operand.hbm [shape: f32[512,128], index: 12, kind: output, shape index: {}]
  %s13 = sld [smem:[#allocation0]]
  $region81: #{tpu_custom_call.1} parent=0
    _
  %s15 = ssub.s32 1, %s13
  %s16 = scalar_select 0, %s15, %s13
  $region1: #{tpu_custom_call.1} parent=0
    #allocation2 [shape = 'u8[65536]{0}', space=vmem, size = 0x10000, scoped, tag = 'output window, operand 0']
    #allocation3 [shape = 's32[2]{0}', space=sflag, size = 0x8, scoped, tag = 'scoped memory for tpu_custom_call.1']
    %17 = vsyncpa [#allocation3], 0
    %s18 = scalar_lea.sflag [#allocation3], 1
    %19 = vsyncpa %s18, 0
    loop: start=0, step=1, limit=10
    $region2: #{tpu_custom_call.1} parent=1 // loop_pre_header
      _
    $region3: #{tpu_custom_call.1} parent=1 // loop_header
      %s21 = sphi 0, %s25
      %p22 = scmp.ge.s32.totalorder %s21, 10
      %s29 = sphi 0, %s29
      %s31 = sphi 0, %s29
      %s32 = sphi 0, %s31
      %s46 = sphi 0, %s32
      %s52 = sphi 0, %s54
      %s55 = sphi 0, %s52
      %s56 = sphi 0, %s55
      %s72 = sphi 0, %s56
      %s78 = sphi 0, %s80
      %s81 = sphi 0, %s78
      %s82 = sphi 0, %s81
      %s98 = sphi 0, %s82
      %s102 = sphi 0, %s102
      %s104 = sphi 0, %s102
      %s105 = sphi 0, %s104
      %s119 = sphi 0, %s105
      %s123 = sphi 0, %s123
      %s125 = sphi 0, %s123
      %s126 = sphi 0, %s125
      %s140 = sphi 0, %s126
      %s144 = sphi 0, %s144
      %s146 = sphi 0, %s144
      %s147 = sphi 0, %s146
      %s161 = sphi 0, %s147
      %s165 = sphi 0, %s165
      %s167 = sphi 0, %s165
      %s168 = sphi 0, %s167
      %s182 = sphi 0, %s168
      %s186 = sphi 0, %s186
      %s188 = sphi 0, %s186
      %s189 = sphi 0, %s188
      %s203 = sphi 0, %s189
      %s207 = sphi 0, %s207
      %s209 = sphi 0, %s207
      %s210 = sphi 0, %s209
      %s224 = sphi 0, %s210
      %s228 = sphi 0, %s228
      %s230 = sphi 0, %s228
      %s231 = sphi 0, %s230
      %s245 = sphi 0, %s231
      %s249 = sphi 0, %s249
      %s251 = sphi 0, %s249
      %s252 = sphi 0, %s251
      %s266 = sphi 0, %s252
      %s270 = sphi 0, %s270
      %s272 = sphi 0, %s270
      %s273 = sphi 0, %s272
      %s287 = sphi 0, %s273
      %s293 = sphi 0, %s295
      %s296 = sphi 0, %s293
      %s297 = sphi 0, %s296
      %s313 = sphi 0, %s297
    $region4: #{tpu_custom_call.1} parent=1 // loop_header_branch
      %24 = sbr.rel (%p22) target = $region8
    $region5: #{tpu_custom_call.1} parent=1 // loop_body
      %s26 = ssub.s32 %s21, 1
      %s27 = ssub.s32 %s21, 2
      %s28 = sadd.s32 %s21, 1
      %s30 = sadd.s32 %s29, 1
      %p33 = scmp.eq.s32.totalorder %s21, 7
      %p34 = scmp.ne.s32.totalorder %s29, %s31
      %p35 = scmp.eq.s32.totalorder %s21, 0
      %p36 = por %p34, %p35
      %p37 = scmp.ne.s32.totalorder %s29, %s31
      %p38 = scmp.eq.s32.totalorder %s26, 7
      %p39 = por %p37, %p38
      %p40 = scmp.ne.s32.totalorder %s31, %s32
      %p41 = scmp.eq.s32.totalorder %s26, 0
      %p42 = por %p40, %p41
      %p43 = scmp.ne.s32.totalorder %s31, %s32
      %p44 = scmp.eq.s32.totalorder %s27, 7
      %p45 = por %p43, %p44
      %p47 = scmp.ne.s32.totalorder %s32, %s46
      %p48 = scmp.eq.s32.totalorder %s27, 0
      %p49 = por %p47, %p48
      %s50 = ssub.s32 %s21, %s28
      %p51 = scmp.eq.s32.totalorder %s50, 0
      %s53 = sadd.s32 %s52, 1
      %s54 = scalar_select %p51, %s52, %s53
      %p57 = pneg %p51
      %p58 = scmp.eq.s32.totalorder %s21, 7
      %p59 = por %p57, %p58
      %p60 = scmp.ne.s32.totalorder %s52, %s55
      %p61 = scmp.eq.s32.totalorder %s21, 0
      %p62 = por %p60, %p61
      %p63 = scmp.ne.s32.totalorder %s52, %s55
      %p64 = scmp.eq.s32.totalorder %s26, 7
      %p65 = por %p63, %p64
      %p66 = scmp.ne.s32.totalorder %s55, %s56
      %p67 = scmp.eq.s32.totalorder %s26, 0
      %p68 = por %p66, %p67
      %p69 = scmp.ne.s32.totalorder %s55, %s56
      %p70 = scmp.eq.s32.totalorder %s27, 7
      %p71 = por %p69, %p70
      %p73 = scmp.ne.s32.totalorder %s56, %s72
      %p74 = scmp.eq.s32.totalorder %s27, 0
      %p75 = por %p73, %p74
      %s76 = ssub.s32 %s21, %s28
      %p77 = scmp.eq.s32.totalorder %s76, 0
      %s79 = sadd.s32 %s78, 1
      %s80 = scalar_select %p77, %s78, %s79
      %p83 = pneg %p77
      %p84 = scmp.eq.s32.totalorder %s21, 7
      %p85 = por %p83, %p84
      %p86 = scmp.ne.s32.totalorder %s78, %s81
      %p87 = scmp.eq.s32.totalorder %s21, 0
      %p88 = por %p86, %p87
      %p89 = scmp.ne.s32.totalorder %s78, %s81
      %p90 = scmp.eq.s32.totalorder %s26, 7
      %p91 = por %p89, %p90
      %p92 = scmp.ne.s32.totalorder %s81, %s82
      %p93 = scmp.eq.s32.totalorder %s26, 0
      %p94 = por %p92, %p93
      %p95 = scmp.ne.s32.totalorder %s81, %s82
      %p96 = scmp.eq.s32.totalorder %s27, 7
      %p97 = por %p95, %p96
      %p99 = scmp.ne.s32.totalorder %s82, %s98
      %p100 = scmp.eq.s32.totalorder %s27, 0
      %p101 = por %p99, %p100
      %s103 = sadd.s32 %s102, 1
      %p106 = scmp.eq.s32.totalorder %s21, 7
      %p107 = scmp.ne.s32.totalorder %s102, %s104
      %p108 = scmp.eq.s32.totalorder %s21, 0
      %p109 = por %p107, %p108
      %p110 = scmp.ne.s32.totalorder %s102, %s104
      %p111 = scmp.eq.s32.totalorder %s26, 7
      %p112 = por %p110, %p111
      %p113 = scmp.ne.s32.totalorder %s104, %s105
      %p114 = scmp.eq.s32.totalorder %s26, 0
      %p115 = por %p113, %p114
      %p116 = scmp.ne.s32.totalorder %s104, %s105
      %p117 = scmp.eq.s32.totalorder %s27, 7
      %p118 = por %p116, %p117
      %p120 = scmp.ne.s32.totalorder %s105, %s119
      %p121 = scmp.eq.s32.totalorder %s27, 0
      %p122 = por %p120, %p121
      %s124 = sadd.s32 %s123, 1
      %p127 = scmp.eq.s32.totalorder %s21, 7
      %p128 = scmp.ne.s32.totalorder %s123, %s125
      %p129 = scmp.eq.s32.totalorder %s21, 0
      %p130 = por %p128, %p129
      %p131 = scmp.ne.s32.totalorder %s123, %s125
      %p132 = scmp.eq.s32.totalorder %s26, 7
      %p133 = por %p131, %p132
      %p134 = scmp.ne.s32.totalorder %s125, %s126
      %p135 = scmp.eq.s32.totalorder %s26, 0
      %p136 = por %p134, %p135
      %p137 = scmp.ne.s32.totalorder %s125, %s126
      %p138 = scmp.eq.s32.totalorder %s27, 7
      %p139 = por %p137, %p138
      %p141 = scmp.ne.s32.totalorder %s126, %s140
      %p142 = scmp.eq.s32.totalorder %s27, 0
      %p143 = por %p141, %p142
      %s145 = sadd.s32 %s144, 1
      %p148 = scmp.eq.s32.totalorder %s21, 7
      %p149 = scmp.ne.s32.totalorder %s144, %s146
      %p150 = scmp.eq.s32.totalorder %s21, 0
      %p151 = por %p149, %p150
      %p152 = scmp.ne.s32.totalorder %s144, %s146
      %p153 = scmp.eq.s32.totalorder %s26, 7
      %p154 = por %p152, %p153
      %p155 = scmp.ne.s32.totalorder %s146, %s147
      %p156 = scmp.eq.s32.totalorder %s26, 0
      %p157 = por %p155, %p156
      %p158 = scmp.ne.s32.totalorder %s146, %s147
      %p159 = scmp.eq.s32.totalorder %s27, 7
      %p160 = por %p158, %p159
      %p162 = scmp.ne.s32.totalorder %s147, %s161
      %p163 = scmp.eq.s32.totalorder %s27, 0
      %p164 = por %p162, %p163
      %s166 = sadd.s32 %s165, 1
      %p169 = scmp.eq.s32.totalorder %s21, 7
      %p170 = scmp.ne.s32.totalorder %s165, %s167
      %p171 = scmp.eq.s32.totalorder %s21, 0
      %p172 = por %p170, %p171
      %p173 = scmp.ne.s32.totalorder %s165, %s167
      %p174 = scmp.eq.s32.totalorder %s26, 7
      %p175 = por %p173, %p174
      %p176 = scmp.ne.s32.totalorder %s167, %s168
      %p177 = scmp.eq.s32.totalorder %s26, 0
      %p178 = por %p176, %p177
      %p179 = scmp.ne.s32.totalorder %s167, %s168
      %p180 = scmp.eq.s32.totalorder %s27, 7
      %p181 = por %p179, %p180
      %p183 = scmp.ne.s32.totalorder %s168, %s182
      %p184 = scmp.eq.s32.totalorder %s27, 0
      %p185 = por %p183, %p184
      %s187 = sadd.s32 %s186, 1
      %p190 = scmp.eq.s32.totalorder %s21, 7
      %p191 = scmp.ne.s32.totalorder %s186, %s188
      %p192 = scmp.eq.s32.totalorder %s21, 0
      %p193 = por %p191, %p192
      %p194 = scmp.ne.s32.totalorder %s186, %s188
      %p195 = scmp.eq.s32.totalorder %s26, 7
      %p196 = por %p194, %p195
      %p197 = scmp.ne.s32.totalorder %s188, %s189
      %p198 = scmp.eq.s32.totalorder %s26, 0
      %p199 = por %p197, %p198
      %p200 = scmp.ne.s32.totalorder %s188, %s189
      %p201 = scmp.eq.s32.totalorder %s27, 7
      %p202 = por %p200, %p201
      %p204 = scmp.ne.s32.totalorder %s189, %s203
      %p205 = scmp.eq.s32.totalorder %s27, 0
      %p206 = por %p204, %p205
      %s208 = sadd.s32 %s207, 1
      %p211 = scmp.eq.s32.totalorder %s21, 7
      %p212 = scmp.ne.s32.totalorder %s207, %s209
      %p213 = scmp.eq.s32.totalorder %s21, 0
      %p214 = por %p212, %p213
      %p215 = scmp.ne.s32.totalorder %s207, %s209
      %p216 = scmp.eq.s32.totalorder %s26, 7
      %p217 = por %p215, %p216
      %p218 = scmp.ne.s32.totalorder %s209, %s210
      %p219 = scmp.eq.s32.totalorder %s26, 0
      %p220 = por %p218, %p219
      %p221 = scmp.ne.s32.totalorder %s209, %s210
      %p222 = scmp.eq.s32.totalorder %s27, 7
      %p223 = por %p221, %p222
      %p225 = scmp.ne.s32.totalorder %s210, %s224
      %p226 = scmp.eq.s32.totalorder %s27, 0
      %p227 = por %p225, %p226
      %s229 = sadd.s32 %s228, 1
      %p232 = scmp.eq.s32.totalorder %s21, 7
      %p233 = scmp.ne.s32.totalorder %s228, %s230
      %p234 = scmp.eq.s32.totalorder %s21, 0
      %p235 = por %p233, %p234
      %p236 = scmp.ne.s32.totalorder %s228, %s230
      %p237 = scmp.eq.s32.totalorder %s26, 7
      %p238 = por %p236, %p237
      %p239 = scmp.ne.s32.totalorder %s230, %s231
      %p240 = scmp.eq.s32.totalorder %s26, 0
      %p241 = por %p239, %p240
      %p242 = scmp.ne.s32.totalorder %s230, %s231
      %p243 = scmp.eq.s32.totalorder %s27, 7
      %p244 = por %p242, %p243
      %p246 = scmp.ne.s32.totalorder %s231, %s245
      %p247 = scmp.eq.s32.totalorder %s27, 0
      %p248 = por %p246, %p247
      %s250 = sadd.s32 %s249, 1
      %p253 = scmp.eq.s32.totalorder %s21, 7
      %p254 = scmp.ne.s32.totalorder %s249, %s251
      %p255 = scmp.eq.s32.totalorder %s21, 0
      %p256 = por %p254, %p255
      %p257 = scmp.ne.s32.totalorder %s249, %s251
      %p258 = scmp.eq.s32.totalorder %s26, 7
      %p259 = por %p257, %p258
      %p260 = scmp.ne.s32.totalorder %s251, %s252
      %p261 = scmp.eq.s32.totalorder %s26, 0
      %p262 = por %p260, %p261
      %p263 = scmp.ne.s32.totalorder %s251, %s252
      %p264 = scmp.eq.s32.totalorder %s27, 7
      %p265 = por %p263, %p264
      %p267 = scmp.ne.s32.totalorder %s252, %s266
      %p268 = scmp.eq.s32.totalorder %s27, 0
      %p269 = por %p267, %p268
      %s271 = sadd.s32 %s270, 1
      %p274 = scmp.eq.s32.totalorder %s21, 7
      %p275 = scmp.ne.s32.totalorder %s270, %s272
      %p276 = scmp.eq.s32.totalorder %s21, 0
      %p277 = por %p275, %p276
      %p278 = scmp.ne.s32.totalorder %s270, %s272
      %p279 = scmp.eq.s32.totalorder %s26, 7
      %p280 = por %p278, %p279
      %p281 = scmp.ne.s32.totalorder %s272, %s273
      %p282 = scmp.eq.s32.totalorder %s26, 0
      %p283 = por %p281, %p282
      %p284 = scmp.ne.s32.totalorder %s272, %s273
      %p285 = scmp.eq.s32.totalorder %s27, 7
      %p286 = por %p284, %p285
      %p288 = scmp.ne.s32.totalorder %s273, %s287
      %p289 = scmp.eq.s32.totalorder %s27, 0
      %p290 = por %p288, %p289
      %s291 = ssub.s32 %s21, %s28
      %p292 = scmp.eq.s32.totalorder %s291, 0
      %s294 = sadd.s32 %s293, 1
      %s295 = scalar_select %p292, %s293, %s294
      %p298 = pneg %p292
      %p299 = scmp.eq.s32.totalorder %s21, 7
      %p300 = por %p298, %p299
      %p301 = scmp.ne.s32.totalorder %s293, %s296
      %p302 = scmp.eq.s32.totalorder %s21, 0
      %p303 = por %p301, %p302
      %p304 = scmp.ne.s32.totalorder %s293, %s296
      %p305 = scmp.eq.s32.totalorder %s26, 7
      %p306 = por %p304, %p305
      %p307 = scmp.ne.s32.totalorder %s296, %s297
      %p308 = scmp.eq.s32.totalorder %s26, 0
      %p309 = por %p307, %p308
      %p310 = scmp.ne.s32.totalorder %s296, %s297
      %p311 = scmp.eq.s32.totalorder %s27, 7
      %p312 = por %p310, %p311
      %p314 = scmp.ne.s32.totalorder %s297, %s313
      %p315 = scmp.eq.s32.totalorder %s27, 0
      %p316 = por %p314, %p315
      %p317 = scmp.le.s32.totalorder 1, %s21
      %p318 = scmp.lt.s32.totalorder %s21, 9
      %p319 = pnand %p317, %p318
      %p320 = pneg %p319
      // Predicated region
      $region9: #{tpu_custom_call.1} parent=5 // pred_check
        _
      $region10: #{tpu_custom_call.1} parent=5 // pred_check_branch
        %322 = sbr.rel (%p319) target = $region12
      $region11: #{tpu_custom_call.1} parent=5 // pred_region
        %s323 = ssub.s32 %s21, 1
        // Predicated region
        $region13: #{tpu_custom_call.1} parent=11 // pred_check
          %p324 = pneg %p42
        $region14: #{tpu_custom_call.1} parent=11 // pred_check_branch
          %326 = sbr.rel (%p324) target = $region16
        $region15: #{tpu_custom_call.1} parent=11 // pred_region
          _
        $region16: #{tpu_custom_call.1} parent=11 // pred_fallthru
          _
        // Predicated region
        $region17: #{tpu_custom_call.1} parent=11 // pred_check
          %p327 = pneg %p115
        $region18: #{tpu_custom_call.1} parent=11 // pred_check_branch
          %329 = sbr.rel (%p327) target = $region20
        $region19: #{tpu_custom_call.1} parent=11 // pred_region
          _
        $region20: #{tpu_custom_call.1} parent=11 // pred_fallthru
          _
        // Predicated region
        $region21: #{tpu_custom_call.1} parent=11 // pred_check
          %p330 = pneg %p136
        $region22: #{tpu_custom_call.1} parent=11 // pred_check_branch
          %332 = sbr.rel (%p330) target = $region24
        $region23: #{tpu_custom_call.1} parent=11 // pred_region
          _
        $region24: #{tpu_custom_call.1} parent=11 // pred_fallthru
          _
        // Predicated region
        $region25: #{tpu_custom_call.1} parent=11 // pred_check
          %p333 = pneg %p157
        $region26: #{tpu_custom_call.1} parent=11 // pred_check_branch
          %335 = sbr.rel (%p333) target = $region28
        $region27: #{tpu_custom_call.1} parent=11 // pred_region
          _
        $region28: #{tpu_custom_call.1} parent=11 // pred_fallthru
          _
        // Predicated region
        $region29: #{tpu_custom_call.1} parent=11 // pred_check
          %p336 = pneg %p178
        $region30: #{tpu_custom_call.1} parent=11 // pred_check_branch
          %338 = sbr.rel (%p336) target = $region32
        $region31: #{tpu_custom_call.1} parent=11 // pred_region
          _
        $region32: #{tpu_custom_call.1} parent=11 // pred_fallthru
          _
        // Predicated region
        $region33: #{tpu_custom_call.1} parent=11 // pred_check
          %p339 = pneg %p199
        $region34: #{tpu_custom_call.1} parent=11 // pred_check_branch
          %341 = sbr.rel (%p339) target = $region36
        $region35: #{tpu_custom_call.1} parent=11 // pred_region
          _
        $region36: #{tpu_custom_call.1} parent=11 // pred_fallthru
          _
        // Predicated region
        $region37: #{tpu_custom_call.1} parent=11 // pred_check
          %p342 = pneg %p220
        $region38: #{tpu_custom_call.1} parent=11 // pred_check_branch
          %344 = sbr.rel (%p342) target = $region40
        $region39: #{tpu_custom_call.1} parent=11 // pred_region
          _
        $region40: #{tpu_custom_call.1} parent=11 // pred_fallthru
          _
        // Predicated region
        $region41: #{tpu_custom_call.1} parent=11 // pred_check
          %p345 = pneg %p241
        $region42: #{tpu_custom_call.1} parent=11 // pred_check_branch
          %347 = sbr.rel (%p345) target = $region44
        $region43: #{tpu_custom_call.1} parent=11 // pred_region
          _
        $region44: #{tpu_custom_call.1} parent=11 // pred_fallthru
          _
        // Predicated region
        $region45: #{tpu_custom_call.1} parent=11 // pred_check
          %p348 = pneg %p262
        $region46: #{tpu_custom_call.1} parent=11 // pred_check_branch
          %350 = sbr.rel (%p348) target = $region48
        $region47: #{tpu_custom_call.1} parent=11 // pred_region
          _
        $region48: #{tpu_custom_call.1} parent=11 // pred_fallthru
          _
        // Predicated region
        $region49: #{tpu_custom_call.1} parent=11 // pred_check
          %p351 = pneg %p283
        $region50: #{tpu_custom_call.1} parent=11 // pred_check_branch
          %353 = sbr.rel (%p351) target = $region52
        $region51: #{tpu_custom_call.1} parent=11 // pred_region
          _
        $region52: #{tpu_custom_call.1} parent=11 // pred_fallthru
          _
      $region12: #{tpu_custom_call.1} parent=5 // pred_fallthru
        _
      %p354 = scmp.lt.s32.totalorder %s21, 8
      // Predicated region
      $region53: #{tpu_custom_call.1} parent=5 // pred_check
        %p355 = pneg %p354
      $region54: #{tpu_custom_call.1} parent=5 // pred_check_branch
        %357 = sbr.rel (%p355) target = $region56
      $region55: #{tpu_custom_call.1} parent=5 // pred_region
        // Predicated region
        $region57: #{tpu_custom_call.1} parent=55 // pred_check
          %p358 = pneg %p62
        $region58: #{tpu_custom_call.1} parent=55 // pred_check_branch
          %360 = sbr.rel (%p358) target = $region60
        $region59: #{tpu_custom_call.1} parent=55 // pred_region
          %p361 = scmp.lt.s32.totalorder %s21, 7
          %s362 = scalar_select %p361, %s21, 7
          %s363 = smul.addr %s362, 32
          %s364 = smul.addr %s363, 4
          %s365 = scalar_lea.vmem %s1, %s364
        $region60: #{tpu_custom_call.1} parent=55 // pred_fallthru
          _
        // Predicated region
        $region61: #{tpu_custom_call.1} parent=55 // pred_check
          %p366 = pneg %p88
        $region62: #{tpu_custom_call.1} parent=55 // pred_check_branch
          %368 = sbr.rel (%p366) target = $region64
        $region63: #{tpu_custom_call.1} parent=55 // pred_region
          %p369 = scmp.lt.s32.totalorder %s21, 7
          %s370 = scalar_select %p369, %s21, 7
          %s371 = smul.addr %s370, 32
          %s372 = smul.addr %s371, 8
          %s373 = scalar_lea.vmem %s2, %s372
        $region64: #{tpu_custom_call.1} parent=55 // pred_fallthru
          _
      $region56: #{tpu_custom_call.1} parent=5 // pred_fallthru
        _
      %p374 = scmp.le.s32.totalorder 1, %s21
      %p375 = scmp.lt.s32.totalorder %s21, 9
      %p376 = pnand %p374, %p375
      %p377 = pneg %p376
      // Predicated region
      $region65: #{tpu_custom_call.1} parent=5 // pred_check
        _
      $region66: #{tpu_custom_call.1} parent=5 // pred_check_branch
        %379 = sbr.rel (%p376) target = $region68
      $region67: #{tpu_custom_call.1} parent=5 // pred_region
        %s380 = ssub.s32 %s21, 1
        %p381 = pneg %p42
        %p382 = pneg %p39
        %p383 = scmp.lt.s32.totalorder %s26, 7
        %s384 = scalar_select %p383, %s26, 7
        %s385 = smul.addr %s384, 32
        %s386 = smul.addr %s385, 4
        %s387 = scalar_lea.vmem %s1, %s386
        %p388 = pneg %p68
        %p389 = pneg %p65
        %p390 = scmp.lt.s32.totalorder %s26, 7
        %s391 = scalar_select %p390, %s26, 7
        %s392 = smul.addr %s391, 32
        %s393 = smul.addr %s392, 8
        %s394 = scalar_lea.vmem %s2, %s393
        %p395 = pneg %p94
        %p396 = pneg %p91
        %p397 = pneg %p115
        %p398 = pneg %p112
        %p399 = pneg %p136
        %p400 = pneg %p133
        %p401 = pneg %p157
        %p402 = pneg %p154
        %p403 = pneg %p178
        %p404 = pneg %p175
        %p405 = pneg %p199
        %p406 = pneg %p196
        %p407 = pneg %p220
        %p408 = pneg %p217
        %p409 = pneg %p241
        %p410 = pneg %p238
        %p411 = pneg %p262
        %p412 = pneg %p259
        %p413 = pneg %p283
        %p414 = pneg %p280
        %p415 = pneg %p309
        %p416 = pneg %p306
        %s417 = sand.u32 %s296, 1
        %s418 = scalar_lea.sflag [#allocation3], %s417
        %s419 = sand.u32 %s296, 1
        %s420 = smul.addr %s419, 64
        %s421 = scalar_lea.vmem [#allocation2], %s420
        %p422 = scmp.lt.s32.totalorder %s26, 7
        %s423 = scalar_select %p422, %s26, 7
        %s424 = smul.addr %s423, 32
        %s425 = smul.addr %s424, 4
        %s426 = scalar_lea.vmem %s1, %s425
        %p427 = scmp.lt.s32.totalorder %s26, 7
        %s428 = scalar_select %p427, %s26, 7
        %s429 = smul.addr %s428, 32
        %s430 = smul.addr %s429, 8
        %s431 = scalar_lea.vmem %s2, %s430
        %s432 = smul.u32 8, %s26
        %s434 = smul.u32 %s26, 64
        %s435 = sshra.s32 %s434, 3
        %s436 = sand.u32 %s434, 7
        %s437 = smul.addr %s435, 4
        %s438 = scalar_lea.vmem %s0, %s437
        %v439 = vld [vmem:[%s438] sm:$0xf]
        %v440 = vld [vmem:[%s438 + $0x4] sm:$0xf]
        %v441 = vld [vmem:[%s438 + $0x8] sm:$0xf]
        %v442 = vld [vmem:[%s438 + $0xc] sm:$0xf]
        %v443 = vld [vmem:[%s438 + $0x10] sm:$0xf]
        %v444 = vld [vmem:[%s438 + $0x14] sm:$0xf]
        %v445 = vld [vmem:[%s438 + $0x18] sm:$0xf]
        %v446 = vld [vmem:[%s438 + $0x1c] sm:$0xf]
        %v447 = vld [vmem:[%s0] sm:$0xf]
        %v448 = vld [vmem:[%s0 + $0x4] sm:$0xf]
        %v449 = vld [vmem:[%s0 + $0x8] sm:$0xf]
        %v450 = vld [vmem:[%s0 + $0xc] sm:$0xf]
        %v451 = vld [vmem:[%s0 + $0x10] sm:$0xf]
        %v452 = vld [vmem:[%s0 + $0x14] sm:$0xf]
        %v453 = vld [vmem:[%s0 + $0x18] sm:$0xf]
        %v454 = vld [vmem:[%s0 + $0x1c] sm:$0xf]
        %v455 = vld [vmem:[%s0 + $0x20] sm:$0xf]
        %v456 = vld [vmem:[%s0 + $0x24] sm:$0xf]
        %v457 = vld [vmem:[%s0 + $0x28] sm:$0xf]
        %v458 = vld [vmem:[%s0 + $0x2c] sm:$0xf]
        %v459 = vld [vmem:[%s0 + $0x30] sm:$0xf]
        %v460 = vld [vmem:[%s0 + $0x34] sm:$0xf]
        %v461 = vld [vmem:[%s0 + $0x38] sm:$0xf]
        %v462 = vld [vmem:[%s0 + $0x3c] sm:$0xf]
        %v463 = vld [vmem:[%s0 + $0x40] sm:$0xf]
        %v464 = vld [vmem:[%s0 + $0x44] sm:$0xf]
        %v465 = vld [vmem:[%s0 + $0x48] sm:$0xf]
        %v466 = vld [vmem:[%s0 + $0x4c] sm:$0xf]
        %v467 = vld [vmem:[%s0 + $0x50] sm:$0xf]
        %v468 = vld [vmem:[%s0 + $0x54] sm:$0xf]
        %v469 = vld [vmem:[%s0 + $0x58] sm:$0xf]
        %v470 = vld [vmem:[%s0 + $0x5c] sm:$0xf]
        %v471 = vld [vmem:[%s0 + $0x60] sm:$0xf]
        %v472 = vld [vmem:[%s0 + $0x64] sm:$0xf]
        %v473 = vld [vmem:[%s0 + $0x68] sm:$0xf]
        %v474 = vld [vmem:[%s0 + $0x6c] sm:$0xf]
        %v475 = vld [vmem:[%s0 + $0x70] sm:$0xf]
        %v476 = vld [vmem:[%s0 + $0x74] sm:$0xf]
        %v477 = vld [vmem:[%s0 + $0x78] sm:$0xf]
        %v478 = vld [vmem:[%s0 + $0x7c] sm:$0xf]
        %v479 = vld [vmem:[%s0 + $0x80] sm:$0xf]
        %v480 = vld [vmem:[%s0 + $0x84] sm:$0xf]
        %v481 = vld [vmem:[%s0 + $0x88] sm:$0xf]
        %v482 = vld [vmem:[%s0 + $0x8c] sm:$0xf]
        %v483 = vld [vmem:[%s0 + $0x90] sm:$0xf]
        %v484 = vld [vmem:[%s0 + $0x94] sm:$0xf]
        %v485 = vld [vmem:[%s0 + $0x98] sm:$0xf]
        %v486 = vld [vmem:[%s0 + $0x9c] sm:$0xf]
        %v487 = vld [vmem:[%s0 + $0xa0] sm:$0xf]
        %v488 = vld [vmem:[%s0 + $0xa4] sm:$0xf]
        %v489 = vld [vmem:[%s0 + $0xa8] sm:$0xf]
        %v490 = vld [vmem:[%s0 + $0xac] sm:$0xf]
        %v491 = vld [vmem:[%s0 + $0xb0] sm:$0xf]
        %v492 = vld [vmem:[%s0 + $0xb4] sm:$0xf]
        %v493 = vld [vmem:[%s0 + $0xb8] sm:$0xf]
        %v494 = vld [vmem:[%s0 + $0xbc] sm:$0xf]
        %v495 = vld [vmem:[%s0 + $0xc0] sm:$0xf]
        %v496 = vld [vmem:[%s0 + $0xc4] sm:$0xf]
        %v497 = vld [vmem:[%s0 + $0xc8] sm:$0xf]
        %v498 = vld [vmem:[%s0 + $0xcc] sm:$0xf]
        %v499 = vld [vmem:[%s0 + $0xd0] sm:$0xf]
        %v500 = vld [vmem:[%s0 + $0xd4] sm:$0xf]
        %v501 = vld [vmem:[%s0 + $0xd8] sm:$0xf]
        %v502 = vld [vmem:[%s0 + $0xdc] sm:$0xf]
        %v503 = vld [vmem:[%s0 + $0xe0] sm:$0xf]
        %v504 = vld [vmem:[%s0 + $0xe4] sm:$0xf]
        %v505 = vld [vmem:[%s0 + $0xe8] sm:$0xf]
        %v506 = vld [vmem:[%s0 + $0xec] sm:$0xf]
        %v507 = vld [vmem:[%s0 + $0xf0] sm:$0xf]
        %v508 = vld [vmem:[%s0 + $0xf4] sm:$0xf]
        %v509 = vld [vmem:[%s0 + $0xf8] sm:$0xf]
        %v510 = vld [vmem:[%s0 + $0xfc] sm:$0xf]
        %v511 = vld [vmem:[%s3] sm:$0xf]
        %v512 = vld [vmem:[%s4] sm:$0x1]
        %v514 = vlaneseq
        %v515 = vshrl.u32 %v514, 7
        %v516 = vsub.s32 0, %v515
        %v517 = vrot.slane %v512, %v516
        %v527 = vunpack.c.l.b16 %v439
        %v528 = vunpack.c.l.b16 %v440
        %v529 = vunpack.c.l.b16 %v441
        %v530 = vunpack.c.l.b16 %v442
        %v531 = vunpack.c.l.b16 %v443
        %v532 = vunpack.c.l.b16 %v444
        %v533 = vunpack.c.l.b16 %v445
        %v534 = vunpack.c.l.b16 %v446
        %v535 = vpack.c.b16 %v528, %v527
        %v536 = vpack.c.b16 %v530, %v529
        %v537 = vpack.c.b16 %v532, %v531
        %v538 = vpack.c.b16 %v534, %v533
        %vm539 = vcmask 64512
        %v541 = vsel %vm539, %v535, 0
        %v544 = vsel %vm539, %v536, 0
        %v547 = vsel %vm539, %v537, 0
        %v550 = vsel %vm539, %v538, 0
        %vm552 = vcmask 1043456
        %v554 = vsel %vm552, %v511, 0
        %556 = vmatprep.subr.bf16.mxu0 0
        %557 = vmatpush1.bf16.msra.mxu0 %v554
        %558 = vmatprep.subr.bf16.mxu0 0
        %559 = vmatpush1.bf16.msra.mxu0 0
        %560 = vmatprep.subr.bf16.mxu0 0
        %561 = vmatpush1.bf16.msra.mxu0 0
        %562 = vmatprep.subr.bf16.mxu0 0
        %563 = vmatpush1.bf16.msra.mxu0 0
        %564 = vmatprep.subr.bf16.mxu0 0
        %565 = vmatpush1.bf16.msra.mxu0 0
        %566 = vmatprep.subr.bf16.mxu0 0
        %567 = vmatpush1.bf16.msra.mxu0 0
        %568 = vmatprep.subr.bf16.mxu0 0
        %569 = vmatpush1.bf16.msra.mxu0 0
        %570 = vmatprep.subr.bf16.mxu0 0
        %571 = vmatpush1.bf16.msra.mxu0 0
        %572 = vmatprep.subr.bf16.mxu0 0
        %573 = vmatpush1.bf16.msra.mxu0 0
        %574 = vmatprep.subr.bf16.mxu0 0
        %575 = vmatpush1.bf16.msra.mxu0 0
        %576 = vmatprep.subr.bf16.mxu0 0
        %577 = vmatpush1.bf16.msra.mxu0 0
        %578 = vmatprep.subr.bf16.mxu0 0
        %579 = vmatpush1.bf16.msra.mxu0 0
        %580 = vmatprep.subr.bf16.mxu0 0
        %581 = vmatpush1.bf16.msra.mxu0 0
        %582 = vmatprep.subr.bf16.mxu0 0
        %583 = vmatpush1.bf16.msra.mxu0 0
        %584 = vmatprep.subr.bf16.mxu0 0
        %585 = vmatpush1.bf16.msra.mxu0 0
        %586 = vmatprep.subr.bf16.mxu0 0
        %587 = vmatpush1.bf16.msra.mxu0 0
        %588 = vmatprep.mubr.bf16.mxu0 0
        %589 = vmatmul.mubr.bf16.gmra.mrb[0].mxu0 %v541
        %v590 = vpop.f32.mrb[0].mxu0
        %v591 = vadd.f32 %v517, %v590
        %v592 = vpop.f32.mrb[0].mxu0
        %v593 = vpop.f32.mrb[0].mxu0
        %v594 = vadd.f32 %v517, %v593
        %v595 = vpop.f32.mrb[0].mxu0
        %596 = vmatprep.mubr.bf16.mxu0 0
        %597 = vmatmul.mubr.bf16.gmra.mrb[0].mxu0 %v544
        %v598 = vpop.f32.mrb[0].mxu0
        %v599 = vadd.f32 %v517, %v598
        %v600 = vpop.f32.mrb[0].mxu0
        %v601 = vpop.f32.mrb[0].mxu0
        %v602 = vadd.f32 %v517, %v601
        %v603 = vpop.f32.mrb[0].mxu0
        %604 = vmatprep.mubr.bf16.mxu0 0
        %605 = vmatmul.mubr.bf16.gmra.mrb[0].mxu0 %v547
        %v606 = vpop.f32.mrb[0].mxu0
        %v607 = vadd.f32 %v517, %v606
        %v608 = vpop.f32.mrb[0].mxu0
        %v609 = vpop.f32.mrb[0].mxu0
        %v610 = vadd.f32 %v517, %v609
        %v611 = vpop.f32.mrb[0].mxu0
        %612 = vmatprep.mubr.bf16.mxu0 0
        %613 = vmatmul.mubr.bf16.gmra.mrb[0].mxu0 %v550
        %v614 = vpop.f32.mrb[0].mxu0
        %v615 = vadd.f32 %v517, %v614
        %v616 = vpop.f32.mrb[0].mxu0
        %v617 = vpop.f32.mrb[0].mxu0
        %v618 = vadd.f32 %v517, %v617
        %v619 = vpop.f32.mrb[0].mxu0
        %620 = vdwg.mxu0
        %v621 = vld [vmem:[%s431] sm:$0xff]
        %v622 = vld [vmem:[%s431 + $0x8] sm:$0xff]
        %v623 = vld [vmem:[%s431 + $0x10] sm:$0xff]
        %v624 = vld [vmem:[%s431 + $0x18] sm:$0xff]
        %v625 = vld [vmem:[%s431 + $0x20] sm:$0xff]
        %v626 = vld [vmem:[%s431 + $0x28] sm:$0xff]
        %v627 = vld [vmem:[%s431 + $0x30] sm:$0xff]
        %v628 = vld [vmem:[%s431 + $0x38] sm:$0xff]
        %v629 = vld [vmem:[%s431 + $0x40] sm:$0xff]
        %v630 = vld [vmem:[%s431 + $0x48] sm:$0xff]
        %v631 = vld [vmem:[%s431 + $0x50] sm:$0xff]
        %v632 = vld [vmem:[%s431 + $0x58] sm:$0xff]
        %v633 = vld [vmem:[%s431 + $0x60] sm:$0xff]
        %v634 = vld [vmem:[%s431 + $0x68] sm:$0xff]
        %v635 = vld [vmem:[%s431 + $0x70] sm:$0xff]
        %v636 = vld [vmem:[%s431 + $0x78] sm:$0xff]
        %v637 = vld [vmem:[%s431 + $0x80] sm:$0xff]
        %v638 = vld [vmem:[%s431 + $0x88] sm:$0xff]
        %v639 = vld [vmem:[%s431 + $0x90] sm:$0xff]
        %v640 = vld [vmem:[%s431 + $0x98] sm:$0xff]
        %v641 = vld [vmem:[%s431 + $0xa0] sm:$0xff]
        %v642 = vld [vmem:[%s431 + $0xa8] sm:$0xff]
        %v643 = vld [vmem:[%s431 + $0xb0] sm:$0xff]
        %v644 = vld [vmem:[%s431 + $0xb8] sm:$0xff]
        %v645 = vld [vmem:[%s431 + $0xc0] sm:$0xff]
        %v646 = vld [vmem:[%s431 + $0xc8] sm:$0xff]
        %v647 = vld [vmem:[%s431 + $0xd0] sm:$0xff]
        %v648 = vld [vmem:[%s431 + $0xd8] sm:$0xff]
        %v649 = vld [vmem:[%s431 + $0xe0] sm:$0xff]
        %v650 = vld [vmem:[%s431 + $0xe8] sm:$0xff]
        %v651 = vld [vmem:[%s431 + $0xf0] sm:$0xff]
        %v652 = vld [vmem:[%s431 + $0xf8] sm:$0xff]
        %v653 = vlaneseq
        %v654 = vand.u32 %v653, 127
        %v655 = vadd.s32 %v654, 128
        %v656 = vadd.s32 %v654, 256
        %v657 = vadd.s32 %v654, 384
        %658 = vset.pattern.permute.xlu0 0
        %659 = vperm.xlu0 %658, %v621
        %v660 = vpop.permute.xlu0 %659
        %661 = vset.pattern.permute.xlu0 0
        %662 = vperm.xlu0 %661, %v622
        %v663 = vpop.permute.xlu0 %662
        %664 = vset.pattern.permute.xlu0 0
        %665 = vperm.xlu0 %664, %v623
        %v666 = vpop.permute.xlu0 %665
        %667 = vset.pattern.permute.xlu0 0
        %668 = vperm.xlu0 %667, %v624
        %v669 = vpop.permute.xlu0 %668
        %670 = vset.pattern.permute.xlu0 0
        %671 = vperm.xlu0 %670, %v625
        %v672 = vpop.permute.xlu0 %671
        %673 = vset.pattern.permute.xlu0 0
        %674 = vperm.xlu0 %673, %v626
        %v675 = vpop.permute.xlu0 %674
        %676 = vset.pattern.permute.xlu0 0
        %677 = vperm.xlu0 %676, %v627
        %v678 = vpop.permute.xlu0 %677
        %679 = vset.pattern.permute.xlu0 0
        %680 = vperm.xlu0 %679, %v628
        %v681 = vpop.permute.xlu0 %680
        %682 = vset.pattern.permute.xlu0 0
        %683 = vperm.xlu0 %682, %v629
        %v684 = vpop.permute.xlu0 %683
        %685 = vset.pattern.permute.xlu0 0
        %686 = vperm.xlu0 %685, %v630
        %v687 = vpop.permute.xlu0 %686
        %688 = vset.pattern.permute.xlu0 0
        %689 = vperm.xlu0 %688, %v631
        %v690 = vpop.permute.xlu0 %689
        %691 = vset.pattern.permute.xlu0 0
        %692 = vperm.xlu0 %691, %v632
        %v693 = vpop.permute.xlu0 %692
        %694 = vset.pattern.permute.xlu0 0
        %695 = vperm.xlu0 %694, %v633
        %v696 = vpop.permute.xlu0 %695
        %697 = vset.pattern.permute.xlu0 0
        %698 = vperm.xlu0 %697, %v634
        %v699 = vpop.permute.xlu0 %698
        %700 = vset.pattern.permute.xlu0 0
        %701 = vperm.xlu0 %700, %v635
        %v702 = vpop.permute.xlu0 %701
        %703 = vset.pattern.permute.xlu0 0
        %704 = vperm.xlu0 %703, %v636
        %v705 = vpop.permute.xlu0 %704
        %706 = vset.pattern.permute.xlu0 0
        %707 = vperm.xlu0 %706, %v637
        %v708 = vpop.permute.xlu0 %707
        %709 = vset.pattern.permute.xlu0 0
        %710 = vperm.xlu0 %709, %v638
        %v711 = vpop.permute.xlu0 %710
        %712 = vset.pattern.permute.xlu0 0
        %713 = vperm.xlu0 %712, %v639
        %v714 = vpop.permute.xlu0 %713
        %715 = vset.pattern.permute.xlu0 0
        %716 = vperm.xlu0 %715, %v640
        %v717 = vpop.permute.xlu0 %716
        %718 = vset.pattern.permute.xlu0 0
        %719 = vperm.xlu0 %718, %v641
        %v720 = vpop.permute.xlu0 %719
        %721 = vset.pattern.permute.xlu0 0
        %722 = vperm.xlu0 %721, %v642
        %v723 = vpop.permute.xlu0 %722
        %724 = vset.pattern.permute.xlu0 0
        %725 = vperm.xlu0 %724, %v643
        %v726 = vpop.permute.xlu0 %725
        %727 = vset.pattern.permute.xlu0 0
        %728 = vperm.xlu0 %727, %v644
        %v729 = vpop.permute.xlu0 %728
        %730 = vset.pattern.permute.xlu0 0
        %731 = vperm.xlu0 %730, %v645
        %v732 = vpop.permute.xlu0 %731
        %733 = vset.pattern.permute.xlu0 0
        %734 = vperm.xlu0 %733, %v646
        %v735 = vpop.permute.xlu0 %734
        %736 = vset.pattern.permute.xlu0 0
        %737 = vperm.xlu0 %736, %v647
        %v738 = vpop.permute.xlu0 %737
        %739 = vset.pattern.permute.xlu0 0
        %740 = vperm.xlu0 %739, %v648
        %v741 = vpop.permute.xlu0 %740
        %742 = vset.pattern.permute.xlu0 0
        %743 = vperm.xlu0 %742, %v649
        %v744 = vpop.permute.xlu0 %743
        %745 = vset.pattern.permute.xlu0 0
        %746 = vperm.xlu0 %745, %v650
        %v747 = vpop.permute.xlu0 %746
        %748 = vset.pattern.permute.xlu0 0
        %749 = vperm.xlu0 %748, %v651
        %v750 = vpop.permute.xlu0 %749
        %751 = vset.pattern.permute.xlu0 0
        %752 = vperm.xlu0 %751, %v652
        %v753 = vpop.permute.xlu0 %752
        %vm754 = vcmp.eq.s32.totalorder %v660, %v654
        %vm755 = vcmp.eq.s32.totalorder %v660, %v655
        %vm756 = vcmp.eq.s32.totalorder %v660, %v656
        %vm757 = vcmp.eq.s32.totalorder %v660, %v657
        %vm758 = vcmp.eq.s32.totalorder %v663, %v654
        %vm759 = vcmp.eq.s32.totalorder %v663, %v655
        %vm760 = vcmp.eq.s32.totalorder %v663, %v656
        %vm761 = vcmp.eq.s32.totalorder %v663, %v657
        %vm762 = vcmp.eq.s32.totalorder %v666, %v654
        %vm763 = vcmp.eq.s32.totalorder %v666, %v655
        %vm764 = vcmp.eq.s32.totalorder %v666, %v656
        %vm765 = vcmp.eq.s32.totalorder %v666, %v657
        %vm766 = vcmp.eq.s32.totalorder %v669, %v654
        %vm767 = vcmp.eq.s32.totalorder %v669, %v655
        %vm768 = vcmp.eq.s32.totalorder %v669, %v656
        %vm769 = vcmp.eq.s32.totalorder %v669, %v657
        %vm770 = vcmp.eq.s32.totalorder %v672, %v654
        %vm771 = vcmp.eq.s32.totalorder %v672, %v655
        %vm772 = vcmp.eq.s32.totalorder %v672, %v656
        %vm773 = vcmp.eq.s32.totalorder %v672, %v657
        %vm774 = vcmp.eq.s32.totalorder %v675, %v654
        %vm775 = vcmp.eq.s32.totalorder %v675, %v655
        %vm776 = vcmp.eq.s32.totalorder %v675, %v656
        %vm777 = vcmp.eq.s32.totalorder %v675, %v657
        %vm778 = vcmp.eq.s32.totalorder %v678, %v654
        %vm779 = vcmp.eq.s32.totalorder %v678, %v655
        %vm780 = vcmp.eq.s32.totalorder %v678, %v656
        %vm781 = vcmp.eq.s32.totalorder %v678, %v657
        %vm782 = vcmp.eq.s32.totalorder %v681, %v654
        %vm783 = vcmp.eq.s32.totalorder %v681, %v655
        %vm784 = vcmp.eq.s32.totalorder %v681, %v656
        %vm785 = vcmp.eq.s32.totalorder %v681, %v657
        %vm786 = vcmp.eq.s32.totalorder %v684, %v654
        %vm787 = vcmp.eq.s32.totalorder %v684, %v655
        %vm788 = vcmp.eq.s32.totalorder %v684, %v656
        %vm789 = vcmp.eq.s32.totalorder %v684, %v657
        %vm790 = vcmp.eq.s32.totalorder %v687, %v654
        %vm791 = vcmp.eq.s32.totalorder %v687, %v655
        %vm792 = vcmp.eq.s32.totalorder %v687, %v656
        %vm793 = vcmp.eq.s32.totalorder %v687, %v657
        %vm794 = vcmp.eq.s32.totalorder %v690, %v654
        %vm795 = vcmp.eq.s32.totalorder %v690, %v655
        %vm796 = vcmp.eq.s32.totalorder %v690, %v656
        %vm797 = vcmp.eq.s32.totalorder %v690, %v657
        %vm798 = vcmp.eq.s32.totalorder %v693, %v654
        %vm799 = vcmp.eq.s32.totalorder %v693, %v655
        %vm800 = vcmp.eq.s32.totalorder %v693, %v656
        %vm801 = vcmp.eq.s32.totalorder %v693, %v657
        %vm802 = vcmp.eq.s32.totalorder %v696, %v654
        %vm803 = vcmp.eq.s32.totalorder %v696, %v655
        %vm804 = vcmp.eq.s32.totalorder %v696, %v656
        %vm805 = vcmp.eq.s32.totalorder %v696, %v657
        %vm806 = vcmp.eq.s32.totalorder %v699, %v654
        %vm807 = vcmp.eq.s32.totalorder %v699, %v655
        %vm808 = vcmp.eq.s32.totalorder %v699, %v656
        %vm809 = vcmp.eq.s32.totalorder %v699, %v657
        %vm810 = vcmp.eq.s32.totalorder %v702, %v654
        %vm811 = vcmp.eq.s32.totalorder %v702, %v655
        %vm812 = vcmp.eq.s32.totalorder %v702, %v656
        %vm813 = vcmp.eq.s32.totalorder %v702, %v657
        %vm814 = vcmp.eq.s32.totalorder %v705, %v654
        %vm815 = vcmp.eq.s32.totalorder %v705, %v655
        %vm816 = vcmp.eq.s32.totalorder %v705, %v656
        %vm817 = vcmp.eq.s32.totalorder %v705, %v657
        %vm818 = vcmp.eq.s32.totalorder %v708, %v654
        %vm819 = vcmp.eq.s32.totalorder %v708, %v655
        %vm820 = vcmp.eq.s32.totalorder %v708, %v656
        %vm821 = vcmp.eq.s32.totalorder %v708, %v657
        %vm822 = vcmp.eq.s32.totalorder %v711, %v654
        %vm823 = vcmp.eq.s32.totalorder %v711, %v655
        %vm824 = vcmp.eq.s32.totalorder %v711, %v656
        %vm825 = vcmp.eq.s32.totalorder %v711, %v657
        %vm826 = vcmp.eq.s32.totalorder %v714, %v654
        %vm827 = vcmp.eq.s32.totalorder %v714, %v655
        %vm828 = vcmp.eq.s32.totalorder %v714, %v656
        %vm829 = vcmp.eq.s32.totalorder %v714, %v657
        %vm830 = vcmp.eq.s32.totalorder %v717, %v654
        %vm831 = vcmp.eq.s32.totalorder %v717, %v655
        %vm832 = vcmp.eq.s32.totalorder %v717, %v656
        %vm833 = vcmp.eq.s32.totalorder %v717, %v657
        %vm834 = vcmp.eq.s32.totalorder %v720, %v654
        %vm835 = vcmp.eq.s32.totalorder %v720, %v655
        %vm836 = vcmp.eq.s32.totalorder %v720, %v656
        %vm837 = vcmp.eq.s32.totalorder %v720, %v657
        %vm838 = vcmp.eq.s32.totalorder %v723, %v654
        %vm839 = vcmp.eq.s32.totalorder %v723, %v655
        %vm840 = vcmp.eq.s32.totalorder %v723, %v656
        %vm841 = vcmp.eq.s32.totalorder %v723, %v657
        %vm842 = vcmp.eq.s32.totalorder %v726, %v654
        %vm843 = vcmp.eq.s32.totalorder %v726, %v655
        %vm844 = vcmp.eq.s32.totalorder %v726, %v656
        %vm845 = vcmp.eq.s32.totalorder %v726, %v657
        %vm846 = vcmp.eq.s32.totalorder %v729, %v654
        %vm847 = vcmp.eq.s32.totalorder %v729, %v655
        %vm848 = vcmp.eq.s32.totalorder %v729, %v656
        %vm849 = vcmp.eq.s32.totalorder %v729, %v657
        %vm850 = vcmp.eq.s32.totalorder %v732, %v654
        %vm851 = vcmp.eq.s32.totalorder %v732, %v655
        %vm852 = vcmp.eq.s32.totalorder %v732, %v656
        %vm853 = vcmp.eq.s32.totalorder %v732, %v657
        %vm854 = vcmp.eq.s32.totalorder %v735, %v654
        %vm855 = vcmp.eq.s32.totalorder %v735, %v655
        %vm856 = vcmp.eq.s32.totalorder %v735, %v656
        %vm857 = vcmp.eq.s32.totalorder %v735, %v657
        %vm858 = vcmp.eq.s32.totalorder %v738, %v654
        %vm859 = vcmp.eq.s32.totalorder %v738, %v655
        %vm860 = vcmp.eq.s32.totalorder %v738, %v656
        %vm861 = vcmp.eq.s32.totalorder %v738, %v657
        %vm862 = vcmp.eq.s32.totalorder %v741, %v654
        %vm863 = vcmp.eq.s32.totalorder %v741, %v655
        %vm864 = vcmp.eq.s32.totalorder %v741, %v656
        %vm865 = vcmp.eq.s32.totalorder %v741, %v657
        %vm866 = vcmp.eq.s32.totalorder %v744, %v654
        %vm867 = vcmp.eq.s32.totalorder %v744, %v655
        %vm868 = vcmp.eq.s32.totalorder %v744, %v656
        %vm869 = vcmp.eq.s32.totalorder %v744, %v657
        %vm870 = vcmp.eq.s32.totalorder %v747, %v654
        %vm871 = vcmp.eq.s32.totalorder %v747, %v655
        %vm872 = vcmp.eq.s32.totalorder %v747, %v656
        %vm873 = vcmp.eq.s32.totalorder %v747, %v657
        %vm874 = vcmp.eq.s32.totalorder %v750, %v654
        %vm875 = vcmp.eq.s32.totalorder %v750, %v655
        %vm876 = vcmp.eq.s32.totalorder %v750, %v656
        %vm877 = vcmp.eq.s32.totalorder %v750, %v657
        %vm878 = vcmp.eq.s32.totalorder %v753, %v654
        %vm879 = vcmp.eq.s32.totalorder %v753, %v655
        %vm880 = vcmp.eq.s32.totalorder %v753, %v656
        %vm881 = vcmp.eq.s32.totalorder %v753, %v657
        %v882 = vsel %vm754, 1.0, 0.0
        %v883 = vsel %vm755, 1.0, 0.0
        %v884 = vsel %vm756, 1.0, 0.0
        %v885 = vsel %vm757, 1.0, 0.0
        %v886 = vsel %vm758, 1.0, 0.0
        %v887 = vsel %vm759, 1.0, 0.0
        %v888 = vsel %vm760, 1.0, 0.0
        %v889 = vsel %vm761, 1.0, 0.0
        %v890 = vsel %vm762, 1.0, 0.0
        %v891 = vsel %vm763, 1.0, 0.0
        %v892 = vsel %vm764, 1.0, 0.0
        %v893 = vsel %vm765, 1.0, 0.0
        %v894 = vsel %vm766, 1.0, 0.0
        %v895 = vsel %vm767, 1.0, 0.0
        %v896 = vsel %vm768, 1.0, 0.0
        %v897 = vsel %vm769, 1.0, 0.0
        %v898 = vsel %vm770, 1.0, 0.0
        %v899 = vsel %vm771, 1.0, 0.0
        %v900 = vsel %vm772, 1.0, 0.0
        %v901 = vsel %vm773, 1.0, 0.0
        %v902 = vsel %vm774, 1.0, 0.0
        %v903 = vsel %vm775, 1.0, 0.0
        %v904 = vsel %vm776, 1.0, 0.0
        %v905 = vsel %vm777, 1.0, 0.0
        %v906 = vsel %vm778, 1.0, 0.0
        %v907 = vsel %vm779, 1.0, 0.0
        %v908 = vsel %vm780, 1.0, 0.0
        %v909 = vsel %vm781, 1.0, 0.0
        %v910 = vsel %vm782, 1.0, 0.0
        %v911 = vsel %vm783, 1.0, 0.0
        %v912 = vsel %vm784, 1.0, 0.0
        %v913 = vsel %vm785, 1.0, 0.0
        %v914 = vsel %vm786, 1.0, 0.0
        %v915 = vsel %vm787, 1.0, 0.0
        %v916 = vsel %vm788, 1.0, 0.0
        %v917 = vsel %vm789, 1.0, 0.0
        %v918 = vsel %vm790, 1.0, 0.0
        %v919 = vsel %vm791, 1.0, 0.0
        %v920 = vsel %vm792, 1.0, 0.0
        %v921 = vsel %vm793, 1.0, 0.0
        %v922 = vsel %vm794, 1.0, 0.0
        %v923 = vsel %vm795, 1.0, 0.0
        %v924 = vsel %vm796, 1.0, 0.0
        %v925 = vsel %vm797, 1.0, 0.0
        %v926 = vsel %vm798, 1.0, 0.0
        %v927 = vsel %vm799, 1.0, 0.0
        %v928 = vsel %vm800, 1.0, 0.0
        %v929 = vsel %vm801, 1.0, 0.0
        %v930 = vsel %vm802, 1.0, 0.0
        %v931 = vsel %vm803, 1.0, 0.0
        %v932 = vsel %vm804, 1.0, 0.0
        %v933 = vsel %vm805, 1.0, 0.0
        %v934 = vsel %vm806, 1.0, 0.0
        %v935 = vsel %vm807, 1.0, 0.0
        %v936 = vsel %vm808, 1.0, 0.0
        %v937 = vsel %vm809, 1.0, 0.0
        %v938 = vsel %vm810, 1.0, 0.0
        %v939 = vsel %vm811, 1.0, 0.0
        %v940 = vsel %vm812, 1.0, 0.0
        %v941 = vsel %vm813, 1.0, 0.0
        %v942 = vsel %vm814, 1.0, 0.0
        %v943 = vsel %vm815, 1.0, 0.0
        %v944 = vsel %vm816, 1.0, 0.0
        %v945 = vsel %vm817, 1.0, 0.0
        %v946 = vsel %vm818, 1.0, 0.0
        %v947 = vsel %vm819, 1.0, 0.0
        %v948 = vsel %vm820, 1.0, 0.0
        %v949 = vsel %vm821, 1.0, 0.0
        %v950 = vsel %vm822, 1.0, 0.0
        %v951 = vsel %vm823, 1.0, 0.0
        %v952 = vsel %vm824, 1.0, 0.0
        %v953 = vsel %vm825, 1.0, 0.0
        %v954 = vsel %vm826, 1.0, 0.0
        %v955 = vsel %vm827, 1.0, 0.0
        %v956 = vsel %vm828, 1.0, 0.0
        %v957 = vsel %vm829, 1.0, 0.0
        %v958 = vsel %vm830, 1.0, 0.0
        %v959 = vsel %vm831, 1.0, 0.0
        %v960 = vsel %vm832, 1.0, 0.0
        %v961 = vsel %vm833, 1.0, 0.0
        %v962 = vsel %vm834, 1.0, 0.0
        %v963 = vsel %vm835, 1.0, 0.0
        %v964 = vsel %vm836, 1.0, 0.0
        %v965 = vsel %vm837, 1.0, 0.0
        %v966 = vsel %vm838, 1.0, 0.0
        %v967 = vsel %vm839, 1.0, 0.0
        %v968 = vsel %vm840, 1.0, 0.0
        %v969 = vsel %vm841, 1.0, 0.0
        %v970 = vsel %vm842, 1.0, 0.0
        %v971 = vsel %vm843, 1.0, 0.0
        %v972 = vsel %vm844, 1.0, 0.0
        %v973 = vsel %vm845, 1.0, 0.0
        %v974 = vsel %vm846, 1.0, 0.0
        %v975 = vsel %vm847, 1.0, 0.0
        %v976 = vsel %vm848, 1.0, 0.0
        %v977 = vsel %vm849, 1.0, 0.0
        %v978 = vsel %vm850, 1.0, 0.0
        %v979 = vsel %vm851, 1.0, 0.0
        %v980 = vsel %vm852, 1.0, 0.0
        %v981 = vsel %vm853, 1.0, 0.0
        %v982 = vsel %vm854, 1.0, 0.0
        %v983 = vsel %vm855, 1.0, 0.0
        %v984 = vsel %vm856, 1.0, 0.0
        %v985 = vsel %vm857, 1.0, 0.0
        %v986 = vsel %vm858, 1.0, 0.0
        %v987 = vsel %vm859, 1.0, 0.0
        %v988 = vsel %vm860, 1.0, 0.0
        %v989 = vsel %vm861, 1.0, 0.0
        %v990 = vsel %vm862, 1.0, 0.0
        %v991 = vsel %vm863, 1.0, 0.0
        %v992 = vsel %vm864, 1.0, 0.0
        %v993 = vsel %vm865, 1.0, 0.0
        %v994 = vsel %vm866, 1.0, 0.0
        %v995 = vsel %vm867, 1.0, 0.0
        %v996 = vsel %vm868, 1.0, 0.0
        %v997 = vsel %vm869, 1.0, 0.0
        %v998 = vsel %vm870, 1.0, 0.0
        %v999 = vsel %vm871, 1.0, 0.0
        %v1000 = vsel %vm872, 1.0, 0.0
        %v1001 = vsel %vm873, 1.0, 0.0
        %v1002 = vsel %vm874, 1.0, 0.0
        %v1003 = vsel %vm875, 1.0, 0.0
        %v1004 = vsel %vm876, 1.0, 0.0
        %v1005 = vsel %vm877, 1.0, 0.0
        %v1006 = vsel %vm878, 1.0, 0.0
        %v1007 = vsel %vm879, 1.0, 0.0
        %v1008 = vsel %vm880, 1.0, 0.0
        %v1009 = vsel %vm881, 1.0, 0.0
        %v1010 = vpack.c.bf16 %v886, %v882
        %v1011 = vpack.c.bf16 %v887, %v883
        %v1012 = vpack.c.bf16 %v888, %v884
        %v1013 = vpack.c.bf16 %v889, %v885
        %v1014 = vpack.c.bf16 %v894, %v890
        %v1015 = vpack.c.bf16 %v895, %v891
        %v1016 = vpack.c.bf16 %v896, %v892
        %v1017 = vpack.c.bf16 %v897, %v893
        %v1018 = vpack.c.bf16 %v902, %v898
        %v1019 = vpack.c.bf16 %v903, %v899
        %v1020 = vpack.c.bf16 %v904, %v900
        %v1021 = vpack.c.bf16 %v905, %v901
        %v1022 = vpack.c.bf16 %v910, %v906
        %v1023 = vpack.c.bf16 %v911, %v907
        %v1024 = vpack.c.bf16 %v912, %v908
        %v1025 = vpack.c.bf16 %v913, %v909
        %v1026 = vpack.c.bf16 %v918, %v914
        %v1027 = vpack.c.bf16 %v919, %v915
        %v1028 = vpack.c.bf16 %v920, %v916
        %v1029 = vpack.c.bf16 %v921, %v917
        %v1030 = vpack.c.bf16 %v926, %v922
        %v1031 = vpack.c.bf16 %v927, %v923
        %v1032 = vpack.c.bf16 %v928, %v924
        %v1033 = vpack.c.bf16 %v929, %v925
        %v1034 = vpack.c.bf16 %v934, %v930
        %v1035 = vpack.c.bf16 %v935, %v931
        %v1036 = vpack.c.bf16 %v936, %v932
        %v1037 = vpack.c.bf16 %v937, %v933
        %v1038 = vpack.c.bf16 %v942, %v938
        %v1039 = vpack.c.bf16 %v943, %v939
        %v1040 = vpack.c.bf16 %v944, %v940
        %v1041 = vpack.c.bf16 %v945, %v941
        %v1042 = vpack.c.bf16 %v950, %v946
        %v1043 = vpack.c.bf16 %v951, %v947
        %v1044 = vpack.c.bf16 %v952, %v948
        %v1045 = vpack.c.bf16 %v953, %v949
        %v1046 = vpack.c.bf16 %v958, %v954
        %v1047 = vpack.c.bf16 %v959, %v955
        %v1048 = vpack.c.bf16 %v960, %v956
        %v1049 = vpack.c.bf16 %v961, %v957
        %v1050 = vpack.c.bf16 %v966, %v962
        %v1051 = vpack.c.bf16 %v967, %v963
        %v1052 = vpack.c.bf16 %v968, %v964
        %v1053 = vpack.c.bf16 %v969, %v965
        %v1054 = vpack.c.bf16 %v974, %v970
        %v1055 = vpack.c.bf16 %v975, %v971
        %v1056 = vpack.c.bf16 %v976, %v972
        %v1057 = vpack.c.bf16 %v977, %v973
        %v1058 = vpack.c.bf16 %v982, %v978
        %v1059 = vpack.c.bf16 %v983, %v979
        %v1060 = vpack.c.bf16 %v984, %v980
        %v1061 = vpack.c.bf16 %v985, %v981
        %v1062 = vpack.c.bf16 %v990, %v986
        %v1063 = vpack.c.bf16 %v991, %v987
        %v1064 = vpack.c.bf16 %v992, %v988
        %v1065 = vpack.c.bf16 %v993, %v989
        %v1066 = vpack.c.bf16 %v998, %v994
        %v1067 = vpack.c.bf16 %v999, %v995
        %v1068 = vpack.c.bf16 %v1000, %v996
        %v1069 = vpack.c.bf16 %v1001, %v997
        %v1070 = vpack.c.bf16 %v1006, %v1002
        %v1071 = vpack.c.bf16 %v1007, %v1003
        %v1072 = vpack.c.bf16 %v1008, %v1004
        %v1073 = vpack.c.bf16 %v1009, %v1005
        %v1138 = vunpack.c.l.b16 %v447
        %v1139 = vunpack.c.l.b16 %v448
        %v1140 = vunpack.c.l.b16 %v449
        %v1141 = vunpack.c.l.b16 %v450
        %v1142 = vunpack.c.l.b16 %v451
        %v1143 = vunpack.c.l.b16 %v452
        %v1144 = vunpack.c.l.b16 %v453
        %v1145 = vunpack.c.l.b16 %v454
        %v1146 = vunpack.c.l.b16 %v455
        %v1147 = vunpack.c.l.b16 %v456
        %v1148 = vunpack.c.l.b16 %v457
        %v1149 = vunpack.c.l.b16 %v458
        %v1150 = vunpack.c.l.b16 %v459
        %v1151 = vunpack.c.l.b16 %v460
        %v1152 = vunpack.c.l.b16 %v461
        %v1153 = vunpack.c.l.b16 %v462
        %v1154 = vunpack.c.l.b16 %v463
        %v1155 = vunpack.c.l.b16 %v464
        %v1156 = vunpack.c.l.b16 %v465
        %v1157 = vunpack.c.l.b16 %v466
        %v1158 = vunpack.c.l.b16 %v467
        %v1159 = vunpack.c.l.b16 %v468
        %v1160 = vunpack.c.l.b16 %v469
        %v1161 = vunpack.c.l.b16 %v470
        %v1162 = vunpack.c.l.b16 %v471
        %v1163 = vunpack.c.l.b16 %v472
        %v1164 = vunpack.c.l.b16 %v473
        %v1165 = vunpack.c.l.b16 %v474
        %v1166 = vunpack.c.l.b16 %v475
        %v1167 = vunpack.c.l.b16 %v476
        %v1168 = vunpack.c.l.b16 %v477
        %v1169 = vunpack.c.l.b16 %v478
        %v1170 = vunpack.c.l.b16 %v479
        %v1171 = vunpack.c.l.b16 %v480
        %v1172 = vunpack.c.l.b16 %v481
        %v1173 = vunpack.c.l.b16 %v482
        %v1174 = vunpack.c.l.b16 %v483
        %v1175 = vunpack.c.l.b16 %v484
        %v1176 = vunpack.c.l.b16 %v485
        %v1177 = vunpack.c.l.b16 %v486
        %v1178 = vunpack.c.l.b16 %v487
        %v1179 = vunpack.c.l.b16 %v488
        %v1180 = vunpack.c.l.b16 %v489
        %v1181 = vunpack.c.l.b16 %v490
        %v1182 = vunpack.c.l.b16 %v491
        %v1183 = vunpack.c.l.b16 %v492
        %v1184 = vunpack.c.l.b16 %v493
        %v1185 = vunpack.c.l.b16 %v494
        %v1186 = vunpack.c.l.b16 %v495
        %v1187 = vunpack.c.l.b16 %v496
        %v1188 = vunpack.c.l.b16 %v497
        %v1189 = vunpack.c.l.b16 %v498
        %v1190 = vunpack.c.l.b16 %v499
        %v1191 = vunpack.c.l.b16 %v500
        %v1192 = vunpack.c.l.b16 %v501
        %v1193 = vunpack.c.l.b16 %v502
        %v1194 = vunpack.c.l.b16 %v503
        %v1195 = vunpack.c.l.b16 %v504
        %v1196 = vunpack.c.l.b16 %v505
        %v1197 = vunpack.c.l.b16 %v506
        %v1198 = vunpack.c.l.b16 %v507
        %v1199 = vunpack.c.l.b16 %v508
        %v1200 = vunpack.c.l.b16 %v509
        %v1201 = vunpack.c.l.b16 %v510
        %v1202 = vpack.c.b16 %v1139, %v1138
        %v1203 = vpack.c.b16 %v1141, %v1140
        %v1204 = vpack.c.b16 %v1143, %v1142
        %v1205 = vpack.c.b16 %v1145, %v1144
        %v1206 = vpack.c.b16 %v1147, %v1146
        %v1207 = vpack.c.b16 %v1149, %v1148
        %v1208 = vpack.c.b16 %v1151, %v1150
        %v1209 = vpack.c.b16 %v1153, %v1152
        %v1210 = vpack.c.b16 %v1155, %v1154
        %v1211 = vpack.c.b16 %v1157, %v1156
        %v1212 = vpack.c.b16 %v1159, %v1158
        %v1213 = vpack.c.b16 %v1161, %v1160
        %v1214 = vpack.c.b16 %v1163, %v1162
        %v1215 = vpack.c.b16 %v1165, %v1164
        %v1216 = vpack.c.b16 %v1167, %v1166
        %v1217 = vpack.c.b16 %v1169, %v1168
        %v1218 = vpack.c.b16 %v1171, %v1170
        %v1219 = vpack.c.b16 %v1173, %v1172
        %v1220 = vpack.c.b16 %v1175, %v1174
        %v1221 = vpack.c.b16 %v1177, %v1176
        %v1222 = vpack.c.b16 %v1179, %v1178
        %v1223 = vpack.c.b16 %v1181, %v1180
        %v1224 = vpack.c.b16 %v1183, %v1182
        %v1225 = vpack.c.b16 %v1185, %v1184
        %v1226 = vpack.c.b16 %v1187, %v1186
        %v1227 = vpack.c.b16 %v1189, %v1188
        %v1228 = vpack.c.b16 %v1191, %v1190
        %v1229 = vpack.c.b16 %v1193, %v1192
        %v1230 = vpack.c.b16 %v1195, %v1194
        %v1231 = vpack.c.b16 %v1197, %v1196
        %v1232 = vpack.c.b16 %v1199, %v1198
        %v1233 = vpack.c.b16 %v1201, %v1200
        %1266 = vmatprep.subr.bf16.mxu0 0
        %1267 = vmatpush1.bf16.msra.mxu0 %v1202
        %1268 = vmatprep.subr.bf16.mxu0 0
        %1269 = vmatpush1.bf16.msra.mxu0 %v1203
        %1270 = vmatprep.subr.bf16.mxu0 0
        %1271 = vmatpush1.bf16.msra.mxu0 %v1204
        %1272 = vmatprep.subr.bf16.mxu0 0
        %1273 = vmatpush1.bf16.msra.mxu0 %v1205
        %1274 = vmatprep.subr.bf16.mxu0 0
        %1275 = vmatpush1.bf16.msra.mxu0 %v1206
        %1276 = vmatprep.subr.bf16.mxu0 0
        %1277 = vmatpush1.bf16.msra.mxu0 %v1207
        %1278 = vmatprep.subr.bf16.mxu0 0
        %1279 = vmatpush1.bf16.msra.mxu0 %v1208
        %1280 = vmatprep.subr.bf16.mxu0 0
        %1281 = vmatpush1.bf16.msra.mxu0 %v1209
        %1282 = vmatprep.subr.bf16.mxu0 0
        %1283 = vmatpush1.bf16.msra.mxu0 %v1210
        %1284 = vmatprep.subr.bf16.mxu0 0
        %1285 = vmatpush1.bf16.msra.mxu0 %v1211
        %1286 = vmatprep.subr.bf16.mxu0 0
        %1287 = vmatpush1.bf16.msra.mxu0 %v1212
        %1288 = vmatprep.subr.bf16.mxu0 0
        %1289 = vmatpush1.bf16.msra.mxu0 %v1213
        %1290 = vmatprep.subr.bf16.mxu0 0
        %1291 = vmatpush1.bf16.msra.mxu0 %v1214
        %1292 = vmatprep.subr.bf16.mxu0 0
        %1293 = vmatpush1.bf16.msra.mxu0 %v1215
        %1294 = vmatprep.subr.bf16.mxu0 0
        %1295 = vmatpush1.bf16.msra.mxu0 %v1216
        %1296 = vmatprep.subr.bf16.mxu0 0
        %1297 = vmatpush1.bf16.msra.mxu0 %v1217
        %1298 = vmatprep.mubr.bf16.mxu0 %v1011
        %1299 = vmatmul.mubr.bf16.gmra.mrb[0].mxu0 %v1010
        %v1300 = vpop.f32.mrb[0].mxu0
        %v1301 = vadd.f32 0.0, %v1300
        %v1302 = vpop.f32.mrb[0].mxu0
        %v1303 = vpop.f32.mrb[0].mxu0
        %v1304 = vadd.f32 0.0, %v1303
        %v1305 = vpop.f32.mrb[0].mxu0
        %1306 = vmatprep.mubr.bf16.mxu0 %v1015
        %1307 = vmatmul.mubr.bf16.gmra.mrb[0].mxu0 %v1014
        %v1308 = vpop.f32.mrb[0].mxu0
        %v1309 = vadd.f32 0.0, %v1308
        %v1310 = vpop.f32.mrb[0].mxu0
        %v1311 = vpop.f32.mrb[0].mxu0
        %v1312 = vadd.f32 0.0, %v1311
        %v1313 = vpop.f32.mrb[0].mxu0
        %1314 = vmatprep.mubr.bf16.mxu0 %v1019
        %1315 = vmatmul.mubr.bf16.gmra.mrb[0].mxu0 %v1018
        %v1316 = vpop.f32.mrb[0].mxu0
        %v1317 = vadd.f32 0.0, %v1316
        %v1318 = vpop.f32.mrb[0].mxu0
        %v1319 = vpop.f32.mrb[0].mxu0
        %v1320 = vadd.f32 0.0, %v1319
        %v1321 = vpop.f32.mrb[0].mxu0
        %1322 = vmatprep.mubr.bf16.mxu0 %v1023
        %1323 = vmatmul.mubr.bf16.gmra.mrb[0].mxu0 %v1022
        %v1324 = vpop.f32.mrb[0].mxu0
        %v1325 = vadd.f32 0.0, %v1324
        %v1326 = vpop.f32.mrb[0].mxu0
        %v1327 = vpop.f32.mrb[0].mxu0
        %v1328 = vadd.f32 0.0, %v1327
        %v1329 = vpop.f32.mrb[0].mxu0
        %1330 = vmatprep.mubr.bf16.mxu0 %v1027
        %1331 = vmatmul.mubr.bf16.gmra.mrb[0].mxu0 %v1026
        %v1332 = vpop.f32.mrb[0].mxu0
        %v1333 = vadd.f32 0.0, %v1332
        %v1334 = vpop.f32.mrb[0].mxu0
        %v1335 = vpop.f32.mrb[0].mxu0
        %v1336 = vadd.f32 0.0, %v1335
        %v1337 = vpop.f32.mrb[0].mxu0
        %1338 = vmatprep.mubr.bf16.mxu0 %v1031
        %1339 = vmatmul.mubr.bf16.gmra.mrb[0].mxu0 %v1030
        %v1340 = vpop.f32.mrb[0].mxu0
        %v1341 = vadd.f32 0.0, %v1340
        %v1342 = vpop.f32.mrb[0].mxu0
        %v1343 = vpop.f32.mrb[0].mxu0
        %v1344 = vadd.f32 0.0, %v1343
        %v1345 = vpop.f32.mrb[0].mxu0
        %1346 = vmatprep.mubr.bf16.mxu0 %v1035
        %1347 = vmatmul.mubr.bf16.gmra.mrb[0].mxu0 %v1034
        %v1348 = vpop.f32.mrb[0].mxu0
        %v1349 = vadd.f32 0.0, %v1348
        %v1350 = vpop.f32.mrb[0].mxu0
        %v1351 = vpop.f32.mrb[0].mxu0
        %v1352 = vadd.f32 0.0, %v1351
        %v1353 = vpop.f32.mrb[0].mxu0
        %1354 = vmatprep.mubr.bf16.mxu0 %v1039
        %1355 = vmatmul.mubr.bf16.gmra.mrb[0].mxu0 %v1038
        %v1356 = vpop.f32.mrb[0].mxu0
        %v1357 = vadd.f32 0.0, %v1356
        %v1358 = vpop.f32.mrb[0].mxu0
        %v1359 = vpop.f32.mrb[0].mxu0
        %v1360 = vadd.f32 0.0, %v1359
        %v1361 = vpop.f32.mrb[0].mxu0
        %1362 = vmatprep.mubr.bf16.mxu0 %v1043
        %1363 = vmatmul.mubr.bf16.gmra.mrb[0].mxu0 %v1042
        %v1364 = vpop.f32.mrb[0].mxu0
        %v1365 = vadd.f32 0.0, %v1364
        %v1366 = vpop.f32.mrb[0].mxu0
        %v1367 = vpop.f32.mrb[0].mxu0
        %v1368 = vadd.f32 0.0, %v1367
        %v1369 = vpop.f32.mrb[0].mxu0
        %1370 = vmatprep.mubr.bf16.mxu0 %v1047
        %1371 = vmatmul.mubr.bf16.gmra.mrb[0].mxu0 %v1046
        %v1372 = vpop.f32.mrb[0].mxu0
        %v1373 = vadd.f32 0.0, %v1372
        %v1374 = vpop.f32.mrb[0].mxu0
        %v1375 = vpop.f32.mrb[0].mxu0
        %v1376 = vadd.f32 0.0, %v1375
        %v1377 = vpop.f32.mrb[0].mxu0
        %1378 = vmatprep.mubr.bf16.mxu0 %v1051
        %1379 = vmatmul.mubr.bf16.gmra.mrb[0].mxu0 %v1050
        %v1380 = vpop.f32.mrb[0].mxu0
        %v1381 = vadd.f32 0.0, %v1380
        %v1382 = vpop.f32.mrb[0].mxu0
        %v1383 = vpop.f32.mrb[0].mxu0
        %v1384 = vadd.f32 0.0, %v1383
        %v1385 = vpop.f32.mrb[0].mxu0
        %1386 = vmatprep.mubr.bf16.mxu0 %v1055
        %1387 = vmatmul.mubr.bf16.gmra.mrb[0].mxu0 %v1054
        %v1388 = vpop.f32.mrb[0].mxu0
        %v1389 = vadd.f32 0.0, %v1388
        %v1390 = vpop.f32.mrb[0].mxu0
        %v1391 = vpop.f32.mrb[0].mxu0
        %v1392 = vadd.f32 0.0, %v1391
        %v1393 = vpop.f32.mrb[0].mxu0
        %1394 = vmatprep.mubr.bf16.mxu0 %v1059
        %1395 = vmatmul.mubr.bf16.gmra.mrb[0].mxu0 %v1058
        %v1396 = vpop.f32.mrb[0].mxu0
        %v1397 = vadd.f32 0.0, %v1396
        %v1398 = vpop.f32.mrb[0].mxu0
        %v1399 = vpop.f32.mrb[0].mxu0
        %v1400 = vadd.f32 0.0, %v1399
        %v1401 = vpop.f32.mrb[0].mxu0
        %1402 = vmatprep.mubr.bf16.mxu0 %v1063
        %1403 = vmatmul.mubr.bf16.gmra.mrb[0].mxu0 %v1062
        %v1404 = vpop.f32.mrb[0].mxu0
        %v1405 = vadd.f32 0.0, %v1404
        %v1406 = vpop.f32.mrb[0].mxu0
        %v1407 = vpop.f32.mrb[0].mxu0
        %v1408 = vadd.f32 0.0, %v1407
        %v1409 = vpop.f32.mrb[0].mxu0
        %1410 = vmatprep.mubr.bf16.mxu0 %v1067
        %1411 = vmatmul.mubr.bf16.gmra.mrb[0].mxu0 %v1066
        %v1412 = vpop.f32.mrb[0].mxu0
        %v1413 = vadd.f32 0.0, %v1412
        %v1414 = vpop.f32.mrb[0].mxu0
        %v1415 = vpop.f32.mrb[0].mxu0
        %v1416 = vadd.f32 0.0, %v1415
        %v1417 = vpop.f32.mrb[0].mxu0
        %1418 = vmatprep.mubr.bf16.mxu0 %v1071
        %1419 = vmatmul.mubr.bf16.gmra.mrb[0].mxu0 %v1070
        %v1420 = vpop.f32.mrb[0].mxu0
        %v1421 = vadd.f32 0.0, %v1420
        %v1422 = vpop.f32.mrb[0].mxu0
        %v1423 = vpop.f32.mrb[0].mxu0
        %v1424 = vadd.f32 0.0, %v1423
        %v1425 = vpop.f32.mrb[0].mxu0
        %1426 = vdwg.mxu0
        %1427 = vmatprep.subr.bf16.mxu0 0
        %1428 = vmatpush1.bf16.msra.mxu0 %v1218
        %1429 = vmatprep.subr.bf16.mxu0 0
        %1430 = vmatpush1.bf16.msra.mxu0 %v1219
        %1431 = vmatprep.subr.bf16.mxu0 0
        %1432 = vmatpush1.bf16.msra.mxu0 %v1220
        %1433 = vmatprep.subr.bf16.mxu0 0
        %1434 = vmatpush1.bf16.msra.mxu0 %v1221
        %1435 = vmatprep.subr.bf16.mxu0 0
        %1436 = vmatpush1.bf16.msra.mxu0 %v1222
        %1437 = vmatprep.subr.bf16.mxu0 0
        %1438 = vmatpush1.bf16.msra.mxu0 %v1223
        %1439 = vmatprep.subr.bf16.mxu0 0
        %1440 = vmatpush1.bf16.msra.mxu0 %v1224
        %1441 = vmatprep.subr.bf16.mxu0 0
        %1442 = vmatpush1.bf16.msra.mxu0 %v1225
        %1443 = vmatprep.subr.bf16.mxu0 0
        %1444 = vmatpush1.bf16.msra.mxu0 %v1226
        %1445 = vmatprep.subr.bf16.mxu0 0
        %1446 = vmatpush1.bf16.msra.mxu0 %v1227
        %1447 = vmatprep.subr.bf16.mxu0 0
        %1448 = vmatpush1.bf16.msra.mxu0 %v1228
        %1449 = vmatprep.subr.bf16.mxu0 0
        %1450 = vmatpush1.bf16.msra.mxu0 %v1229
        %1451 = vmatprep.subr.bf16.mxu0 0
        %1452 = vmatpush1.bf16.msra.mxu0 %v1230
        %1453 = vmatprep.subr.bf16.mxu0 0
        %1454 = vmatpush1.bf16.msra.mxu0 %v1231
        %1455 = vmatprep.subr.bf16.mxu0 0
        %1456 = vmatpush1.bf16.msra.mxu0 %v1232
        %1457 = vmatprep.subr.bf16.mxu0 0
        %1458 = vmatpush1.bf16.msra.mxu0 %v1233
        %1459 = vmatprep.mubr.bf16.mxu0 %v1013
        %1460 = vmatmul.mubr.bf16.gmra.mrb[0].mxu0 %v1012
        %v1461 = vpop.f32.mrb[0].mxu0
        %v1462 = vadd.f32 %v1301, %v1461
        %v1463 = vpop.f32.mrb[0].mxu0
        %v1464 = vpop.f32.mrb[0].mxu0
        %v1465 = vadd.f32 %v1304, %v1464
        %v1466 = vpop.f32.mrb[0].mxu0
        %1467 = vmatprep.mubr.bf16.mxu0 %v1017
        %1468 = vmatmul.mubr.bf16.gmra.mrb[0].mxu0 %v1016
        %v1469 = vpop.f32.mrb[0].mxu0
        %v1470 = vadd.f32 %v1309, %v1469
        %v1471 = vpop.f32.mrb[0].mxu0
        %v1472 = vpop.f32.mrb[0].mxu0
        %v1473 = vadd.f32 %v1312, %v1472
        %v1474 = vpop.f32.mrb[0].mxu0
        %1475 = vmatprep.mubr.bf16.mxu0 %v1021
        %1476 = vmatmul.mubr.bf16.gmra.mrb[0].mxu0 %v1020
        %v1477 = vpop.f32.mrb[0].mxu0
        %v1478 = vadd.f32 %v1317, %v1477
        %v1479 = vpop.f32.mrb[0].mxu0
        %v1480 = vpop.f32.mrb[0].mxu0
        %v1481 = vadd.f32 %v1320, %v1480
        %v1482 = vpop.f32.mrb[0].mxu0
        %1483 = vmatprep.mubr.bf16.mxu0 %v1025
        %1484 = vmatmul.mubr.bf16.gmra.mrb[0].mxu0 %v1024
        %v1485 = vpop.f32.mrb[0].mxu0
        %v1486 = vadd.f32 %v1325, %v1485
        %v1487 = vpop.f32.mrb[0].mxu0
        %v1488 = vpop.f32.mrb[0].mxu0
        %v1489 = vadd.f32 %v1328, %v1488
        %v1490 = vpop.f32.mrb[0].mxu0
        %1491 = vmatprep.mubr.bf16.mxu0 %v1029
        %1492 = vmatmul.mubr.bf16.gmra.mrb[0].mxu0 %v1028
        %v1493 = vpop.f32.mrb[0].mxu0
        %v1494 = vadd.f32 %v1333, %v1493
        %v1495 = vpop.f32.mrb[0].mxu0
        %v1496 = vpop.f32.mrb[0].mxu0
        %v1497 = vadd.f32 %v1336, %v1496
        %v1498 = vpop.f32.mrb[0].mxu0
        %1499 = vmatprep.mubr.bf16.mxu0 %v1033
        %1500 = vmatmul.mubr.bf16.gmra.mrb[0].mxu0 %v1032
        %v1501 = vpop.f32.mrb[0].mxu0
        %v1502 = vadd.f32 %v1341, %v1501
        %v1503 = vpop.f32.mrb[0].mxu0
        %v1504 = vpop.f32.mrb[0].mxu0
        %v1505 = vadd.f32 %v1344, %v1504
        %v1506 = vpop.f32.mrb[0].mxu0
        %1507 = vmatprep.mubr.bf16.mxu0 %v1037
        %1508 = vmatmul.mubr.bf16.gmra.mrb[0].mxu0 %v1036
        %v1509 = vpop.f32.mrb[0].mxu0
        %v1510 = vadd.f32 %v1349, %v1509
        %v1511 = vpop.f32.mrb[0].mxu0
        %v1512 = vpop.f32.mrb[0].mxu0
        %v1513 = vadd.f32 %v1352, %v1512
        %v1514 = vpop.f32.mrb[0].mxu0
        %1515 = vmatprep.mubr.bf16.mxu0 %v1041
        %1516 = vmatmul.mubr.bf16.gmra.mrb[0].mxu0 %v1040
        %v1517 = vpop.f32.mrb[0].mxu0
        %v1518 = vadd.f32 %v1357, %v1517
        %v1519 = vpop.f32.mrb[0].mxu0
        %v1520 = vpop.f32.mrb[0].mxu0
        %v1521 = vadd.f32 %v1360, %v1520
        %v1522 = vpop.f32.mrb[0].mxu0
        %1523 = vmatprep.mubr.bf16.mxu0 %v1045
        %1524 = vmatmul.mubr.bf16.gmra.mrb[0].mxu0 %v1044
        %v1525 = vpop.f32.mrb[0].mxu0
        %v1526 = vadd.f32 %v1365, %v1525
        %v1527 = vpop.f32.mrb[0].mxu0
        %v1528 = vpop.f32.mrb[0].mxu0
        %v1529 = vadd.f32 %v1368, %v1528
        %v1530 = vpop.f32.mrb[0].mxu0
        %1531 = vmatprep.mubr.bf16.mxu0 %v1049
        %1532 = vmatmul.mubr.bf16.gmra.mrb[0].mxu0 %v1048
        %v1533 = vpop.f32.mrb[0].mxu0
        %v1534 = vadd.f32 %v1373, %v1533
        %v1535 = vpop.f32.mrb[0].mxu0
        %v1536 = vpop.f32.mrb[0].mxu0
        %v1537 = vadd.f32 %v1376, %v1536
        %v1538 = vpop.f32.mrb[0].mxu0
        %1539 = vmatprep.mubr.bf16.mxu0 %v1053
        %1540 = vmatmul.mubr.bf16.gmra.mrb[0].mxu0 %v1052
        %v1541 = vpop.f32.mrb[0].mxu0
        %v1542 = vadd.f32 %v1381, %v1541
        %v1543 = vpop.f32.mrb[0].mxu0
        %v1544 = vpop.f32.mrb[0].mxu0
        %v1545 = vadd.f32 %v1384, %v1544
        %v1546 = vpop.f32.mrb[0].mxu0
        %1547 = vmatprep.mubr.bf16.mxu0 %v1057
        %1548 = vmatmul.mubr.bf16.gmra.mrb[0].mxu0 %v1056
        %v1549 = vpop.f32.mrb[0].mxu0
        %v1550 = vadd.f32 %v1389, %v1549
        %v1551 = vpop.f32.mrb[0].mxu0
        %v1552 = vpop.f32.mrb[0].mxu0
        %v1553 = vadd.f32 %v1392, %v1552
        %v1554 = vpop.f32.mrb[0].mxu0
        %1555 = vmatprep.mubr.bf16.mxu0 %v1061
        %1556 = vmatmul.mubr.bf16.gmra.mrb[0].mxu0 %v1060
        %v1557 = vpop.f32.mrb[0].mxu0
        %v1558 = vadd.f32 %v1397, %v1557
        %v1559 = vpop.f32.mrb[0].mxu0
        %v1560 = vpop.f32.mrb[0].mxu0
        %v1561 = vadd.f32 %v1400, %v1560
        %v1562 = vpop.f32.mrb[0].mxu0
        %1563 = vmatprep.mubr.bf16.mxu0 %v1065
        %1564 = vmatmul.mubr.bf16.gmra.mrb[0].mxu0 %v1064
        %v1565 = vpop.f32.mrb[0].mxu0
        %v1566 = vadd.f32 %v1405, %v1565
        %v1567 = vpop.f32.mrb[0].mxu0
        %v1568 = vpop.f32.mrb[0].mxu0
        %v1569 = vadd.f32 %v1408, %v1568
        %v1570 = vpop.f32.mrb[0].mxu0
        %1571 = vmatprep.mubr.bf16.mxu0 %v1069
        %1572 = vmatmul.mubr.bf16.gmra.mrb[0].mxu0 %v1068
        %v1573 = vpop.f32.mrb[0].mxu0
        %v1574 = vadd.f32 %v1413, %v1573
        %v1575 = vpop.f32.mrb[0].mxu0
        %v1576 = vpop.f32.mrb[0].mxu0
        %v1577 = vadd.f32 %v1416, %v1576
        %v1578 = vpop.f32.mrb[0].mxu0
        %1579 = vmatprep.mubr.bf16.mxu0 %v1073
        %1580 = vmatmul.mubr.bf16.gmra.mrb[0].mxu0 %v1072
        %v1581 = vpop.f32.mrb[0].mxu0
        %v1582 = vadd.f32 %v1421, %v1581
        %v1583 = vpop.f32.mrb[0].mxu0
        %v1584 = vpop.f32.mrb[0].mxu0
        %v1585 = vadd.f32 %v1424, %v1584
        %v1586 = vpop.f32.mrb[0].mxu0
        %1587 = vdwg.mxu0
        %v1588 = vpack.c.bf16 %v1465, %v1462
        %v1589 = vpack.c.bf16 %v1473, %v1470
        %v1590 = vpack.c.bf16 %v1481, %v1478
        %v1591 = vpack.c.bf16 %v1489, %v1486
        %v1592 = vpack.c.bf16 %v1497, %v1494
        %v1593 = vpack.c.bf16 %v1505, %v1502
        %v1594 = vpack.c.bf16 %v1513, %v1510
        %v1595 = vpack.c.bf16 %v1521, %v1518
        %v1596 = vpack.c.bf16 %v1529, %v1526
        %v1597 = vpack.c.bf16 %v1537, %v1534
        %v1598 = vpack.c.bf16 %v1545, %v1542
        %v1599 = vpack.c.bf16 %v1553, %v1550
        %v1600 = vpack.c.bf16 %v1561, %v1558
        %v1601 = vpack.c.bf16 %v1569, %v1566
        %v1602 = vpack.c.bf16 %v1577, %v1574
        %v1603 = vpack.c.bf16 %v1585, %v1582
        %v1604 = vld [vmem:[%s5] sm:$0xf]
        %v1605 = vld [vmem:[%s426] sm:$0xf]
        %v1606 = vld [vmem:[%s426 + $0x4] sm:$0xf]
        %v1607 = vld [vmem:[%s426 + $0x8] sm:$0xf]
        %v1608 = vld [vmem:[%s426 + $0xc] sm:$0xf]
        %v1609 = vld [vmem:[%s426 + $0x10] sm:$0xf]
        %v1610 = vld [vmem:[%s426 + $0x14] sm:$0xf]
        %v1611 = vld [vmem:[%s426 + $0x18] sm:$0xf]
        %v1612 = vld [vmem:[%s426 + $0x1c] sm:$0xf]
        %v1613 = vld [vmem:[%s426 + $0x20] sm:$0xf]
        %v1614 = vld [vmem:[%s426 + $0x24] sm:$0xf]
        %v1615 = vld [vmem:[%s426 + $0x28] sm:$0xf]
        %v1616 = vld [vmem:[%s426 + $0x2c] sm:$0xf]
        %v1617 = vld [vmem:[%s426 + $0x30] sm:$0xf]
        %v1618 = vld [vmem:[%s426 + $0x34] sm:$0xf]
        %v1619 = vld [vmem:[%s426 + $0x38] sm:$0xf]
        %v1620 = vld [vmem:[%s426 + $0x3c] sm:$0xf]
        %v1621 = vld [vmem:[%s426 + $0x40] sm:$0xf]
        %v1622 = vld [vmem:[%s426 + $0x44] sm:$0xf]
        %v1623 = vld [vmem:[%s426 + $0x48] sm:$0xf]
        %v1624 = vld [vmem:[%s426 + $0x4c] sm:$0xf]
        %v1625 = vld [vmem:[%s426 + $0x50] sm:$0xf]
        %v1626 = vld [vmem:[%s426 + $0x54] sm:$0xf]
        %v1627 = vld [vmem:[%s426 + $0x58] sm:$0xf]
        %v1628 = vld [vmem:[%s426 + $0x5c] sm:$0xf]
        %v1629 = vld [vmem:[%s426 + $0x60] sm:$0xf]
        %v1630 = vld [vmem:[%s426 + $0x64] sm:$0xf]
        %v1631 = vld [vmem:[%s426 + $0x68] sm:$0xf]
        %v1632 = vld [vmem:[%s426 + $0x6c] sm:$0xf]
        %v1633 = vld [vmem:[%s426 + $0x70] sm:$0xf]
        %v1634 = vld [vmem:[%s426 + $0x74] sm:$0xf]
        %v1635 = vld [vmem:[%s426 + $0x78] sm:$0xf]
        %v1636 = vld [vmem:[%s426 + $0x7c] sm:$0xf]
        %v1637 = vld [vmem:[%s6] sm:$0x3]
        %v1670 = vunpack.c.l.b16 %v1605
        %v1671 = vunpack.c.l.b16 %v1606
        %v1672 = vunpack.c.l.b16 %v1607
        %v1673 = vunpack.c.l.b16 %v1608
        %v1674 = vunpack.c.l.b16 %v1609
        %v1675 = vunpack.c.l.b16 %v1610
        %v1676 = vunpack.c.l.b16 %v1611
        %v1677 = vunpack.c.l.b16 %v1612
        %v1678 = vunpack.c.l.b16 %v1613
        %v1679 = vunpack.c.l.b16 %v1614
        %v1680 = vunpack.c.l.b16 %v1615
        %v1681 = vunpack.c.l.b16 %v1616
        %v1682 = vunpack.c.l.b16 %v1617
        %v1683 = vunpack.c.l.b16 %v1618
        %v1684 = vunpack.c.l.b16 %v1619
        %v1685 = vunpack.c.l.b16 %v1620
        %v1686 = vunpack.c.l.b16 %v1621
        %v1687 = vunpack.c.l.b16 %v1622
        %v1688 = vunpack.c.l.b16 %v1623
        %v1689 = vunpack.c.l.b16 %v1624
        %v1690 = vunpack.c.l.b16 %v1625
        %v1691 = vunpack.c.l.b16 %v1626
        %v1692 = vunpack.c.l.b16 %v1627
        %v1693 = vunpack.c.l.b16 %v1628
        %v1694 = vunpack.c.l.b16 %v1629
        %v1695 = vunpack.c.l.b16 %v1630
        %v1696 = vunpack.c.l.b16 %v1631
        %v1697 = vunpack.c.l.b16 %v1632
        %v1698 = vunpack.c.l.b16 %v1633
        %v1699 = vunpack.c.l.b16 %v1634
        %v1700 = vunpack.c.l.b16 %v1635
        %v1701 = vunpack.c.l.b16 %v1636
        %v1702 = vpack.c.b16 %v1671, %v1670
        %v1703 = vpack.c.b16 %v1673, %v1672
        %v1704 = vpack.c.b16 %v1675, %v1674
        %v1705 = vpack.c.b16 %v1677, %v1676
        %v1706 = vpack.c.b16 %v1679, %v1678
        %v1707 = vpack.c.b16 %v1681, %v1680
        %v1708 = vpack.c.b16 %v1683, %v1682
        %v1709 = vpack.c.b16 %v1685, %v1684
        %v1710 = vpack.c.b16 %v1687, %v1686
        %v1711 = vpack.c.b16 %v1689, %v1688
        %v1712 = vpack.c.b16 %v1691, %v1690
        %v1713 = vpack.c.b16 %v1693, %v1692
        %v1714 = vpack.c.b16 %v1695, %v1694
        %v1715 = vpack.c.b16 %v1697, %v1696
        %v1716 = vpack.c.b16 %v1699, %v1698
        %v1717 = vpack.c.b16 %v1701, %v1700
        %vm1718 = vcmask 31744
        %v1720 = vsel %vm1718, %v1702, 0
        %v1723 = vsel %vm1718, %v1703, 0
        %v1726 = vsel %vm1718, %v1704, 0
        %v1729 = vsel %vm1718, %v1705, 0
        %v1732 = vsel %vm1718, %v1706, 0
        %v1735 = vsel %vm1718, %v1707, 0
        %v1738 = vsel %vm1718, %v1708, 0
        %v1741 = vsel %vm1718, %v1709, 0
        %v1744 = vsel %vm1718, %v1710, 0
        %v1747 = vsel %vm1718, %v1711, 0
        %v1750 = vsel %vm1718, %v1712, 0
        %v1753 = vsel %vm1718, %v1713, 0
        %v1756 = vsel %vm1718, %v1714, 0
        %v1759 = vsel %vm1718, %v1715, 0
        %v1762 = vsel %vm1718, %v1716, 0
        %v1765 = vsel %vm1718, %v1717, 0
        %vm1767 = vcmask 1041408
        %v1769 = vsel %vm1767, %v1637, 0
        %1771 = vmatprep.subr.bf16.mxu0 0
        %1772 = vmatpush1.bf16.msra.mxu0 %v1769
        %1773 = vmatprep.subr.bf16.mxu0 0
        %1774 = vmatpush1.bf16.msra.mxu0 0
        %1775 = vmatprep.subr.bf16.mxu0 0
        %1776 = vmatpush1.bf16.msra.mxu0 0
        %1777 = vmatprep.subr.bf16.mxu0 0
        %1778 = vmatpush1.bf16.msra.mxu0 0
        %1779 = vmatprep.subr.bf16.mxu0 0
        %1780 = vmatpush1.bf16.msra.mxu0 0
        %1781 = vmatprep.subr.bf16.mxu0 0
        %1782 = vmatpush1.bf16.msra.mxu0 0
        %1783 = vmatprep.subr.bf16.mxu0 0
        %1784 = vmatpush1.bf16.msra.mxu0 0
        %1785 = vmatprep.subr.bf16.mxu0 0
        %1786 = vmatpush1.bf16.msra.mxu0 0
        %1787 = vmatprep.subr.bf16.mxu0 0
        %1788 = vmatpush1.bf16.msra.mxu0 0
        %1789 = vmatprep.subr.bf16.mxu0 0
        %1790 = vmatpush1.bf16.msra.mxu0 0
        %1791 = vmatprep.subr.bf16.mxu0 0
        %1792 = vmatpush1.bf16.msra.mxu0 0
        %1793 = vmatprep.subr.bf16.mxu0 0
        %1794 = vmatpush1.bf16.msra.mxu0 0
        %1795 = vmatprep.subr.bf16.mxu0 0
        %1796 = vmatpush1.bf16.msra.mxu0 0
        %1797 = vmatprep.subr.bf16.mxu0 0
        %1798 = vmatpush1.bf16.msra.mxu0 0
        %1799 = vmatprep.subr.bf16.mxu0 0
        %1800 = vmatpush1.bf16.msra.mxu0 0
        %1801 = vmatprep.subr.bf16.mxu0 0
        %1802 = vmatpush1.bf16.msra.mxu0 0
        %1803 = vmatprep.mubr.bf16.mxu0 0
        %1804 = vmatmul.mubr.bf16.gmra.mrb[0].mxu0 %v1720
        %v1805 = vpop.f32.mrb[0].mxu0
        %v1806 = vadd.f32 0.0, %v1805
        %v1807 = vpop.f32.mrb[0].mxu0
        %v1808 = vpop.f32.mrb[0].mxu0
        %v1809 = vadd.f32 0.0, %v1808
        %v1810 = vpop.f32.mrb[0].mxu0
        %1811 = vmatprep.mubr.bf16.mxu0 0
        %1812 = vmatmul.mubr.bf16.gmra.mrb[0].mxu0 %v1723
        %v1813 = vpop.f32.mrb[0].mxu0
        %v1814 = vadd.f32 0.0, %v1813
        %v1815 = vpop.f32.mrb[0].mxu0
        %v1816 = vpop.f32.mrb[0].mxu0
        %v1817 = vadd.f32 0.0, %v1816
        %v1818 = vpop.f32.mrb[0].mxu0
        %1819 = vmatprep.mubr.bf16.mxu0 0
        %1820 = vmatmul.mubr.bf16.gmra.mrb[0].mxu0 %v1726
        %v1821 = vpop.f32.mrb[0].mxu0
        %v1822 = vadd.f32 0.0, %v1821
        %v1823 = vpop.f32.mrb[0].mxu0
        %v1824 = vpop.f32.mrb[0].mxu0
        %v1825 = vadd.f32 0.0, %v1824
        %v1826 = vpop.f32.mrb[0].mxu0
        %1827 = vmatprep.mubr.bf16.mxu0 0
        %1828 = vmatmul.mubr.bf16.gmra.mrb[0].mxu0 %v1729
        %v1829 = vpop.f32.mrb[0].mxu0
        %v1830 = vadd.f32 0.0, %v1829
        %v1831 = vpop.f32.mrb[0].mxu0
        %v1832 = vpop.f32.mrb[0].mxu0
        %v1833 = vadd.f32 0.0, %v1832
        %v1834 = vpop.f32.mrb[0].mxu0
        %1835 = vmatprep.mubr.bf16.mxu0 0
        %1836 = vmatmul.mubr.bf16.gmra.mrb[0].mxu0 %v1732
        %v1837 = vpop.f32.mrb[0].mxu0
        %v1838 = vadd.f32 0.0, %v1837
        %v1839 = vpop.f32.mrb[0].mxu0
        %v1840 = vpop.f32.mrb[0].mxu0
        %v1841 = vadd.f32 0.0, %v1840
        %v1842 = vpop.f32.mrb[0].mxu0
        %1843 = vmatprep.mubr.bf16.mxu0 0
        %1844 = vmatmul.mubr.bf16.gmra.mrb[0].mxu0 %v1735
        %v1845 = vpop.f32.mrb[0].mxu0
        %v1846 = vadd.f32 0.0, %v1845
        %v1847 = vpop.f32.mrb[0].mxu0
        %v1848 = vpop.f32.mrb[0].mxu0
        %v1849 = vadd.f32 0.0, %v1848
        %v1850 = vpop.f32.mrb[0].mxu0
        %1851 = vmatprep.mubr.bf16.mxu0 0
        %1852 = vmatmul.mubr.bf16.gmra.mrb[0].mxu0 %v1738
        %v1853 = vpop.f32.mrb[0].mxu0
        %v1854 = vadd.f32 0.0, %v1853
        %v1855 = vpop.f32.mrb[0].mxu0
        %v1856 = vpop.f32.mrb[0].mxu0
        %v1857 = vadd.f32 0.0, %v1856
        %v1858 = vpop.f32.mrb[0].mxu0
        %1859 = vmatprep.mubr.bf16.mxu0 0
        %1860 = vmatmul.mubr.bf16.gmra.mrb[0].mxu0 %v1741
        %v1861 = vpop.f32.mrb[0].mxu0
        %v1862 = vadd.f32 0.0, %v1861
        %v1863 = vpop.f32.mrb[0].mxu0
        %v1864 = vpop.f32.mrb[0].mxu0
        %v1865 = vadd.f32 0.0, %v1864
        %v1866 = vpop.f32.mrb[0].mxu0
        %1867 = vmatprep.mubr.bf16.mxu0 0
        %1868 = vmatmul.mubr.bf16.gmra.mrb[0].mxu0 %v1744
        %v1869 = vpop.f32.mrb[0].mxu0
        %v1870 = vadd.f32 0.0, %v1869
        %v1871 = vpop.f32.mrb[0].mxu0
        %v1872 = vpop.f32.mrb[0].mxu0
        %v1873 = vadd.f32 0.0, %v1872
        %v1874 = vpop.f32.mrb[0].mxu0
        %1875 = vmatprep.mubr.bf16.mxu0 0
        %1876 = vmatmul.mubr.bf16.gmra.mrb[0].mxu0 %v1747
        %v1877 = vpop.f32.mrb[0].mxu0
        %v1878 = vadd.f32 0.0, %v1877
        %v1879 = vpop.f32.mrb[0].mxu0
        %v1880 = vpop.f32.mrb[0].mxu0
        %v1881 = vadd.f32 0.0, %v1880
        %v1882 = vpop.f32.mrb[0].mxu0
        %1883 = vmatprep.mubr.bf16.mxu0 0
        %1884 = vmatmul.mubr.bf16.gmra.mrb[0].mxu0 %v1750
        %v1885 = vpop.f32.mrb[0].mxu0
        %v1886 = vadd.f32 0.0, %v1885
        %v1887 = vpop.f32.mrb[0].mxu0
        %v1888 = vpop.f32.mrb[0].mxu0
        %v1889 = vadd.f32 0.0, %v1888
        %v1890 = vpop.f32.mrb[0].mxu0
        %1891 = vmatprep.mubr.bf16.mxu0 0
        %1892 = vmatmul.mubr.bf16.gmra.mrb[0].mxu0 %v1753
        %v1893 = vpop.f32.mrb[0].mxu0
        %v1894 = vadd.f32 0.0, %v1893
        %v1895 = vpop.f32.mrb[0].mxu0
        %v1896 = vpop.f32.mrb[0].mxu0
        %v1897 = vadd.f32 0.0, %v1896
        %v1898 = vpop.f32.mrb[0].mxu0
        %1899 = vmatprep.mubr.bf16.mxu0 0
        %1900 = vmatmul.mubr.bf16.gmra.mrb[0].mxu0 %v1756
        %v1901 = vpop.f32.mrb[0].mxu0
        %v1902 = vadd.f32 0.0, %v1901
        %v1903 = vpop.f32.mrb[0].mxu0
        %v1904 = vpop.f32.mrb[0].mxu0
        %v1905 = vadd.f32 0.0, %v1904
        %v1906 = vpop.f32.mrb[0].mxu0
        %1907 = vmatprep.mubr.bf16.mxu0 0
        %1908 = vmatmul.mubr.bf16.gmra.mrb[0].mxu0 %v1759
        %v1909 = vpop.f32.mrb[0].mxu0
        %v1910 = vadd.f32 0.0, %v1909
        %v1911 = vpop.f32.mrb[0].mxu0
        %v1912 = vpop.f32.mrb[0].mxu0
        %v1913 = vadd.f32 0.0, %v1912
        %v1914 = vpop.f32.mrb[0].mxu0
        %1915 = vmatprep.mubr.bf16.mxu0 0
        %1916 = vmatmul.mubr.bf16.gmra.mrb[0].mxu0 %v1762
        %v1917 = vpop.f32.mrb[0].mxu0
        %v1918 = vadd.f32 0.0, %v1917
        %v1919 = vpop.f32.mrb[0].mxu0
        %v1920 = vpop.f32.mrb[0].mxu0
        %v1921 = vadd.f32 0.0, %v1920
        %v1922 = vpop.f32.mrb[0].mxu0
        %1923 = vmatprep.mubr.bf16.mxu0 0
        %1924 = vmatmul.mubr.bf16.gmra.mrb[0].mxu0 %v1765
        %v1925 = vpop.f32.mrb[0].mxu0
        %v1926 = vadd.f32 0.0, %v1925
        %v1927 = vpop.f32.mrb[0].mxu0
        %v1928 = vpop.f32.mrb[0].mxu0
        %v1929 = vadd.f32 0.0, %v1928
        %v1930 = vpop.f32.mrb[0].mxu0
        %1931 = vdwg.mxu0
        %v1933 = vsel %vm539, %v1588, 0
        %v1936 = vsel %vm539, %v1589, 0
        %v1939 = vsel %vm539, %v1590, 0
        %v1942 = vsel %vm539, %v1591, 0
        %v1945 = vsel %vm539, %v1592, 0
        %v1948 = vsel %vm539, %v1593, 0
        %v1951 = vsel %vm539, %v1594, 0
        %v1954 = vsel %vm539, %v1595, 0
        %v1957 = vsel %vm539, %v1596, 0
        %v1960 = vsel %vm539, %v1597, 0
        %v1963 = vsel %vm539, %v1598, 0
        %v1966 = vsel %vm539, %v1599, 0
        %v1969 = vsel %vm539, %v1600, 0
        %v1972 = vsel %vm539, %v1601, 0
        %v1975 = vsel %vm539, %v1602, 0
        %v1978 = vsel %vm539, %v1603, 0
        %v1981 = vsel %vm552, %v1604, 0
        %1983 = vmatprep.subr.bf16.mxu0 0
        %1984 = vmatpush1.bf16.msra.mxu0 %v1981
        %1985 = vmatprep.subr.bf16.mxu0 0
        %1986 = vmatpush1.bf16.msra.mxu0 0
        %1987 = vmatprep.subr.bf16.mxu0 0
        %1988 = vmatpush1.bf16.msra.mxu0 0
        %1989 = vmatprep.subr.bf16.mxu0 0
        %1990 = vmatpush1.bf16.msra.mxu0 0
        %1991 = vmatprep.subr.bf16.mxu0 0
        %1992 = vmatpush1.bf16.msra.mxu0 0
        %1993 = vmatprep.subr.bf16.mxu0 0
        %1994 = vmatpush1.bf16.msra.mxu0 0
        %1995 = vmatprep.subr.bf16.mxu0 0
        %1996 = vmatpush1.bf16.msra.mxu0 0
        %1997 = vmatprep.subr.bf16.mxu0 0
        %1998 = vmatpush1.bf16.msra.mxu0 0
        %1999 = vmatprep.subr.bf16.mxu0 0
        %2000 = vmatpush1.bf16.msra.mxu0 0
        %2001 = vmatprep.subr.bf16.mxu0 0
        %2002 = vmatpush1.bf16.msra.mxu0 0
        %2003 = vmatprep.subr.bf16.mxu0 0
        %2004 = vmatpush1.bf16.msra.mxu0 0
        %2005 = vmatprep.subr.bf16.mxu0 0
        %2006 = vmatpush1.bf16.msra.mxu0 0
        %2007 = vmatprep.subr.bf16.mxu0 0
        %2008 = vmatpush1.bf16.msra.mxu0 0
        %2009 = vmatprep.subr.bf16.mxu0 0
        %2010 = vmatpush1.bf16.msra.mxu0 0
        %2011 = vmatprep.subr.bf16.mxu0 0
        %2012 = vmatpush1.bf16.msra.mxu0 0
        %2013 = vmatprep.subr.bf16.mxu0 0
        %2014 = vmatpush1.bf16.msra.mxu0 0
        %2015 = vmatprep.mubr.bf16.mxu0 0
        %2016 = vmatmul.mubr.bf16.gmra.mrb[0].mxu0 %v1933
        %v2017 = vpop.f32.mrb[0].mxu0
        %v2018 = vadd.f32 %v1806, %v2017
        %v2019 = vpop.f32.mrb[0].mxu0
        %v2020 = vpop.f32.mrb[0].mxu0
        %v2021 = vadd.f32 %v1809, %v2020
        %v2022 = vpop.f32.mrb[0].mxu0
        %2023 = vmatprep.mubr.bf16.mxu0 0
        %2024 = vmatmul.mubr.bf16.gmra.mrb[0].mxu0 %v1936
        %v2025 = vpop.f32.mrb[0].mxu0
        %v2026 = vadd.f32 %v1814, %v2025
        %v2027 = vpop.f32.mrb[0].mxu0
        %v2028 = vpop.f32.mrb[0].mxu0
        %v2029 = vadd.f32 %v1817, %v2028
        %v2030 = vpop.f32.mrb[0].mxu0
        %2031 = vmatprep.mubr.bf16.mxu0 0
        %2032 = vmatmul.mubr.bf16.gmra.mrb[0].mxu0 %v1939
        %v2033 = vpop.f32.mrb[0].mxu0
        %v2034 = vadd.f32 %v1822, %v2033
        %v2035 = vpop.f32.mrb[0].mxu0
        %v2036 = vpop.f32.mrb[0].mxu0
        %v2037 = vadd.f32 %v1825, %v2036
        %v2038 = vpop.f32.mrb[0].mxu0
        %2039 = vmatprep.mubr.bf16.mxu0 0
        %2040 = vmatmul.mubr.bf16.gmra.mrb[0].mxu0 %v1942
        %v2041 = vpop.f32.mrb[0].mxu0
        %v2042 = vadd.f32 %v1830, %v2041
        %v2043 = vpop.f32.mrb[0].mxu0
        %v2044 = vpop.f32.mrb[0].mxu0
        %v2045 = vadd.f32 %v1833, %v2044
        %v2046 = vpop.f32.mrb[0].mxu0
        %2047 = vmatprep.mubr.bf16.mxu0 0
        %2048 = vmatmul.mubr.bf16.gmra.mrb[0].mxu0 %v1945
        %v2049 = vpop.f32.mrb[0].mxu0
        %v2050 = vadd.f32 %v1838, %v2049
        %v2051 = vpop.f32.mrb[0].mxu0
        %v2052 = vpop.f32.mrb[0].mxu0
        %v2053 = vadd.f32 %v1841, %v2052
        %v2054 = vpop.f32.mrb[0].mxu0
        %2055 = vmatprep.mubr.bf16.mxu0 0
        %2056 = vmatmul.mubr.bf16.gmra.mrb[0].mxu0 %v1948
        %v2057 = vpop.f32.mrb[0].mxu0
        %v2058 = vadd.f32 %v1846, %v2057
        %v2059 = vpop.f32.mrb[0].mxu0
        %v2060 = vpop.f32.mrb[0].mxu0
        %v2061 = vadd.f32 %v1849, %v2060
        %v2062 = vpop.f32.mrb[0].mxu0
        %2063 = vmatprep.mubr.bf16.mxu0 0
        %2064 = vmatmul.mubr.bf16.gmra.mrb[0].mxu0 %v1951
        %v2065 = vpop.f32.mrb[0].mxu0
        %v2066 = vadd.f32 %v1854, %v2065
        %v2067 = vpop.f32.mrb[0].mxu0
        %v2068 = vpop.f32.mrb[0].mxu0
        %v2069 = vadd.f32 %v1857, %v2068
        %v2070 = vpop.f32.mrb[0].mxu0
        %2071 = vmatprep.mubr.bf16.mxu0 0
        %2072 = vmatmul.mubr.bf16.gmra.mrb[0].mxu0 %v1954
        %v2073 = vpop.f32.mrb[0].mxu0
        %v2074 = vadd.f32 %v1862, %v2073
        %v2075 = vpop.f32.mrb[0].mxu0
        %v2076 = vpop.f32.mrb[0].mxu0
        %v2077 = vadd.f32 %v1865, %v2076
        %v2078 = vpop.f32.mrb[0].mxu0
        %2079 = vmatprep.mubr.bf16.mxu0 0
        %2080 = vmatmul.mubr.bf16.gmra.mrb[0].mxu0 %v1957
        %v2081 = vpop.f32.mrb[0].mxu0
        %v2082 = vadd.f32 %v1870, %v2081
        %v2083 = vpop.f32.mrb[0].mxu0
        %v2084 = vpop.f32.mrb[0].mxu0
        %v2085 = vadd.f32 %v1873, %v2084
        %v2086 = vpop.f32.mrb[0].mxu0
        %2087 = vmatprep.mubr.bf16.mxu0 0
        %2088 = vmatmul.mubr.bf16.gmra.mrb[0].mxu0 %v1960
        %v2089 = vpop.f32.mrb[0].mxu0
        %v2090 = vadd.f32 %v1878, %v2089
        %v2091 = vpop.f32.mrb[0].mxu0
        %v2092 = vpop.f32.mrb[0].mxu0
        %v2093 = vadd.f32 %v1881, %v2092
        %v2094 = vpop.f32.mrb[0].mxu0
        %2095 = vmatprep.mubr.bf16.mxu0 0
        %2096 = vmatmul.mubr.bf16.gmra.mrb[0].mxu0 %v1963
        %v2097 = vpop.f32.mrb[0].mxu0
        %v2098 = vadd.f32 %v1886, %v2097
        %v2099 = vpop.f32.mrb[0].mxu0
        %v2100 = vpop.f32.mrb[0].mxu0
        %v2101 = vadd.f32 %v1889, %v2100
        %v2102 = vpop.f32.mrb[0].mxu0
        %2103 = vmatprep.mubr.bf16.mxu0 0
        %2104 = vmatmul.mubr.bf16.gmra.mrb[0].mxu0 %v1966
        %v2105 = vpop.f32.mrb[0].mxu0
        %v2106 = vadd.f32 %v1894, %v2105
        %v2107 = vpop.f32.mrb[0].mxu0
        %v2108 = vpop.f32.mrb[0].mxu0
        %v2109 = vadd.f32 %v1897, %v2108
        %v2110 = vpop.f32.mrb[0].mxu0
        %2111 = vmatprep.mubr.bf16.mxu0 0
        %2112 = vmatmul.mubr.bf16.gmra.mrb[0].mxu0 %v1969
        %v2113 = vpop.f32.mrb[0].mxu0
        %v2114 = vadd.f32 %v1902, %v2113
        %v2115 = vpop.f32.mrb[0].mxu0
        %v2116 = vpop.f32.mrb[0].mxu0
        %v2117 = vadd.f32 %v1905, %v2116
        %v2118 = vpop.f32.mrb[0].mxu0
        %2119 = vmatprep.mubr.bf16.mxu0 0
        %2120 = vmatmul.mubr.bf16.gmra.mrb[0].mxu0 %v1972
        %v2121 = vpop.f32.mrb[0].mxu0
        %v2122 = vadd.f32 %v1910, %v2121
        %v2123 = vpop.f32.mrb[0].mxu0
        %v2124 = vpop.f32.mrb[0].mxu0
        %v2125 = vadd.f32 %v1913, %v2124
        %v2126 = vpop.f32.mrb[0].mxu0
        %2127 = vmatprep.mubr.bf16.mxu0 0
        %2128 = vmatmul.mubr.bf16.gmra.mrb[0].mxu0 %v1975
        %v2129 = vpop.f32.mrb[0].mxu0
        %v2130 = vadd.f32 %v1918, %v2129
        %v2131 = vpop.f32.mrb[0].mxu0
        %v2132 = vpop.f32.mrb[0].mxu0
        %v2133 = vadd.f32 %v1921, %v2132
        %v2134 = vpop.f32.mrb[0].mxu0
        %2135 = vmatprep.mubr.bf16.mxu0 0
        %2136 = vmatmul.mubr.bf16.gmra.mrb[0].mxu0 %v1978
        %v2137 = vpop.f32.mrb[0].mxu0
        %v2138 = vadd.f32 %v1926, %v2137
        %v2139 = vpop.f32.mrb[0].mxu0
        %v2140 = vpop.f32.mrb[0].mxu0
        %v2141 = vadd.f32 %v1929, %v2140
        %v2142 = vpop.f32.mrb[0].mxu0
        %2143 = vdwg.mxu0
        %v2144 = vadd.f32 %v591, %v2018
        %v2145 = vadd.f32 %v594, %v2021
        %v2146 = vadd.f32 %v599, %v2026
        %v2147 = vadd.f32 %v602, %v2029
        %v2148 = vadd.f32 %v607, %v2034
        %v2149 = vadd.f32 %v610, %v2037
        %v2150 = vadd.f32 %v615, %v2042
        %v2151 = vadd.f32 %v618, %v2045
        %v2152 = vmax.f32 %v2144, 0.0
        %v2153 = vmax.f32 %v2145, 0.0
        %v2154 = vmax.f32 %v2146, 0.0
        %v2155 = vmax.f32 %v2147, 0.0
        %v2156 = vmax.f32 %v2148, 0.0
        %v2157 = vmax.f32 %v2149, 0.0
        %v2158 = vmax.f32 %v2150, 0.0
        %v2159 = vmax.f32 %v2151, 0.0
        %v2160 = vadd.f32 %v591, %v2050
        %v2161 = vadd.f32 %v594, %v2053
        %v2162 = vadd.f32 %v599, %v2058
        %v2163 = vadd.f32 %v602, %v2061
        %v2164 = vadd.f32 %v607, %v2066
        %v2165 = vadd.f32 %v610, %v2069
        %v2166 = vadd.f32 %v615, %v2074
        %v2167 = vadd.f32 %v618, %v2077
        %v2168 = vmax.f32 %v2160, 0.0
        %v2169 = vmax.f32 %v2161, 0.0
        %v2170 = vmax.f32 %v2162, 0.0
        %v2171 = vmax.f32 %v2163, 0.0
        %v2172 = vmax.f32 %v2164, 0.0
        %v2173 = vmax.f32 %v2165, 0.0
        %v2174 = vmax.f32 %v2166, 0.0
        %v2175 = vmax.f32 %v2167, 0.0
        %v2176 = vadd.f32 %v591, %v2082
        %v2177 = vadd.f32 %v594, %v2085
        %v2178 = vadd.f32 %v599, %v2090
        %v2179 = vadd.f32 %v602, %v2093
        %v2180 = vadd.f32 %v607, %v2098
        %v2181 = vadd.f32 %v610, %v2101
        %v2182 = vadd.f32 %v615, %v2106
        %v2183 = vadd.f32 %v618, %v2109
        %v2184 = vmax.f32 %v2176, 0.0
        %v2185 = vmax.f32 %v2177, 0.0
        %v2186 = vmax.f32 %v2178, 0.0
        %v2187 = vmax.f32 %v2179, 0.0
        %v2188 = vmax.f32 %v2180, 0.0
        %v2189 = vmax.f32 %v2181, 0.0
        %v2190 = vmax.f32 %v2182, 0.0
        %v2191 = vmax.f32 %v2183, 0.0
        %v2192 = vadd.f32 %v591, %v2114
        %v2193 = vadd.f32 %v594, %v2117
        %v2194 = vadd.f32 %v599, %v2122
        %v2195 = vadd.f32 %v602, %v2125
        %v2196 = vadd.f32 %v607, %v2130
        %v2197 = vadd.f32 %v610, %v2133
        %v2198 = vadd.f32 %v615, %v2138
        %v2199 = vadd.f32 %v618, %v2141
        %v2200 = vmax.f32 %v2192, 0.0
        %v2201 = vmax.f32 %v2193, 0.0
        %v2202 = vmax.f32 %v2194, 0.0
        %v2203 = vmax.f32 %v2195, 0.0
        %v2204 = vmax.f32 %v2196, 0.0
        %v2205 = vmax.f32 %v2197, 0.0
        %v2206 = vmax.f32 %v2198, 0.0
        %v2207 = vmax.f32 %v2199, 0.0
        %v2208 = vpack.c.bf16 %v2153, %v2152
        %v2209 = vpack.c.bf16 %v2155, %v2154
        %v2210 = vpack.c.bf16 %v2157, %v2156
        %v2211 = vpack.c.bf16 %v2159, %v2158
        %v2212 = vpack.c.bf16 %v2169, %v2168
        %v2213 = vpack.c.bf16 %v2171, %v2170
        %v2214 = vpack.c.bf16 %v2173, %v2172
        %v2215 = vpack.c.bf16 %v2175, %v2174
        %v2216 = vpack.c.bf16 %v2185, %v2184
        %v2217 = vpack.c.bf16 %v2187, %v2186
        %v2218 = vpack.c.bf16 %v2189, %v2188
        %v2219 = vpack.c.bf16 %v2191, %v2190
        %v2220 = vpack.c.bf16 %v2201, %v2200
        %v2221 = vpack.c.bf16 %v2203, %v2202
        %v2222 = vpack.c.bf16 %v2205, %v2204
        %v2223 = vpack.c.bf16 %v2207, %v2206
        %v2224 = vld [vmem:[%s7] sm:$0xf]
        %v2225 = vld [vmem:[%s7 + $0x4] sm:$0xf]
        %v2226 = vld [vmem:[%s7 + $0x8] sm:$0xf]
        %v2227 = vld [vmem:[%s7 + $0xc] sm:$0xf]
        %v2228 = vld [vmem:[%s8] sm:$0x1]
        %v2230 = vlaneseq
        %v2231 = vshrl.u32 %v2230, 7
        %v2232 = vsub.s32 0, %v2231
        %v2233 = vrot.slane %v2228, %v2232
        %v2239 = vunpack.c.l.b16 %v2224
        %v2240 = vunpack.c.l.b16 %v2225
        %v2241 = vunpack.c.l.b16 %v2226
        %v2242 = vunpack.c.l.b16 %v2227
        %v2243 = vpack.c.b16 %v2240, %v2239
        %v2244 = vpack.c.b16 %v2242, %v2241
        %vm2247 = vcmask 261120
        %v2249 = vsel %vm2247, %v2208, 0
        %v2252 = vsel %vm2247, %v2209, 0
        %v2255 = vsel %vm2247, %v2210, 0
        %v2258 = vsel %vm2247, %v2211, 0
        %v2261 = vsel %vm2247, %v2212, 0
        %v2264 = vsel %vm2247, %v2213, 0
        %v2267 = vsel %vm2247, %v2214, 0
        %v2270 = vsel %vm2247, %v2215, 0
        %v2273 = vsel %vm2247, %v2216, 0
        %v2276 = vsel %vm2247, %v2217, 0
        %v2279 = vsel %vm2247, %v2218, 0
        %v2282 = vsel %vm2247, %v2219, 0
        %v2285 = vsel %vm2247, %v2220, 0
        %v2288 = vsel %vm2247, %v2221, 0
        %v2291 = vsel %vm2247, %v2222, 0
        %v2294 = vsel %vm2247, %v2223, 0
        %2296 = vmatprep.subr.bf16.mxu0 0
        %2297 = vmatpush1.bf16.msra.mxu0 %v2243
        %2298 = vmatprep.subr.bf16.mxu0 0
        %2299 = vmatpush1.bf16.msra.mxu0 %v2244
        %2300 = vmatprep.subr.bf16.mxu0 0
        %2301 = vmatpush1.bf16.msra.mxu0 0
        %2302 = vmatprep.subr.bf16.mxu0 0
        %2303 = vmatpush1.bf16.msra.mxu0 0
        %2304 = vmatprep.subr.bf16.mxu0 0
        %2305 = vmatpush1.bf16.msra.mxu0 0
        %2306 = vmatprep.subr.bf16.mxu0 0
        %2307 = vmatpush1.bf16.msra.mxu0 0
        %2308 = vmatprep.subr.bf16.mxu0 0
        %2309 = vmatpush1.bf16.msra.mxu0 0
        %2310 = vmatprep.subr.bf16.mxu0 0
        %2311 = vmatpush1.bf16.msra.mxu0 0
        %2312 = vmatprep.subr.bf16.mxu0 0
        %2313 = vmatpush1.bf16.msra.mxu0 0
        %2314 = vmatprep.subr.bf16.mxu0 0
        %2315 = vmatpush1.bf16.msra.mxu0 0
        %2316 = vmatprep.subr.bf16.mxu0 0
        %2317 = vmatpush1.bf16.msra.mxu0 0
        %2318 = vmatprep.subr.bf16.mxu0 0
        %2319 = vmatpush1.bf16.msra.mxu0 0
        %2320 = vmatprep.subr.bf16.mxu0 0
        %2321 = vmatpush1.bf16.msra.mxu0 0
        %2322 = vmatprep.subr.bf16.mxu0 0
        %2323 = vmatpush1.bf16.msra.mxu0 0
        %2324 = vmatprep.subr.bf16.mxu0 0
        %2325 = vmatpush1.bf16.msra.mxu0 0
        %2326 = vmatprep.subr.bf16.mxu0 0
        %2327 = vmatpush1.bf16.msra.mxu0 0
        %2328 = vmatprep.mubr.bf16.mxu0 0
        %2329 = vmatmul.mubr.bf16.gmra.mrb[0].mxu0 %v2249
        %v2330 = vpop.f32.mrb[0].mxu0
        %v2331 = vadd.f32 %v2233, %v2330
        %v2332 = vpop.f32.mrb[0].mxu0
        %v2333 = vpop.f32.mrb[0].mxu0
        %v2334 = vadd.f32 %v2233, %v2333
        %v2335 = vpop.f32.mrb[0].mxu0
        %2336 = vmatprep.mubr.bf16.mxu0 0
        %2337 = vmatmul.mubr.bf16.gmra.mrb[0].mxu0 %v2252
        %v2338 = vpop.f32.mrb[0].mxu0
        %v2339 = vadd.f32 %v2233, %v2338
        %v2340 = vpop.f32.mrb[0].mxu0
        %v2341 = vpop.f32.mrb[0].mxu0
        %v2342 = vadd.f32 %v2233, %v2341
        %v2343 = vpop.f32.mrb[0].mxu0
        %2344 = vmatprep.mubr.bf16.mxu0 0
        %2345 = vmatmul.mubr.bf16.gmra.mrb[0].mxu0 %v2255
        %v2346 = vpop.f32.mrb[0].mxu0
        %v2347 = vadd.f32 %v2233, %v2346
        %v2348 = vpop.f32.mrb[0].mxu0
        %v2349 = vpop.f32.mrb[0].mxu0
        %v2350 = vadd.f32 %v2233, %v2349
        %v2351 = vpop.f32.mrb[0].mxu0
        %2352 = vmatprep.mubr.bf16.mxu0 0
        %2353 = vmatmul.mubr.bf16.gmra.mrb[0].mxu0 %v2258
        %v2354 = vpop.f32.mrb[0].mxu0
        %v2355 = vadd.f32 %v2233, %v2354
        %v2356 = vpop.f32.mrb[0].mxu0
        %v2357 = vpop.f32.mrb[0].mxu0
        %v2358 = vadd.f32 %v2233, %v2357
        %v2359 = vpop.f32.mrb[0].mxu0
        %2360 = vmatprep.mubr.bf16.mxu0 0
        %2361 = vmatmul.mubr.bf16.gmra.mrb[0].mxu0 %v2261
        %v2362 = vpop.f32.mrb[0].mxu0
        %v2363 = vadd.f32 %v2233, %v2362
        %v2364 = vpop.f32.mrb[0].mxu0
        %v2365 = vpop.f32.mrb[0].mxu0
        %v2366 = vadd.f32 %v2233, %v2365
        %v2367 = vpop.f32.mrb[0].mxu0
        %2368 = vmatprep.mubr.bf16.mxu0 0
        %2369 = vmatmul.mubr.bf16.gmra.mrb[0].mxu0 %v2264
        %v2370 = vpop.f32.mrb[0].mxu0
        %v2371 = vadd.f32 %v2233, %v2370
        %v2372 = vpop.f32.mrb[0].mxu0
        %v2373 = vpop.f32.mrb[0].mxu0
        %v2374 = vadd.f32 %v2233, %v2373
        %v2375 = vpop.f32.mrb[0].mxu0
        %2376 = vmatprep.mubr.bf16.mxu0 0
        %2377 = vmatmul.mubr.bf16.gmra.mrb[0].mxu0 %v2267
        %v2378 = vpop.f32.mrb[0].mxu0
        %v2379 = vadd.f32 %v2233, %v2378
        %v2380 = vpop.f32.mrb[0].mxu0
        %v2381 = vpop.f32.mrb[0].mxu0
        %v2382 = vadd.f32 %v2233, %v2381
        %v2383 = vpop.f32.mrb[0].mxu0
        %2384 = vmatprep.mubr.bf16.mxu0 0
        %2385 = vmatmul.mubr.bf16.gmra.mrb[0].mxu0 %v2270
        %v2386 = vpop.f32.mrb[0].mxu0
        %v2387 = vadd.f32 %v2233, %v2386
        %v2388 = vpop.f32.mrb[0].mxu0
        %v2389 = vpop.f32.mrb[0].mxu0
        %v2390 = vadd.f32 %v2233, %v2389
        %v2391 = vpop.f32.mrb[0].mxu0
        %2392 = vmatprep.mubr.bf16.mxu0 0
        %2393 = vmatmul.mubr.bf16.gmra.mrb[0].mxu0 %v2273
        %v2394 = vpop.f32.mrb[0].mxu0
        %v2395 = vadd.f32 %v2233, %v2394
        %v2396 = vpop.f32.mrb[0].mxu0
        %v2397 = vpop.f32.mrb[0].mxu0
        %v2398 = vadd.f32 %v2233, %v2397
        %v2399 = vpop.f32.mrb[0].mxu0
        %2400 = vmatprep.mubr.bf16.mxu0 0
        %2401 = vmatmul.mubr.bf16.gmra.mrb[0].mxu0 %v2276
        %v2402 = vpop.f32.mrb[0].mxu0
        %v2403 = vadd.f32 %v2233, %v2402
        %v2404 = vpop.f32.mrb[0].mxu0
        %v2405 = vpop.f32.mrb[0].mxu0
        %v2406 = vadd.f32 %v2233, %v2405
        %v2407 = vpop.f32.mrb[0].mxu0
        %2408 = vmatprep.mubr.bf16.mxu0 0
        %2409 = vmatmul.mubr.bf16.gmra.mrb[0].mxu0 %v2279
        %v2410 = vpop.f32.mrb[0].mxu0
        %v2411 = vadd.f32 %v2233, %v2410
        %v2412 = vpop.f32.mrb[0].mxu0
        %v2413 = vpop.f32.mrb[0].mxu0
        %v2414 = vadd.f32 %v2233, %v2413
        %v2415 = vpop.f32.mrb[0].mxu0
        %2416 = vmatprep.mubr.bf16.mxu0 0
        %2417 = vmatmul.mubr.bf16.gmra.mrb[0].mxu0 %v2282
        %v2418 = vpop.f32.mrb[0].mxu0
        %v2419 = vadd.f32 %v2233, %v2418
        %v2420 = vpop.f32.mrb[0].mxu0
        %v2421 = vpop.f32.mrb[0].mxu0
        %v2422 = vadd.f32 %v2233, %v2421
        %v2423 = vpop.f32.mrb[0].mxu0
        %2424 = vmatprep.mubr.bf16.mxu0 0
        %2425 = vmatmul.mubr.bf16.gmra.mrb[0].mxu0 %v2285
        %v2426 = vpop.f32.mrb[0].mxu0
        %v2427 = vadd.f32 %v2233, %v2426
        %v2428 = vpop.f32.mrb[0].mxu0
        %v2429 = vpop.f32.mrb[0].mxu0
        %v2430 = vadd.f32 %v2233, %v2429
        %v2431 = vpop.f32.mrb[0].mxu0
        %2432 = vmatprep.mubr.bf16.mxu0 0
        %2433 = vmatmul.mubr.bf16.gmra.mrb[0].mxu0 %v2288
        %v2434 = vpop.f32.mrb[0].mxu0
        %v2435 = vadd.f32 %v2233, %v2434
        %v2436 = vpop.f32.mrb[0].mxu0
        %v2437 = vpop.f32.mrb[0].mxu0
        %v2438 = vadd.f32 %v2233, %v2437
        %v2439 = vpop.f32.mrb[0].mxu0
        %2440 = vmatprep.mubr.bf16.mxu0 0
        %2441 = vmatmul.mubr.bf16.gmra.mrb[0].mxu0 %v2291
        %v2442 = vpop.f32.mrb[0].mxu0
        %v2443 = vadd.f32 %v2233, %v2442
        %v2444 = vpop.f32.mrb[0].mxu0
        %v2445 = vpop.f32.mrb[0].mxu0
        %v2446 = vadd.f32 %v2233, %v2445
        %v2447 = vpop.f32.mrb[0].mxu0
        %2448 = vmatprep.mubr.bf16.mxu0 0
        %2449 = vmatmul.mubr.bf16.gmra.mrb[0].mxu0 %v2294
        %v2450 = vpop.f32.mrb[0].mxu0
        %v2451 = vadd.f32 %v2233, %v2450
        %v2452 = vpop.f32.mrb[0].mxu0
        %v2453 = vpop.f32.mrb[0].mxu0
        %v2454 = vadd.f32 %v2233, %v2453
        %v2455 = vpop.f32.mrb[0].mxu0
        %2456 = vdwg.mxu0
        %v2457 = vmax.f32 %v2331, 0.0
        %v2458 = vmax.f32 %v2334, 0.0
        %v2459 = vmax.f32 %v2339, 0.0
        %v2460 = vmax.f32 %v2342, 0.0
        %v2461 = vmax.f32 %v2347, 0.0
        %v2462 = vmax.f32 %v2350, 0.0
        %v2463 = vmax.f32 %v2355, 0.0
        %v2464 = vmax.f32 %v2358, 0.0
        %v2465 = vmax.f32 %v2363, 0.0
        %v2466 = vmax.f32 %v2366, 0.0
        %v2467 = vmax.f32 %v2371, 0.0
        %v2468 = vmax.f32 %v2374, 0.0
        %v2469 = vmax.f32 %v2379, 0.0
        %v2470 = vmax.f32 %v2382, 0.0
        %v2471 = vmax.f32 %v2387, 0.0
        %v2472 = vmax.f32 %v2390, 0.0
        %v2473 = vmax.f32 %v2395, 0.0
        %v2474 = vmax.f32 %v2398, 0.0
        %v2475 = vmax.f32 %v2403, 0.0
        %v2476 = vmax.f32 %v2406, 0.0
        %v2477 = vmax.f32 %v2411, 0.0
        %v2478 = vmax.f32 %v2414, 0.0
        %v2479 = vmax.f32 %v2419, 0.0
        %v2480 = vmax.f32 %v2422, 0.0
        %v2481 = vmax.f32 %v2427, 0.0
        %v2482 = vmax.f32 %v2430, 0.0
        %v2483 = vmax.f32 %v2435, 0.0
        %v2484 = vmax.f32 %v2438, 0.0
        %v2485 = vmax.f32 %v2443, 0.0
        %v2486 = vmax.f32 %v2446, 0.0
        %v2487 = vmax.f32 %v2451, 0.0
        %v2488 = vmax.f32 %v2454, 0.0
        %v2489 = vmax.f32 %v2457, %v2465
        %v2490 = vmax.f32 %v2458, %v2466
        %v2491 = vmax.f32 %v2459, %v2467
        %v2492 = vmax.f32 %v2460, %v2468
        %v2493 = vmax.f32 %v2461, %v2469
        %v2494 = vmax.f32 %v2462, %v2470
        %v2495 = vmax.f32 %v2463, %v2471
        %v2496 = vmax.f32 %v2464, %v2472
        %v2497 = vmax.f32 %v2489, %v2473
        %v2498 = vmax.f32 %v2490, %v2474
        %v2499 = vmax.f32 %v2491, %v2475
        %v2500 = vmax.f32 %v2492, %v2476
        %v2501 = vmax.f32 %v2493, %v2477
        %v2502 = vmax.f32 %v2494, %v2478
        %v2503 = vmax.f32 %v2495, %v2479
        %v2504 = vmax.f32 %v2496, %v2480
        %v2505 = vmax.f32 %v2497, %v2481
        %v2506 = vmax.f32 %v2498, %v2482
        %v2507 = vmax.f32 %v2499, %v2483
        %v2508 = vmax.f32 %v2500, %v2484
        %v2509 = vmax.f32 %v2501, %v2485
        %v2510 = vmax.f32 %v2502, %v2486
        %v2511 = vmax.f32 %v2503, %v2487
        %v2512 = vmax.f32 %v2504, %v2488
        %v2513 = vld [vmem:[%s9] sm:$0xf]
        %v2514 = vpack.c.bf16 %v2506, %v2505
        %v2515 = vpack.c.bf16 %v2508, %v2507
        %v2516 = vpack.c.bf16 %v2510, %v2509
        %v2517 = vpack.c.bf16 %v2512, %v2511
        %v2518 = vld [vmem:[%s10] sm:$0xf]
        %v2519 = vld [vmem:[%s10 + $0x4] sm:$0xf]
        %v2520 = vld [vmem:[%s10 + $0x8] sm:$0xf]
        %v2521 = vld [vmem:[%s10 + $0xc] sm:$0xf]
        %v2526 = vunpack.c.l.b16 %v2518
        %v2527 = vunpack.c.l.b16 %v2519
        %v2528 = vunpack.c.l.b16 %v2520
        %v2529 = vunpack.c.l.b16 %v2521
        %v2530 = vpack.c.b16 %v2527, %v2526
        %v2531 = vpack.c.b16 %v2529, %v2528
        %v2535 = vsel %vm2247, %v2514, 0
        %v2538 = vsel %vm2247, %v2515, 0
        %v2541 = vsel %vm2247, %v2516, 0
        %v2544 = vsel %vm2247, %v2517, 0
        %2546 = vmatprep.subr.bf16.mxu0 0
        %2547 = vmatpush1.bf16.msra.mxu0 %v2530
        %2548 = vmatprep.subr.bf16.mxu0 0
        %2549 = vmatpush1.bf16.msra.mxu0 %v2531
        %2550 = vmatprep.subr.bf16.mxu0 0
        %2551 = vmatpush1.bf16.msra.mxu0 0
        %2552 = vmatprep.subr.bf16.mxu0 0
        %2553 = vmatpush1.bf16.msra.mxu0 0
        %2554 = vmatprep.subr.bf16.mxu0 0
        %2555 = vmatpush1.bf16.msra.mxu0 0
        %2556 = vmatprep.subr.bf16.mxu0 0
        %2557 = vmatpush1.bf16.msra.mxu0 0
        %2558 = vmatprep.subr.bf16.mxu0 0
        %2559 = vmatpush1.bf16.msra.mxu0 0
        %2560 = vmatprep.subr.bf16.mxu0 0
        %2561 = vmatpush1.bf16.msra.mxu0 0
        %2562 = vmatprep.subr.bf16.mxu0 0
        %2563 = vmatpush1.bf16.msra.mxu0 0
        %2564 = vmatprep.subr.bf16.mxu0 0
        %2565 = vmatpush1.bf16.msra.mxu0 0
        %2566 = vmatprep.subr.bf16.mxu0 0
        %2567 = vmatpush1.bf16.msra.mxu0 0
        %2568 = vmatprep.subr.bf16.mxu0 0
        %2569 = vmatpush1.bf16.msra.mxu0 0
        %2570 = vmatprep.subr.bf16.mxu0 0
        %2571 = vmatpush1.bf16.msra.mxu0 0
        %2572 = vmatprep.subr.bf16.mxu0 0
        %2573 = vmatpush1.bf16.msra.mxu0 0
        %2574 = vmatprep.subr.bf16.mxu0 0
        %2575 = vmatpush1.bf16.msra.mxu0 0
        %2576 = vmatprep.subr.bf16.mxu0 0
        %2577 = vmatpush1.bf16.msra.mxu0 0
        %2578 = vmatprep.mubr.bf16.mxu0 0
        %2579 = vmatmul.mubr.bf16.gmra.mrb[0].mxu0 %v2535
        %v2580 = vpop.f32.mrb[0].mxu0
        %v2581 = vadd.f32 0.0, %v2580
        %v2582 = vpop.f32.mrb[0].mxu0
        %v2583 = vpop.f32.mrb[0].mxu0
        %v2584 = vadd.f32 0.0, %v2583
        %v2585 = vpop.f32.mrb[0].mxu0
        %2586 = vmatprep.mubr.bf16.mxu0 0
        %2587 = vmatmul.mubr.bf16.gmra.mrb[0].mxu0 %v2538
        %v2588 = vpop.f32.mrb[0].mxu0
        %v2589 = vadd.f32 0.0, %v2588
        %v2590 = vpop.f32.mrb[0].mxu0
        %v2591 = vpop.f32.mrb[0].mxu0
        %v2592 = vadd.f32 0.0, %v2591
        %v2593 = vpop.f32.mrb[0].mxu0
        %2594 = vmatprep.mubr.bf16.mxu0 0
        %2595 = vmatmul.mubr.bf16.gmra.mrb[0].mxu0 %v2541
        %v2596 = vpop.f32.mrb[0].mxu0
        %v2597 = vadd.f32 0.0, %v2596
        %v2598 = vpop.f32.mrb[0].mxu0
        %v2599 = vpop.f32.mrb[0].mxu0
        %v2600 = vadd.f32 0.0, %v2599
        %v2601 = vpop.f32.mrb[0].mxu0
        %2602 = vmatprep.mubr.bf16.mxu0 0
        %2603 = vmatmul.mubr.bf16.gmra.mrb[0].mxu0 %v2544
        %v2604 = vpop.f32.mrb[0].mxu0
        %v2605 = vadd.f32 0.0, %v2604
        %v2606 = vpop.f32.mrb[0].mxu0
        %v2607 = vpop.f32.mrb[0].mxu0
        %v2608 = vadd.f32 0.0, %v2607
        %v2609 = vpop.f32.mrb[0].mxu0
        %2610 = vdwg.mxu0
        %v2612 = vsel %vm552, %v2513, 0
        %2614 = vmatprep.subr.bf16.mxu0 0
        %2615 = vmatpush1.bf16.msra.mxu0 %v2612
        %2616 = vmatprep.subr.bf16.mxu0 0
        %2617 = vmatpush1.bf16.msra.mxu0 0
        %2618 = vmatprep.subr.bf16.mxu0 0
        %2619 = vmatpush1.bf16.msra.mxu0 0
        %2620 = vmatprep.subr.bf16.mxu0 0
        %2621 = vmatpush1.bf16.msra.mxu0 0
        %2622 = vmatprep.subr.bf16.mxu0 0
        %2623 = vmatpush1.bf16.msra.mxu0 0
        %2624 = vmatprep.subr.bf16.mxu0 0
        %2625 = vmatpush1.bf16.msra.mxu0 0
        %2626 = vmatprep.subr.bf16.mxu0 0
        %2627 = vmatpush1.bf16.msra.mxu0 0
        %2628 = vmatprep.subr.bf16.mxu0 0
        %2629 = vmatpush1.bf16.msra.mxu0 0
        %2630 = vmatprep.subr.bf16.mxu0 0
        %2631 = vmatpush1.bf16.msra.mxu0 0
        %2632 = vmatprep.subr.bf16.mxu0 0
        %2633 = vmatpush1.bf16.msra.mxu0 0
        %2634 = vmatprep.subr.bf16.mxu0 0
        %2635 = vmatpush1.bf16.msra.mxu0 0
        %2636 = vmatprep.subr.bf16.mxu0 0
        %2637 = vmatpush1.bf16.msra.mxu0 0
        %2638 = vmatprep.subr.bf16.mxu0 0
        %2639 = vmatpush1.bf16.msra.mxu0 0
        %2640 = vmatprep.subr.bf16.mxu0 0
        %2641 = vmatpush1.bf16.msra.mxu0 0
        %2642 = vmatprep.subr.bf16.mxu0 0
        %2643 = vmatpush1.bf16.msra.mxu0 0
        %2644 = vmatprep.subr.bf16.mxu0 0
        %2645 = vmatpush1.bf16.msra.mxu0 0
        %2646 = vmatprep.mubr.bf16.mxu0 0
        %2647 = vmatmul.mubr.bf16.gmra.mrb[0].mxu0 %v541
        %v2648 = vpop.f32.mrb[0].mxu0
        %v2649 = vadd.f32 %v2581, %v2648
        %v2650 = vpop.f32.mrb[0].mxu0
        %v2651 = vpop.f32.mrb[0].mxu0
        %v2652 = vadd.f32 %v2584, %v2651
        %v2653 = vpop.f32.mrb[0].mxu0
        %2654 = vmatprep.mubr.bf16.mxu0 0
        %2655 = vmatmul.mubr.bf16.gmra.mrb[0].mxu0 %v544
        %v2656 = vpop.f32.mrb[0].mxu0
        %v2657 = vadd.f32 %v2589, %v2656
        %v2658 = vpop.f32.mrb[0].mxu0
        %v2659 = vpop.f32.mrb[0].mxu0
        %v2660 = vadd.f32 %v2592, %v2659
        %v2661 = vpop.f32.mrb[0].mxu0
        %2662 = vmatprep.mubr.bf16.mxu0 0
        %2663 = vmatmul.mubr.bf16.gmra.mrb[0].mxu0 %v547
        %v2664 = vpop.f32.mrb[0].mxu0
        %v2665 = vadd.f32 %v2597, %v2664
        %v2666 = vpop.f32.mrb[0].mxu0
        %v2667 = vpop.f32.mrb[0].mxu0
        %v2668 = vadd.f32 %v2600, %v2667
        %v2669 = vpop.f32.mrb[0].mxu0
        %2670 = vmatprep.mubr.bf16.mxu0 0
        %2671 = vmatmul.mubr.bf16.gmra.mrb[0].mxu0 %v550
        %v2672 = vpop.f32.mrb[0].mxu0
        %v2673 = vadd.f32 %v2605, %v2672
        %v2674 = vpop.f32.mrb[0].mxu0
        %v2675 = vpop.f32.mrb[0].mxu0
        %v2676 = vadd.f32 %v2608, %v2675
        %v2677 = vpop.f32.mrb[0].mxu0
        %2678 = vdwg.mxu0
        %v2679 = vld [vmem:[%s11] sm:$0x1]
        %v2681 = vlaneseq
        %v2682 = vshrl.u32 %v2681, 7
        %v2683 = vsub.s32 0, %v2682
        %v2684 = vrot.slane %v2679, %v2683
        %v2686 = vadd.f32 %v2649, %v2684
        %v2687 = vadd.f32 %v2652, %v2684
        %v2688 = vadd.f32 %v2657, %v2684
        %v2689 = vadd.f32 %v2660, %v2684
        %v2690 = vadd.f32 %v2665, %v2684
        %v2691 = vadd.f32 %v2668, %v2684
        %v2692 = vadd.f32 %v2673, %v2684
        %v2693 = vadd.f32 %v2676, %v2684
        %2694 = vst [vmem:[%s421] sm:$0xff] %v2686
        %2695 = vst [vmem:[%s421 + $0x8] sm:$0xff] %v2687
        %2696 = vst [vmem:[%s421 + $0x10] sm:$0xff] %v2688
        %2697 = vst [vmem:[%s421 + $0x18] sm:$0xff] %v2689
        %2698 = vst [vmem:[%s421 + $0x20] sm:$0xff] %v2690
        %2699 = vst [vmem:[%s421 + $0x28] sm:$0xff] %v2691
        %2700 = vst [vmem:[%s421 + $0x30] sm:$0xff] %v2692
        %2701 = vst [vmem:[%s421 + $0x38] sm:$0xff] %v2693
        %s2702 = sand.u32 %s296, 1
        %s2703 = scalar_lea.sflag [#allocation3], %s2702
        %s2704 = sand.u32 %s296, 1
        %s2705 = smul.addr %s2704, 64
        %s2706 = scalar_lea.vmem [#allocation2], %s2705
        // Predicated region
        $region69: #{tpu_custom_call.1} parent=67 // pred_check
          %p2707 = pneg %p306
        $region70: #{tpu_custom_call.1} parent=67 // pred_check_branch
          %2709 = sbr.rel (%p2707) target = $region72
        $region71: #{tpu_custom_call.1} parent=67 // pred_region
          %s2710 = smul.u32 8, %s26
          %s2712 = ssub.s32 1024, 1024
          %2713 = vsyncadd %s2703, %s2712
          %s2714 = smul.addr %s2710, 128
          %s2715 = scalar_lea.hbm %s12, %s2714
          %s2716 = sshll.u32 %s2706, 4
          %s2717 = int_to_ptr.vmem [resolvable:$true] %s2716
          %2722 = dma.vmem_to_hbm [thread:$0]  %s2717, 1024, %s2715, %s2703, 128, 128, 8
        $region72: #{tpu_custom_call.1} parent=67 // pred_fallthru
          _
      $region68: #{tpu_custom_call.1} parent=5 // pred_fallthru
        _
      %p2723 = scmp.le.s32.totalorder 2, %s21
      // Predicated region
      $region73: #{tpu_custom_call.1} parent=5 // pred_check
        %p2724 = pneg %p2723
      $region74: #{tpu_custom_call.1} parent=5 // pred_check_branch
        %2726 = sbr.rel (%p2724) target = $region76
      $region75: #{tpu_custom_call.1} parent=5 // pred_region
        %s2727 = ssub.s32 %s21, 2
        // Predicated region
        $region77: #{tpu_custom_call.1} parent=75 // pred_check
          %p2728 = pneg %p312
        $region78: #{tpu_custom_call.1} parent=75 // pred_check_branch
          %2730 = sbr.rel (%p2728) target = $region80
        $region79: #{tpu_custom_call.1} parent=75 // pred_region
          %s2731 = sand.u32 %s297, 1
          %s2732 = scalar_lea.sflag [#allocation3], %s2731
          %s2733 = sand.u32 %s297, 1
          %s2734 = smul.addr %s2733, 64
          %s2735 = scalar_lea.vmem [#allocation2], %s2734
          %2736 = dma.done %s2732, 1024
        $region80: #{tpu_custom_call.1} parent=75 // pred_fallthru
          _
      $region76: #{tpu_custom_call.1} parent=5 // pred_fallthru
        _
    $region6: #{tpu_custom_call.1} parent=1 // loop_footer
      %s25 = sadd.s32 1, %s21
    $region7: #{tpu_custom_call.1} parent=1 // loop_footer_branch
      %20 = sbr.rel target = $region3
    $region8: #{tpu_custom_call.1} parent=1 // loop_exit
      _
    %2737 = vsyncpa [#allocation3], 1
    %s2738 = scalar_lea.sflag [#allocation3], 1
    %2739 = vsyncpa %s2738, 1

</llo_original>
